<compile_context>
chip_gen: v7x
topology: tpu7x:2x2x1
jax: 0.10.0
libtpu: 0.0.40
codegen_flags: <defaults>
</compile_context>

<pallas_src>
import functools

import jax
import jax.numpy as jnp
from jax.experimental import pallas as pl
from jax.experimental.pallas import tpu as pltpu

EPS = 1e-5
F32 = jnp.float32
_VMEM_SPEC = pl.BlockSpec(memory_space=pltpu.MemorySpace.VMEM)
_VMEM_LIMIT = 32 * 1024 * 1024  # safe on all generations (v5e default is 16 MiB)


def _cp(semantics=None):
    return pltpu.CompilerParams(dimension_semantics=semantics,
                                vmem_limit_bytes=_VMEM_LIMIT)


# --------------------------------------------------------------------------
# Kernel 1: fused ResnetPiece prologue
#           [optional 2x2 max-pool] -> BN1 (batch stats) -> ReLU -> 1x1 conv
#           -> BN2 (batch stats).  Whole-(M,C) block (required for BN stats).
# --------------------------------------------------------------------------
def _piece_prologue_kernel(x_ref, g1_ref, b1_ref, wb_ref, bb_ref, g2_ref, b2_ref,
                           *out_refs, taps, pool):
    # x_ref: (taps, M, C); taps == 4 when a 2x2/stride-2 max-pool is fused, else 1.
    x = x_ref[0]
    for t in range(1, taps):
        x = jnp.maximum(x, x_ref[t])

    # BatchNorm1 (training mode: biased batch statistics) + ReLU
    m1 = jnp.mean(x, axis=0, keepdims=True)
    d1 = x - m1
    v1 = jnp.mean(d1 * d1, axis=0, keepdims=True)
    y = d1 * jax.lax.rsqrt(v1 + EPS) * g1_ref[...] + b1_ref[...]
    y = jnp.maximum(y, 0.0)

    # 1x1 bottleneck conv == matmul on the MXU
    h = jnp.dot(y, wb_ref[...], preferred_element_type=F32) + bb_ref[...]

    # BatchNorm2
    m2 = jnp.mean(h, axis=0, keepdims=True)
    d2 = h - m2
    v2 = jnp.mean(d2 * d2, axis=0, keepdims=True)
    out_refs[0][...] = d2 * jax.lax.rsqrt(v2 + EPS) * g2_ref[...] + b2_ref[...]

    if pool:
        out_refs[1][...] = x   # pooled residual, consumed by the 3x3 conv kernel


def piece_prologue(x_stack, p, *, pool):
    """x_stack: (T, M, C), T in {1, 4}. Returns (h (M,Cb), pooled_x or None)."""
    T, M, C = x_stack.shape
    Cb = p["wb"].shape[-1]
    args = (x_stack,
            p["g1"].reshape(1, C), p["b1"].reshape(1, C),
            p["wb"], p["bb"].reshape(1, Cb),
            p["g2"].reshape(1, Cb), p["b2"].reshape(1, Cb))
    kernel = functools.partial(_piece_prologue_kernel, taps=T, pool=pool)
    if pool:
        h, x2 = pl.pallas_call(
            kernel,
            out_shape=(jax.ShapeDtypeStruct((M, Cb), F32),
                       jax.ShapeDtypeStruct((M, C), F32)),
            in_specs=[_VMEM_SPEC] * 7,
            out_specs=(_VMEM_SPEC, _VMEM_SPEC),
            compiler_params=_cp(),
        )(*args)
        return h, x2
    h = pl.pallas_call(
        kernel,
        out_shape=jax.ShapeDtypeStruct((M, Cb), F32),
        in_specs=[_VMEM_SPEC] * 7,
        out_specs=_VMEM_SPEC,
        compiler_params=_cp(),
    )(*args)
    return h, None


# --------------------------------------------------------------------------
# Kernel 2: 3x3 conv with the 9 taps folded into the contraction dim (K=9*Cin)
#           + bias + optional ReLU + optional residual add.  M-tiled, parallel.
# --------------------------------------------------------------------------
def _conv3x3_kernel(p_ref, w_ref, b_ref, *refs, relu, has_res):
    if has_res:
        r_ref, o_ref = refs
    else:
        (o_ref,) = refs
        r_ref = None
    out = jnp.dot(p_ref[...], w_ref[...], preferred_element_type=F32) + b_ref[...]
    if relu:
        out = jnp.maximum(out, 0.0)
    if has_res:
        out = out + r_ref[...]
    o_ref[...] = out.astype(o_ref.dtype)


def _im2col_3x3(x4, padding):
    """(N,H,W,C) NHWC -> patches (M, 9*C). Pure XLA rectangular-slice glue."""
    if padding:
        x4 = jnp.pad(x4, ((0, 0), (padding, padding), (padding, padding), (0, 0)))
    N, Hp, Wp, C = x4.shape
    Ho, Wo = Hp - 2, Wp - 2
    M = N * Ho * Wo
    cols = [x4[:, ky:ky + Ho, kx:kx + Wo, :].reshape(M, C)
            for ky in range(3) for kx in range(3)]
    return jnp.concatenate(cols, axis=1), (N, Ho, Wo)


def conv3x3(x4, w, b, *, padding, relu, residual2d=None, tile_m=512):
    """x4: (N,H,W,Cin); w: (3,3,Cin,Cout) HWIO; b: (Cout,). Returns (N,Ho,Wo,Cout)."""
    patches, (N, Ho, Wo) = _im2col_3x3(x4, padding)
    M, K9 = patches.shape
    Cout = w.shape[-1]
    wf = w.reshape(K9, Cout)           # (ky,kx,ci) row order matches patch columns

    tm = M if M <= tile_m else tile_m  # full-M block when small, else 512-row tiles
    grid = (pl.cdiv(M, tm),)
    has_res = residual2d is not None

    inputs = [patches, wf, b.reshape(1, Cout)]
    in_specs = [
        pl.BlockSpec((tm, K9), lambda i: (i, 0)),
        pl.BlockSpec((K9, Cout), lambda i: (0, 0)),
        pl.BlockSpec((1, Cout), lambda i: (0, 0)),
    ]
    if has_res:
        inputs.append(residual2d)
        in_specs.append(pl.BlockSpec((tm, Cout), lambda i: (i, 0)))

    out2d = pl.pallas_call(
        functools.partial(_conv3x3_kernel, relu=relu, has_res=has_res),
        out_shape=jax.ShapeDtypeStruct((M, Cout), F32),
        grid=grid,
        in_specs=in_specs,
        out_specs=pl.BlockSpec((tm, Cout), lambda i: (i, 0)),
        compiler_params=_cp(("parallel",)),   # shards M tiles across v7x's 2 TCs
    )(*inputs)
    return out2d.reshape(N, Ho, Wo, Cout)


# --------------------------------------------------------------------------
# Kernel 3: fused classifier head
#           1x1 conv (32->10) + ReLU + AdaptiveAvgPool2d(1) + log_softmax.
#           The lane-sparse (M,10) intermediate stays in VMEM; only (N,10) is
#           stored.  The spatial mean is a matmul with an averaging matrix.
# --------------------------------------------------------------------------
def _head_kernel(x_ref, w_ref, b_ref, pm_ref, o_ref):
    z = jnp.dot(x_ref[...], w_ref[...], preferred_element_type=F32) + b_ref[...]
    z = jnp.maximum(z, 0.0)                                        # (M, n_cls)
    pooled = jnp.dot(pm_ref[...], z, preferred_element_type=F32)   # (N, n_cls)
    mx = jnp.max(pooled, axis=-1, keepdims=True)
    s = pooled - mx
    lse = jnp.log(jnp.sum(jnp.exp(s), axis=-1, keepdims=True))
    o_ref[...] = s - lse


def head(x2d, w, b, n, hw):
    M, C = x2d.shape
    n_cls = w.shape[-1]
    pool_mat = jnp.repeat(jnp.eye(n, dtype=F32), hw, axis=1) / float(hw)  # (n, M)
    return pl.pallas_call(
        _head_kernel,
        out_shape=jax.ShapeDtypeStruct((n, n_cls), F32),
        in_specs=[_VMEM_SPEC] * 4,
        out_specs=_VMEM_SPEC,
        compiler_params=_cp(),
    )(x2d, w, b.reshape(1, n_cls), pool_mat)


# --------------------------------------------------------------------------
# Model composition (XLA glue for slicing/reshapes; all compute in Pallas)
# --------------------------------------------------------------------------
def resnet_piece(x4, p, *, pool_first=False):
    """ResnetPiece: relu(bn1(x)) -> 1x1 -> bn2 -> 3x3(pad=1) -> relu -> + x.
    When pool_first, the preceding F.max_pool2d(x, 2) is fused into the prologue."""
    N, H, W, C = x4.shape
    if pool_first:
        Ho, Wo = H // 2, W // 2
        M = N * Ho * Wo
        x_stack = jnp.stack(
            [x4[:, dy:dy + 2 * Ho:2, dx:dx + 2 * Wo:2, :].reshape(M, C)
             for dy in range(2) for dx in range(2)], axis=0)       # (4, M, C)
        h, x2 = piece_prologue(x_stack, p, pool=True)
        Hc, Wc = Ho, Wo
    else:
        M = N * H * W
        x2 = x4.reshape(M, C)
        h, _ = piece_prologue(x2.reshape(1, M, C), p, pool=False)
        Hc, Wc = H, W
    h4 = h.reshape(N, Hc, Wc, -1)
    return conv3x3(h4, p["wc"], p["bc"], padding=1, relu=True, residual2d=x2)


def resnet_like_net(x_nchw, params):
    x = jnp.transpose(x_nchw, (0, 2, 3, 1)).astype(F32)            # NCHW -> NHWC
    x = conv3x3(x, params["conv1_w"], params["conv1_b"], padding=0, relu=True)
    x = resnet_piece(x, params["rs1"])
    x = resnet_piece(x, params["rs2"])
    x = resnet_piece(x, params["rs3"], pool_first=True)            # F.max_pool2d(x, 2)
    x = resnet_piece(x, params["rs4"])
    x = resnet_piece(x, params["rs5"], pool_first=True)            # F.max_pool2d(x, 2)
    N, H, W, C = x.shape
    return head(x.reshape(N * H * W, C), params["prep_w"], params["prep_b"], N, H * W)


# --------------------------------------------------------------------------
# Deterministic parameter initialization (shapes from the module's __init__)
# --------------------------------------------------------------------------
def init_params(key, ch, out_size=32, inner_size=16, n_classes=10):
    def nrm(k, shape, scale=0.1):
        return scale * jax.random.normal(k, shape, dtype=F32)

    keys = iter(jax.random.split(key, 64))
    params = {
        "conv1_w": nrm(next(keys), (3, 3, ch, out_size)),          # HWIO
        "conv1_b": nrm(next(keys), (out_size,)),
        "prep_w": nrm(next(keys), (out_size, n_classes)),
        "prep_b": nrm(next(keys), (n_classes,)),
    }
    for i in range(1, 6):
        params[f"rs{i}"] = {
            "g1": 1.0 + nrm(next(keys), (out_size,)),
            "b1": nrm(next(keys), (out_size,)),
            "wb": nrm(next(keys), (out_size, inner_size)),          # 1x1 bottleneck
            "bb": nrm(next(keys), (inner_size,)),
            "g2": 1.0 + nrm(next(keys), (inner_size,)),
            "b2": nrm(next(keys), (inner_size,)),
            "wc": nrm(next(keys), (3, 3, inner_size, out_size)),    # 3x3, pad=1
            "bc": nrm(next(keys), (out_size,)),
        }
    return params


if __name__ == "__main__":
    key = jax.random.PRNGKey(0)
    k_x, k_p = jax.random.split(key)

    ch = 4
    x = jax.random.normal(k_x, (2, ch, 16, 16), dtype=F32)          # NCHW, like PyTorch
    params = init_params(k_p, ch)

    out = jax.jit(resnet_like_net)(x, params)
    out = jax.block_until_ready(out)

    assert out.shape == (2, 10), out.shape
    # log_softmax sanity: probabilities sum to 1 per row
    assert bool(jnp.allclose(jnp.sum(jnp.exp(out), axis=1), 1.0, atol=1e-4))
    print("KERNEL_OK")
</pallas_src>

<mosaic_0001>
module attributes {stable_mosaic.version = 11 : i64} {
  func.func @_conv3x3_kernel(%arg0: i32, %arg1: memref<392x36xf32, #tpu.memory_space<vmem>>, %arg2: memref<36x32xf32, #tpu.memory_space<vmem>>, %arg3: memref<1x32xf32, #tpu.memory_space<vmem>>, %arg4: memref<392x32xf32, #tpu.memory_space<vmem>>) attributes {dimension_semantics = [#tpu.dimension_semantics<parallel>], iteration_bounds = array<i64: 1>, scalar_prefetch = 0 : i64, scratch_operands = 0 : i64, tpu.core_type = #tpu.core_type<tc>, window_params = [{transform_indices = @transform_0, window_bounds = array<i64: 392, 36>}, {pipeline_mode = #tpu.pipeline_mode<synchronous>, transform_indices = @transform_1, window_bounds = array<i64: 36, 32>}, {pipeline_mode = #tpu.pipeline_mode<synchronous>, transform_indices = @transform_2, window_bounds = array<i64: 1, 32>}, {transform_indices = @transform_3, window_bounds = array<i64: 392, 32>}]} {
    %c0 = arith.constant 0 : index
    %c0_0 = arith.constant 0 : index
    %0 = vector.load %arg1[%c0, %c0_0] : memref<392x36xf32, #tpu.memory_space<vmem>>, vector<392x36xf32>
    %c0_1 = arith.constant 0 : index
    %c0_2 = arith.constant 0 : index
    %1 = vector.load %arg2[%c0_1, %c0_2] : memref<36x32xf32, #tpu.memory_space<vmem>>, vector<36x32xf32>
    %cst = arith.constant dense<0.000000e+00> : vector<392x32xf32>
    %2 = tpu.matmul %0, %1, %cst {dimension_numbers = #tpu.dot_dimension_numbers<[1], [0], [0], [1], [0, 0, 1, 1], [], []>} : vector<392x36xf32>, vector<36x32xf32>, vector<392x32xf32> -> vector<392x32xf32>
    %c0_3 = arith.constant 0 : index
    %c0_4 = arith.constant 0 : index
    %3 = vector.load %arg3[%c0_3, %c0_4] : memref<1x32xf32, #tpu.memory_space<vmem>>, vector<1x32xf32>
    %4 = vector.broadcast %3 : vector<1x32xf32> to vector<392x32xf32>
    %5 = arith.addf %2, %4 : vector<392x32xf32>
    %cst_5 = arith.constant 0.000000e+00 : f32
    %6 = vector.broadcast %cst_5 : f32 to vector<392x32xf32>
    %7 = arith.maximumf %5, %6 : vector<392x32xf32>
    %c0_6 = arith.constant 0 : index
    %c0_7 = arith.constant 0 : index
    %8 = vector.load %arg4[%c0_6, %c0_7] : memref<392x32xf32, #tpu.memory_space<vmem>>, vector<392x32xf32>
    tpu.vector_store %arg4[%c0_6, %c0_7], %7 {strides = array<i32>} : memref<392x32xf32, #tpu.memory_space<vmem>>, vector<392x32xf32>,
    return
  }
  func.func @transform_0(%arg0: i32) -> (i32, i32) {
    %c0_i32 = arith.constant 0 : i32
    %c0_i32_0 = arith.constant 0 : i32
    return %arg0, %c0_i32 : i32, i32
  }
  func.func @transform_1(%arg0: i32) -> (i32, i32) {
    %c0_i32 = arith.constant 0 : i32
    %c0_i32_0 = arith.constant 0 : i32
    %c0_i32_1 = arith.constant 0 : i32
    return %c0_i32, %c0_i32_0 : i32, i32
  }
  func.func @transform_2(%arg0: i32) -> (i32, i32) {
    %c0_i32 = arith.constant 0 : i32
    %c0_i32_0 = arith.constant 0 : i32
    %c0_i32_1 = arith.constant 0 : i32
    return %c0_i32, %c0_i32_0 : i32, i32
  }
  func.func @transform_3(%arg0: i32) -> (i32, i32) {
    %c0_i32 = arith.constant 0 : i32
    %c0_i32_0 = arith.constant 0 : i32
    return %arg0, %c0_i32 : i32, i32
  }
}

module attributes {stable_mosaic.version = 11 : i64} {
  func.func @_piece_prologue_kernel(%arg0: memref<1x392x32xf32, #tpu.memory_space<vmem>>, %arg1: memref<1x32xf32, #tpu.memory_space<vmem>>, %arg2: memref<1x32xf32, #tpu.memory_space<vmem>>, %arg3: memref<32x16xf32, #tpu.memory_space<vmem>>, %arg4: memref<1x16xf32, #tpu.memory_space<vmem>>, %arg5: memref<1x16xf32, #tpu.memory_space<vmem>>, %arg6: memref<1x16xf32, #tpu.memory_space<vmem>>, %arg7: memref<392x16xf32, #tpu.memory_space<vmem>>) attributes {dimension_semantics = [], scalar_prefetch = 0 : i64, scratch_operands = 0 : i64, tpu.core_type = #tpu.core_type<tc>} {
    %c0 = arith.constant 0 : index
    %c0_0 = arith.constant 0 : index
    %c0_1 = arith.constant 0 : index
    %0 = vector.load %arg0[%c0, %c0_0, %c0_1] : memref<1x392x32xf32, #tpu.memory_space<vmem>>, vector<1x392x32xf32>
    %1 = vector.shape_cast %0 : vector<1x392x32xf32> to vector<392x32xf32>
    %cst = arith.constant dense<0.000000e+00> : vector<32xf32>
    %2 = vector.multi_reduction <add>, %1, %cst [0] : vector<392x32xf32> to vector<32xf32>
    %3 = vector.shape_cast %2 : vector<32xf32> to vector<1x32xf32>
    %cst_2 = arith.constant 3.920000e+02 : f32
    %4 = vector.broadcast %cst_2 : f32 to vector<1x32xf32>
    %5 = arith.divf %3, %4 : vector<1x32xf32>
    %6 = vector.broadcast %5 : vector<1x32xf32> to vector<392x32xf32>
    %7 = arith.subf %1, %6 : vector<392x32xf32>
    %8 = arith.mulf %7, %7 : vector<392x32xf32>
    %cst_3 = arith.constant dense<0.000000e+00> : vector<32xf32>
    %9 = vector.multi_reduction <add>, %8, %cst_3 [0] : vector<392x32xf32> to vector<32xf32>
    %10 = vector.shape_cast %9 : vector<32xf32> to vector<1x32xf32>
    %cst_4 = arith.constant 3.920000e+02 : f32
    %11 = vector.broadcast %cst_4 : f32 to vector<1x32xf32>
    %12 = arith.divf %10, %11 : vector<1x32xf32>
    %cst_5 = arith.constant 9.99999974E-6 : f32
    %13 = vector.broadcast %cst_5 : f32 to vector<1x32xf32>
    %14 = arith.addf %12, %13 : vector<1x32xf32>
    %15 = math.rsqrt %14 : vector<1x32xf32>
    %16 = vector.broadcast %15 : vector<1x32xf32> to vector<392x32xf32>
    %17 = arith.mulf %7, %16 : vector<392x32xf32>
    %c0_6 = arith.constant 0 : index
    %c0_7 = arith.constant 0 : index
    %18 = vector.load %arg1[%c0_6, %c0_7] : memref<1x32xf32, #tpu.memory_space<vmem>>, vector<1x32xf32>
    %19 = vector.broadcast %18 : vector<1x32xf32> to vector<392x32xf32>
    %20 = arith.mulf %17, %19 : vector<392x32xf32>
    %c0_8 = arith.constant 0 : index
    %c0_9 = arith.constant 0 : index
    %21 = vector.load %arg2[%c0_8, %c0_9] : memref<1x32xf32, #tpu.memory_space<vmem>>, vector<1x32xf32>
    %22 = vector.broadcast %21 : vector<1x32xf32> to vector<392x32xf32>
    %23 = arith.addf %20, %22 : vector<392x32xf32>
    %cst_10 = arith.constant 0.000000e+00 : f32
    %24 = vector.broadcast %cst_10 : f32 to vector<392x32xf32>
    %25 = arith.maximumf %23, %24 : vector<392x32xf32>
    %c0_11 = arith.constant 0 : index
    %c0_12 = arith.constant 0 : index
    %26 = vector.load %arg3[%c0_11, %c0_12] : memref<32x16xf32, #tpu.memory_space<vmem>>, vector<32x16xf32>
    %cst_13 = arith.constant dense<0.000000e+00> : vector<392x16xf32>
    %27 = tpu.matmul %25, %26, %cst_13 {dimension_numbers = #tpu.dot_dimension_numbers<[1], [0], [0], [1], [0, 0, 1, 1], [], []>} : vector<392x32xf32>, vector<32x16xf32>, vector<392x16xf32> -> vector<392x16xf32>
    %c0_14 = arith.constant 0 : index
    %c0_15 = arith.constant 0 : index
    %28 = vector.load %arg4[%c0_14, %c0_15] : memref<1x16xf32, #tpu.memory_space<vmem>>, vector<1x16xf32>
    %29 = vector.broadcast %28 : vector<1x16xf32> to vector<392x16xf32>
    %30 = arith.addf %27, %29 : vector<392x16xf32>
    %cst_16 = arith.constant dense<0.000000e+00> : vector<16xf32>
    %31 = vector.multi_reduction <add>, %30, %cst_16 [0] : vector<392x16xf32> to vector<16xf32>
    %32 = vector.shape_cast %31 : vector<16xf32> to vector<1x16xf32>
    %cst_17 = arith.constant 3.920000e+02 : f32
    %33 = vector.broadcast %cst_17 : f32 to vector<1x16xf32>
    %34 = arith.divf %32, %33 : vector<1x16xf32>
    %35 = vector.broadcast %34 : vector<1x16xf32> to vector<392x16xf32>
    %36 = arith.subf %30, %35 : vector<392x16xf32>
    %37 = arith.mulf %36, %36 : vector<392x16xf32>
    %cst_18 = arith.constant dense<0.000000e+00> : vector<16xf32>
    %38 = vector.multi_reduction <add>, %37, %cst_18 [0] : vector<392x16xf32> to vector<16xf32>
    %39 = vector.shape_cast %38 : vector<16xf32> to vector<1x16xf32>
    %cst_19 = arith.constant 3.920000e+02 : f32
    %40 = vector.broadcast %cst_19 : f32 to vector<1x16xf32>
    %41 = arith.divf %39, %40 : vector<1x16xf32>
    %cst_20 = arith.constant 9.99999974E-6 : f32
    %42 = vector.broadcast %cst_20 : f32 to vector<1x16xf32>
    %43 = arith.addf %41, %42 : vector<1x16xf32>
    %44 = math.rsqrt %43 : vector<1x16xf32>
    %45 = vector.broadcast %44 : vector<1x16xf32> to vector<392x16xf32>
    %46 = arith.mulf %36, %45 : vector<392x16xf32>
    %c0_21 = arith.constant 0 : index
    %c0_22 = arith.constant 0 : index
    %47 = vector.load %arg5[%c0_21, %c0_22] : memref<1x16xf32, #tpu.memory_space<vmem>>, vector<1x16xf32>
    %48 = vector.broadcast %47 : vector<1x16xf32> to vector<392x16xf32>
    %49 = arith.mulf %46, %48 : vector<392x16xf32>
    %c0_23 = arith.constant 0 : index
    %c0_24 = arith.constant 0 : index
    %50 = vector.load %arg6[%c0_23, %c0_24] : memref<1x16xf32, #tpu.memory_space<vmem>>, vector<1x16xf32>
    %51 = vector.broadcast %50 : vector<1x16xf32> to vector<392x16xf32>
    %52 = arith.addf %49, %51 : vector<392x16xf32>
    %c0_25 = arith.constant 0 : index
    %c0_26 = arith.constant 0 : index
    %53 = vector.load %arg7[%c0_25, %c0_26] : memref<392x16xf32, #tpu.memory_space<vmem>>, vector<392x16xf32>
    tpu.vector_store %arg7[%c0_25, %c0_26], %52 {strides = array<i32>} : memref<392x16xf32, #tpu.memory_space<vmem>>, vector<392x16xf32>,
    return
  }
}

module attributes {stable_mosaic.version = 11 : i64} {
  func.func @_conv3x3_kernel(%arg0: i32, %arg1: memref<392x144xf32, #tpu.memory_space<vmem>>, %arg2: memref<144x32xf32, #tpu.memory_space<vmem>>, %arg3: memref<1x32xf32, #tpu.memory_space<vmem>>, %arg4: memref<392x32xf32, #tpu.memory_space<vmem>>, %arg5: memref<392x32xf32, #tpu.memory_space<vmem>>) attributes {dimension_semantics = [#tpu.dimension_semantics<parallel>], iteration_bounds = array<i64: 1>, scalar_prefetch = 0 : i64, scratch_operands = 0 : i64, tpu.core_type = #tpu.core_type<tc>, window_params = [{transform_indices = @transform_0, window_bounds = array<i64: 392, 144>}, {pipeline_mode = #tpu.pipeline_mode<synchronous>, transform_indices = @transform_1, window_bounds = array<i64: 144, 32>}, {pipeline_mode = #tpu.pipeline_mode<synchronous>, transform_indices = @transform_2, window_bounds = array<i64: 1, 32>}, {transform_indices = @transform_3, window_bounds = array<i64: 392, 32>}, {transform_indices = @transform_4, window_bounds = array<i64: 392, 32>}]} {
    %c0 = arith.constant 0 : index
    %c0_0 = arith.constant 0 : index
    %0 = vector.load %arg1[%c0, %c0_0] : memref<392x144xf32, #tpu.memory_space<vmem>>, vector<392x144xf32>
    %c0_1 = arith.constant 0 : index
    %c0_2 = arith.constant 0 : index
    %1 = vector.load %arg2[%c0_1, %c0_2] : memref<144x32xf32, #tpu.memory_space<vmem>>, vector<144x32xf32>
    %cst = arith.constant dense<0.000000e+00> : vector<392x32xf32>
    %2 = tpu.matmul %0, %1, %cst {dimension_numbers = #tpu.dot_dimension_numbers<[1], [0], [0], [1], [0, 0, 1, 1], [], []>} : vector<392x144xf32>, vector<144x32xf32>, vector<392x32xf32> -> vector<392x32xf32>
    %c0_3 = arith.constant 0 : index
    %c0_4 = arith.constant 0 : index
    %3 = vector.load %arg3[%c0_3, %c0_4] : memref<1x32xf32, #tpu.memory_space<vmem>>, vector<1x32xf32>
    %4 = vector.broadcast %3 : vector<1x32xf32> to vector<392x32xf32>
    %5 = arith.addf %2, %4 : vector<392x32xf32>
    %cst_5 = arith.constant 0.000000e+00 : f32
    %6 = vector.broadcast %cst_5 : f32 to vector<392x32xf32>
    %7 = arith.maximumf %5, %6 : vector<392x32xf32>
    %c0_6 = arith.constant 0 : index
    %c0_7 = arith.constant 0 : index
    %8 = vector.load %arg4[%c0_6, %c0_7] : memref<392x32xf32, #tpu.memory_space<vmem>>, vector<392x32xf32>
    %9 = arith.addf %7, %8 : vector<392x32xf32>
    %c0_8 = arith.constant 0 : index
    %c0_9 = arith.constant 0 : index
    %10 = vector.load %arg5[%c0_8, %c0_9] : memref<392x32xf32, #tpu.memory_space<vmem>>, vector<392x32xf32>
    tpu.vector_store %arg5[%c0_8, %c0_9], %9 {strides = array<i32>} : memref<392x32xf32, #tpu.memory_space<vmem>>, vector<392x32xf32>,
    return
  }
  func.func @transform_0(%arg0: i32) -> (i32, i32) {
    %c0_i32 = arith.constant 0 : i32
    %c0_i32_0 = arith.constant 0 : i32
    return %arg0, %c0_i32 : i32, i32
  }
  func.func @transform_1(%arg0: i32) -> (i32, i32) {
    %c0_i32 = arith.constant 0 : i32
    %c0_i32_0 = arith.constant 0 : i32
    %c0_i32_1 = arith.constant 0 : i32
    return %c0_i32, %c0_i32_0 : i32, i32
  }
  func.func @transform_2(%arg0: i32) -> (i32, i32) {
    %c0_i32 = arith.constant 0 : i32
    %c0_i32_0 = arith.constant 0 : i32
    %c0_i32_1 = arith.constant 0 : i32
    return %c0_i32, %c0_i32_0 : i32, i32
  }
  func.func @transform_3(%arg0: i32) -> (i32, i32) {
    %c0_i32 = arith.constant 0 : i32
    %c0_i32_0 = arith.constant 0 : i32
    return %arg0, %c0_i32 : i32, i32
  }
  func.func @transform_4(%arg0: i32) -> (i32, i32) {
    %c0_i32 = arith.constant 0 : i32
    %c0_i32_0 = arith.constant 0 : i32
    return %arg0, %c0_i32 : i32, i32
  }
}

module attributes {stable_mosaic.version = 11 : i64} {
  func.func @_piece_prologue_kernel(%arg0: memref<4x98x32xf32, #tpu.memory_space<vmem>>, %arg1: memref<1x32xf32, #tpu.memory_space<vmem>>, %arg2: memref<1x32xf32, #tpu.memory_space<vmem>>, %arg3: memref<32x16xf32, #tpu.memory_space<vmem>>, %arg4: memref<1x16xf32, #tpu.memory_space<vmem>>, %arg5: memref<1x16xf32, #tpu.memory_space<vmem>>, %arg6: memref<1x16xf32, #tpu.memory_space<vmem>>, %arg7: memref<98x16xf32, #tpu.memory_space<vmem>>, %arg8: memref<98x32xf32, #tpu.memory_space<vmem>>) attributes {dimension_semantics = [], scalar_prefetch = 0 : i64, scratch_operands = 0 : i64, tpu.core_type = #tpu.core_type<tc>} {
    %c0 = arith.constant 0 : index
    %c0_0 = arith.constant 0 : index
    %c0_1 = arith.constant 0 : index
    %0 = vector.load %arg0[%c0, %c0_0, %c0_1] : memref<4x98x32xf32, #tpu.memory_space<vmem>>, vector<1x98x32xf32>
    %1 = vector.shape_cast %0 : vector<1x98x32xf32> to vector<98x32xf32>
    %c1 = arith.constant 1 : index
    %c0_2 = arith.constant 0 : index
    %c0_3 = arith.constant 0 : index
    %2 = vector.load %arg0[%c1, %c0_2, %c0_3] : memref<4x98x32xf32, #tpu.memory_space<vmem>>, vector<1x98x32xf32>
    %3 = vector.shape_cast %2 : vector<1x98x32xf32> to vector<98x32xf32>
    %4 = arith.maximumf %1, %3 : vector<98x32xf32>
    %c2 = arith.constant 2 : index
    %c0_4 = arith.constant 0 : index
    %c0_5 = arith.constant 0 : index
    %5 = vector.load %arg0[%c2, %c0_4, %c0_5] : memref<4x98x32xf32, #tpu.memory_space<vmem>>, vector<1x98x32xf32>
    %6 = vector.shape_cast %5 : vector<1x98x32xf32> to vector<98x32xf32>
    %7 = arith.maximumf %4, %6 : vector<98x32xf32>
    %c3 = arith.constant 3 : index
    %c0_6 = arith.constant 0 : index
    %c0_7 = arith.constant 0 : index
    %8 = vector.load %arg0[%c3, %c0_6, %c0_7] : memref<4x98x32xf32, #tpu.memory_space<vmem>>, vector<1x98x32xf32>
    %9 = vector.shape_cast %8 : vector<1x98x32xf32> to vector<98x32xf32>
    %10 = arith.maximumf %7, %9 : vector<98x32xf32>
    %cst = arith.constant dense<0.000000e+00> : vector<32xf32>
    %11 = vector.multi_reduction <add>, %10, %cst [0] : vector<98x32xf32> to vector<32xf32>
    %12 = vector.shape_cast %11 : vector<32xf32> to vector<1x32xf32>
    %cst_8 = arith.constant 9.800000e+01 : f32
    %13 = vector.broadcast %cst_8 : f32 to vector<1x32xf32>
    %14 = arith.divf %12, %13 : vector<1x32xf32>
    %15 = vector.broadcast %14 : vector<1x32xf32> to vector<98x32xf32>
    %16 = arith.subf %10, %15 : vector<98x32xf32>
    %17 = arith.mulf %16, %16 : vector<98x32xf32>
    %cst_9 = arith.constant dense<0.000000e+00> : vector<32xf32>
    %18 = vector.multi_reduction <add>, %17, %cst_9 [0] : vector<98x32xf32> to vector<32xf32>
    %19 = vector.shape_cast %18 : vector<32xf32> to vector<1x32xf32>
    %cst_10 = arith.constant 9.800000e+01 : f32
    %20 = vector.broadcast %cst_10 : f32 to vector<1x32xf32>
    %21 = arith.divf %19, %20 : vector<1x32xf32>
    %cst_11 = arith.constant 9.99999974E-6 : f32
    %22 = vector.broadcast %cst_11 : f32 to vector<1x32xf32>
    %23 = arith.addf %21, %22 : vector<1x32xf32>
    %24 = math.rsqrt %23 : vector<1x32xf32>
    %25 = vector.broadcast %24 : vector<1x32xf32> to vector<98x32xf32>
    %26 = arith.mulf %16, %25 : vector<98x32xf32>
    %c0_12 = arith.constant 0 : index
    %c0_13 = arith.constant 0 : index
    %27 = vector.load %arg1[%c0_12, %c0_13] : memref<1x32xf32, #tpu.memory_space<vmem>>, vector<1x32xf32>
    %28 = vector.broadcast %27 : vector<1x32xf32> to vector<98x32xf32>
    %29 = arith.mulf %26, %28 : vector<98x32xf32>
    %c0_14 = arith.constant 0 : index
    %c0_15 = arith.constant 0 : index
    %30 = vector.load %arg2[%c0_14, %c0_15] : memref<1x32xf32, #tpu.memory_space<vmem>>, vector<1x32xf32>
    %31 = vector.broadcast %30 : vector<1x32xf32> to vector<98x32xf32>
    %32 = arith.addf %29, %31 : vector<98x32xf32>
    %cst_16 = arith.constant 0.000000e+00 : f32
    %33 = vector.broadcast %cst_16 : f32 to vector<98x32xf32>
    %34 = arith.maximumf %32, %33 : vector<98x32xf32>
    %c0_17 = arith.constant 0 : index
    %c0_18 = arith.constant 0 : index
    %35 = vector.load %arg3[%c0_17, %c0_18] : memref<32x16xf32, #tpu.memory_space<vmem>>, vector<32x16xf32>
    %cst_19 = arith.constant dense<0.000000e+00> : vector<98x16xf32>
    %36 = tpu.matmul %34, %35, %cst_19 {dimension_numbers = #tpu.dot_dimension_numbers<[1], [0], [0], [1], [0, 0, 1, 1], [], []>} : vector<98x32xf32>, vector<32x16xf32>, vector<98x16xf32> -> vector<98x16xf32>
    %c0_20 = arith.constant 0 : index
    %c0_21 = arith.constant 0 : index
    %37 = vector.load %arg4[%c0_20, %c0_21] : memref<1x16xf32, #tpu.memory_space<vmem>>, vector<1x16xf32>
    %38 = vector.broadcast %37 : vector<1x16xf32> to vector<98x16xf32>
    %39 = arith.addf %36, %38 : vector<98x16xf32>
    %cst_22 = arith.constant dense<0.000000e+00> : vector<16xf32>
    %40 = vector.multi_reduction <add>, %39, %cst_22 [0] : vector<98x16xf32> to vector<16xf32>
    %41 = vector.shape_cast %40 : vector<16xf32> to vector<1x16xf32>
    %cst_23 = arith.constant 9.800000e+01 : f32
    %42 = vector.broadcast %cst_23 : f32 to vector<1x16xf32>
    %43 = arith.divf %41, %42 : vector<1x16xf32>
    %44 = vector.broadcast %43 : vector<1x16xf32> to vector<98x16xf32>
    %45 = arith.subf %39, %44 : vector<98x16xf32>
    %46 = arith.mulf %45, %45 : vector<98x16xf32>
    %cst_24 = arith.constant dense<0.000000e+00> : vector<16xf32>
    %47 = vector.multi_reduction <add>, %46, %cst_24 [0] : vector<98x16xf32> to vector<16xf32>
    %48 = vector.shape_cast %47 : vector<16xf32> to vector<1x16xf32>
    %cst_25 = arith.constant 9.800000e+01 : f32
    %49 = vector.broadcast %cst_25 : f32 to vector<1x16xf32>
    %50 = arith.divf %48, %49 : vector<1x16xf32>
    %cst_26 = arith.constant 9.99999974E-6 : f32
    %51 = vector.broadcast %cst_26 : f32 to vector<1x16xf32>
    %52 = arith.addf %50, %51 : vector<1x16xf32>
    %53 = math.rsqrt %52 : vector<1x16xf32>
    %54 = vector.broadcast %53 : vector<1x16xf32> to vector<98x16xf32>
    %55 = arith.mulf %45, %54 : vector<98x16xf32>
    %c0_27 = arith.constant 0 : index
    %c0_28 = arith.constant 0 : index
    %56 = vector.load %arg5[%c0_27, %c0_28] : memref<1x16xf32, #tpu.memory_space<vmem>>, vector<1x16xf32>
    %57 = vector.broadcast %56 : vector<1x16xf32> to vector<98x16xf32>
    %58 = arith.mulf %55, %57 : vector<98x16xf32>
    %c0_29 = arith.constant 0 : index
    %c0_30 = arith.constant 0 : index
    %59 = vector.load %arg6[%c0_29, %c0_30] : memref<1x16xf32, #tpu.memory_space<vmem>>, vector<1x16xf32>
    %60 = vector.broadcast %59 : vector<1x16xf32> to vector<98x16xf32>
    %61 = arith.addf %58, %60 : vector<98x16xf32>
    %c0_31 = arith.constant 0 : index
    %c0_32 = arith.constant 0 : index
    %62 = vector.load %arg7[%c0_31, %c0_32] : memref<98x16xf32, #tpu.memory_space<vmem>>, vector<98x16xf32>
    tpu.vector_store %arg7[%c0_31, %c0_32], %61 {strides = array<i32>} : memref<98x16xf32, #tpu.memory_space<vmem>>, vector<98x16xf32>,
    %c0_33 = arith.constant 0 : index
    %c0_34 = arith.constant 0 : index
    %63 = vector.load %arg8[%c0_33, %c0_34] : memref<98x32xf32, #tpu.memory_space<vmem>>, vector<98x32xf32>
    tpu.vector_store %arg8[%c0_33, %c0_34], %10 {strides = array<i32>} : memref<98x32xf32, #tpu.memory_space<vmem>>, vector<98x32xf32>,
    return
  }
}

module attributes {stable_mosaic.version = 11 : i64} {
  func.func @_conv3x3_kernel(%arg0: i32, %arg1: memref<98x144xf32, #tpu.memory_space<vmem>>, %arg2: memref<144x32xf32, #tpu.memory_space<vmem>>, %arg3: memref<1x32xf32, #tpu.memory_space<vmem>>, %arg4: memref<98x32xf32, #tpu.memory_space<vmem>>, %arg5: memref<98x32xf32, #tpu.memory_space<vmem>>) attributes {dimension_semantics = [#tpu.dimension_semantics<parallel>], iteration_bounds = array<i64: 1>, scalar_prefetch = 0 : i64, scratch_operands = 0 : i64, tpu.core_type = #tpu.core_type<tc>, window_params = [{transform_indices = @transform_0, window_bounds = array<i64: 98, 144>}, {pipeline_mode = #tpu.pipeline_mode<synchronous>, transform_indices = @transform_1, window_bounds = array<i64: 144, 32>}, {pipeline_mode = #tpu.pipeline_mode<synchronous>, transform_indices = @transform_2, window_bounds = array<i64: 1, 32>}, {transform_indices = @transform_3, window_bounds = array<i64: 98, 32>}, {transform_indices = @transform_4, window_bounds = array<i64: 98, 32>}]} {
    %c0 = arith.constant 0 : index
    %c0_0 = arith.constant 0 : index
    %0 = vector.load %arg1[%c0, %c0_0] : memref<98x144xf32, #tpu.memory_space<vmem>>, vector<98x144xf32>
    %c0_1 = arith.constant 0 : index
    %c0_2 = arith.constant 0 : index
    %1 = vector.load %arg2[%c0_1, %c0_2] : memref<144x32xf32, #tpu.memory_space<vmem>>, vector<144x32xf32>
    %cst = arith.constant dense<0.000000e+00> : vector<98x32xf32>
    %2 = tpu.matmul %0, %1, %cst {dimension_numbers = #tpu.dot_dimension_numbers<[1], [0], [0], [1], [0, 0, 1, 1], [], []>} : vector<98x144xf32>, vector<144x32xf32>, vector<98x32xf32> -> vector<98x32xf32>
    %c0_3 = arith.constant 0 : index
    %c0_4 = arith.constant 0 : index
    %3 = vector.load %arg3[%c0_3, %c0_4] : memref<1x32xf32, #tpu.memory_space<vmem>>, vector<1x32xf32>
    %4 = vector.broadcast %3 : vector<1x32xf32> to vector<98x32xf32>
    %5 = arith.addf %2, %4 : vector<98x32xf32>
    %cst_5 = arith.constant 0.000000e+00 : f32
    %6 = vector.broadcast %cst_5 : f32 to vector<98x32xf32>
    %7 = arith.maximumf %5, %6 : vector<98x32xf32>
    %c0_6 = arith.constant 0 : index
    %c0_7 = arith.constant 0 : index
    %8 = vector.load %arg4[%c0_6, %c0_7] : memref<98x32xf32, #tpu.memory_space<vmem>>, vector<98x32xf32>
    %9 = arith.addf %7, %8 : vector<98x32xf32>
    %c0_8 = arith.constant 0 : index
    %c0_9 = arith.constant 0 : index
    %10 = vector.load %arg5[%c0_8, %c0_9] : memref<98x32xf32, #tpu.memory_space<vmem>>, vector<98x32xf32>
    tpu.vector_store %arg5[%c0_8, %c0_9], %9 {strides = array<i32>} : memref<98x32xf32, #tpu.memory_space<vmem>>, vector<98x32xf32>,
    return
  }
  func.func @transform_0(%arg0: i32) -> (i32, i32) {
    %c0_i32 = arith.constant 0 : i32
    %c0_i32_0 = arith.constant 0 : i32
    return %arg0, %c0_i32 : i32, i32
  }
  func.func @transform_1(%arg0: i32) -> (i32, i32) {
    %c0_i32 = arith.constant 0 : i32
    %c0_i32_0 = arith.constant 0 : i32
    %c0_i32_1 = arith.constant 0 : i32
    return %c0_i32, %c0_i32_0 : i32, i32
  }
  func.func @transform_2(%arg0: i32) -> (i32, i32) {
    %c0_i32 = arith.constant 0 : i32
    %c0_i32_0 = arith.constant 0 : i32
    %c0_i32_1 = arith.constant 0 : i32
    return %c0_i32, %c0_i32_0 : i32, i32
  }
  func.func @transform_3(%arg0: i32) -> (i32, i32) {
    %c0_i32 = arith.constant 0 : i32
    %c0_i32_0 = arith.constant 0 : i32
    return %arg0, %c0_i32 : i32, i32
  }
  func.func @transform_4(%arg0: i32) -> (i32, i32) {
    %c0_i32 = arith.constant 0 : i32
    %c0_i32_0 = arith.constant 0 : i32
    return %arg0, %c0_i32 : i32, i32
  }
}

module attributes {stable_mosaic.version = 11 : i64} {
  func.func @_piece_prologue_kernel(%arg0: memref<1x98x32xf32, #tpu.memory_space<vmem>>, %arg1: memref<1x32xf32, #tpu.memory_space<vmem>>, %arg2: memref<1x32xf32, #tpu.memory_space<vmem>>, %arg3: memref<32x16xf32, #tpu.memory_space<vmem>>, %arg4: memref<1x16xf32, #tpu.memory_space<vmem>>, %arg5: memref<1x16xf32, #tpu.memory_space<vmem>>, %arg6: memref<1x16xf32, #tpu.memory_space<vmem>>, %arg7: memref<98x16xf32, #tpu.memory_space<vmem>>) attributes {dimension_semantics = [], scalar_prefetch = 0 : i64, scratch_operands = 0 : i64, tpu.core_type = #tpu.core_type<tc>} {
    %c0 = arith.constant 0 : index
    %c0_0 = arith.constant 0 : index
    %c0_1 = arith.constant 0 : index
    %0 = vector.load %arg0[%c0, %c0_0, %c0_1] : memref<1x98x32xf32, #tpu.memory_space<vmem>>, vector<1x98x32xf32>
    %1 = vector.shape_cast %0 : vector<1x98x32xf32> to vector<98x32xf32>
    %cst = arith.constant dense<0.000000e+00> : vector<32xf32>
    %2 = vector.multi_reduction <add>, %1, %cst [0] : vector<98x32xf32> to vector<32xf32>
    %3 = vector.shape_cast %2 : vector<32xf32> to vector<1x32xf32>
    %cst_2 = arith.constant 9.800000e+01 : f32
    %4 = vector.broadcast %cst_2 : f32 to vector<1x32xf32>
    %5 = arith.divf %3, %4 : vector<1x32xf32>
    %6 = vector.broadcast %5 : vector<1x32xf32> to vector<98x32xf32>
    %7 = arith.subf %1, %6 : vector<98x32xf32>
    %8 = arith.mulf %7, %7 : vector<98x32xf32>
    %cst_3 = arith.constant dense<0.000000e+00> : vector<32xf32>
    %9 = vector.multi_reduction <add>, %8, %cst_3 [0] : vector<98x32xf32> to vector<32xf32>
    %10 = vector.shape_cast %9 : vector<32xf32> to vector<1x32xf32>
    %cst_4 = arith.constant 9.800000e+01 : f32
    %11 = vector.broadcast %cst_4 : f32 to vector<1x32xf32>
    %12 = arith.divf %10, %11 : vector<1x32xf32>
    %cst_5 = arith.constant 9.99999974E-6 : f32
    %13 = vector.broadcast %cst_5 : f32 to vector<1x32xf32>
    %14 = arith.addf %12, %13 : vector<1x32xf32>
    %15 = math.rsqrt %14 : vector<1x32xf32>
    %16 = vector.broadcast %15 : vector<1x32xf32> to vector<98x32xf32>
    %17 = arith.mulf %7, %16 : vector<98x32xf32>
    %c0_6 = arith.constant 0 : index
    %c0_7 = arith.constant 0 : index
    %18 = vector.load %arg1[%c0_6, %c0_7] : memref<1x32xf32, #tpu.memory_space<vmem>>, vector<1x32xf32>
    %19 = vector.broadcast %18 : vector<1x32xf32> to vector<98x32xf32>
    %20 = arith.mulf %17, %19 : vector<98x32xf32>
    %c0_8 = arith.constant 0 : index
    %c0_9 = arith.constant 0 : index
    %21 = vector.load %arg2[%c0_8, %c0_9] : memref<1x32xf32, #tpu.memory_space<vmem>>, vector<1x32xf32>
    %22 = vector.broadcast %21 : vector<1x32xf32> to vector<98x32xf32>
    %23 = arith.addf %20, %22 : vector<98x32xf32>
    %cst_10 = arith.constant 0.000000e+00 : f32
    %24 = vector.broadcast %cst_10 : f32 to vector<98x32xf32>
    %25 = arith.maximumf %23, %24 : vector<98x32xf32>
    %c0_11 = arith.constant 0 : index
    %c0_12 = arith.constant 0 : index
    %26 = vector.load %arg3[%c0_11, %c0_12] : memref<32x16xf32, #tpu.memory_space<vmem>>, vector<32x16xf32>
    %cst_13 = arith.constant dense<0.000000e+00> : vector<98x16xf32>
    %27 = tpu.matmul %25, %26, %cst_13 {dimension_numbers = #tpu.dot_dimension_numbers<[1], [0], [0], [1], [0, 0, 1, 1], [], []>} : vector<98x32xf32>, vector<32x16xf32>, vector<98x16xf32> -> vector<98x16xf32>
    %c0_14 = arith.constant 0 : index
    %c0_15 = arith.constant 0 : index
    %28 = vector.load %arg4[%c0_14, %c0_15] : memref<1x16xf32, #tpu.memory_space<vmem>>, vector<1x16xf32>
    %29 = vector.broadcast %28 : vector<1x16xf32> to vector<98x16xf32>
    %30 = arith.addf %27, %29 : vector<98x16xf32>
    %cst_16 = arith.constant dense<0.000000e+00> : vector<16xf32>
    %31 = vector.multi_reduction <add>, %30, %cst_16 [0] : vector<98x16xf32> to vector<16xf32>
    %32 = vector.shape_cast %31 : vector<16xf32> to vector<1x16xf32>
    %cst_17 = arith.constant 9.800000e+01 : f32
    %33 = vector.broadcast %cst_17 : f32 to vector<1x16xf32>
    %34 = arith.divf %32, %33 : vector<1x16xf32>
    %35 = vector.broadcast %34 : vector<1x16xf32> to vector<98x16xf32>
    %36 = arith.subf %30, %35 : vector<98x16xf32>
    %37 = arith.mulf %36, %36 : vector<98x16xf32>
    %cst_18 = arith.constant dense<0.000000e+00> : vector<16xf32>
    %38 = vector.multi_reduction <add>, %37, %cst_18 [0] : vector<98x16xf32> to vector<16xf32>
    %39 = vector.shape_cast %38 : vector<16xf32> to vector<1x16xf32>
    %cst_19 = arith.constant 9.800000e+01 : f32
    %40 = vector.broadcast %cst_19 : f32 to vector<1x16xf32>
    %41 = arith.divf %39, %40 : vector<1x16xf32>
    %cst_20 = arith.constant 9.99999974E-6 : f32
    %42 = vector.broadcast %cst_20 : f32 to vector<1x16xf32>
    %43 = arith.addf %41, %42 : vector<1x16xf32>
    %44 = math.rsqrt %43 : vector<1x16xf32>
    %45 = vector.broadcast %44 : vector<1x16xf32> to vector<98x16xf32>
    %46 = arith.mulf %36, %45 : vector<98x16xf32>
    %c0_21 = arith.constant 0 : index
    %c0_22 = arith.constant 0 : index
    %47 = vector.load %arg5[%c0_21, %c0_22] : memref<1x16xf32, #tpu.memory_space<vmem>>, vector<1x16xf32>
    %48 = vector.broadcast %47 : vector<1x16xf32> to vector<98x16xf32>
    %49 = arith.mulf %46, %48 : vector<98x16xf32>
    %c0_23 = arith.constant 0 : index
    %c0_24 = arith.constant 0 : index
    %50 = vector.load %arg6[%c0_23, %c0_24] : memref<1x16xf32, #tpu.memory_space<vmem>>, vector<1x16xf32>
    %51 = vector.broadcast %50 : vector<1x16xf32> to vector<98x16xf32>
    %52 = arith.addf %49, %51 : vector<98x16xf32>
    %c0_25 = arith.constant 0 : index
    %c0_26 = arith.constant 0 : index
    %53 = vector.load %arg7[%c0_25, %c0_26] : memref<98x16xf32, #tpu.memory_space<vmem>>, vector<98x16xf32>
    tpu.vector_store %arg7[%c0_25, %c0_26], %52 {strides = array<i32>} : memref<98x16xf32, #tpu.memory_space<vmem>>, vector<98x16xf32>,
    return
  }
}

module attributes {stable_mosaic.version = 11 : i64} {
  func.func @_piece_prologue_kernel(%arg0: memref<4x18x32xf32, #tpu.memory_space<vmem>>, %arg1: memref<1x32xf32, #tpu.memory_space<vmem>>, %arg2: memref<1x32xf32, #tpu.memory_space<vmem>>, %arg3: memref<32x16xf32, #tpu.memory_space<vmem>>, %arg4: memref<1x16xf32, #tpu.memory_space<vmem>>, %arg5: memref<1x16xf32, #tpu.memory_space<vmem>>, %arg6: memref<1x16xf32, #tpu.memory_space<vmem>>, %arg7: memref<18x16xf32, #tpu.memory_space<vmem>>, %arg8: memref<18x32xf32, #tpu.memory_space<vmem>>) attributes {dimension_semantics = [], scalar_prefetch = 0 : i64, scratch_operands = 0 : i64, tpu.core_type = #tpu.core_type<tc>} {
    %c0 = arith.constant 0 : index
    %c0_0 = arith.constant 0 : index
    %c0_1 = arith.constant 0 : index
    %0 = vector.load %arg0[%c0, %c0_0, %c0_1] : memref<4x18x32xf32, #tpu.memory_space<vmem>>, vector<1x18x32xf32>
    %1 = vector.shape_cast %0 : vector<1x18x32xf32> to vector<18x32xf32>
    %c1 = arith.constant 1 : index
    %c0_2 = arith.constant 0 : index
    %c0_3 = arith.constant 0 : index
    %2 = vector.load %arg0[%c1, %c0_2, %c0_3] : memref<4x18x32xf32, #tpu.memory_space<vmem>>, vector<1x18x32xf32>
    %3 = vector.shape_cast %2 : vector<1x18x32xf32> to vector<18x32xf32>
    %4 = arith.maximumf %1, %3 : vector<18x32xf32>
    %c2 = arith.constant 2 : index
    %c0_4 = arith.constant 0 : index
    %c0_5 = arith.constant 0 : index
    %5 = vector.load %arg0[%c2, %c0_4, %c0_5] : memref<4x18x32xf32, #tpu.memory_space<vmem>>, vector<1x18x32xf32>
    %6 = vector.shape_cast %5 : vector<1x18x32xf32> to vector<18x32xf32>
    %7 = arith.maximumf %4, %6 : vector<18x32xf32>
    %c3 = arith.constant 3 : index
    %c0_6 = arith.constant 0 : index
    %c0_7 = arith.constant 0 : index
    %8 = vector.load %arg0[%c3, %c0_6, %c0_7] : memref<4x18x32xf32, #tpu.memory_space<vmem>>, vector<1x18x32xf32>
    %9 = vector.shape_cast %8 : vector<1x18x32xf32> to vector<18x32xf32>
    %10 = arith.maximumf %7, %9 : vector<18x32xf32>
    %cst = arith.constant dense<0.000000e+00> : vector<32xf32>
    %11 = vector.multi_reduction <add>, %10, %cst [0] : vector<18x32xf32> to vector<32xf32>
    %12 = vector.shape_cast %11 : vector<32xf32> to vector<1x32xf32>
    %cst_8 = arith.constant 1.800000e+01 : f32
    %13 = vector.broadcast %cst_8 : f32 to vector<1x32xf32>
    %14 = arith.divf %12, %13 : vector<1x32xf32>
    %15 = vector.broadcast %14 : vector<1x32xf32> to vector<18x32xf32>
    %16 = arith.subf %10, %15 : vector<18x32xf32>
    %17 = arith.mulf %16, %16 : vector<18x32xf32>
    %cst_9 = arith.constant dense<0.000000e+00> : vector<32xf32>
    %18 = vector.multi_reduction <add>, %17, %cst_9 [0] : vector<18x32xf32> to vector<32xf32>
    %19 = vector.shape_cast %18 : vector<32xf32> to vector<1x32xf32>
    %cst_10 = arith.constant 1.800000e+01 : f32
    %20 = vector.broadcast %cst_10 : f32 to vector<1x32xf32>
    %21 = arith.divf %19, %20 : vector<1x32xf32>
    %cst_11 = arith.constant 9.99999974E-6 : f32
    %22 = vector.broadcast %cst_11 : f32 to vector<1x32xf32>
    %23 = arith.addf %21, %22 : vector<1x32xf32>
    %24 = math.rsqrt %23 : vector<1x32xf32>
    %25 = vector.broadcast %24 : vector<1x32xf32> to vector<18x32xf32>
    %26 = arith.mulf %16, %25 : vector<18x32xf32>
    %c0_12 = arith.constant 0 : index
    %c0_13 = arith.constant 0 : index
    %27 = vector.load %arg1[%c0_12, %c0_13] : memref<1x32xf32, #tpu.memory_space<vmem>>, vector<1x32xf32>
    %28 = vector.broadcast %27 : vector<1x32xf32> to vector<18x32xf32>
    %29 = arith.mulf %26, %28 : vector<18x32xf32>
    %c0_14 = arith.constant 0 : index
    %c0_15 = arith.constant 0 : index
    %30 = vector.load %arg2[%c0_14, %c0_15] : memref<1x32xf32, #tpu.memory_space<vmem>>, vector<1x32xf32>
    %31 = vector.broadcast %30 : vector<1x32xf32> to vector<18x32xf32>
    %32 = arith.addf %29, %31 : vector<18x32xf32>
    %cst_16 = arith.constant 0.000000e+00 : f32
    %33 = vector.broadcast %cst_16 : f32 to vector<18x32xf32>
    %34 = arith.maximumf %32, %33 : vector<18x32xf32>
    %c0_17 = arith.constant 0 : index
    %c0_18 = arith.constant 0 : index
    %35 = vector.load %arg3[%c0_17, %c0_18] : memref<32x16xf32, #tpu.memory_space<vmem>>, vector<32x16xf32>
    %cst_19 = arith.constant dense<0.000000e+00> : vector<18x16xf32>
    %36 = tpu.matmul %34, %35, %cst_19 {dimension_numbers = #tpu.dot_dimension_numbers<[1], [0], [0], [1], [0, 0, 1, 1], [], []>} : vector<18x32xf32>, vector<32x16xf32>, vector<18x16xf32> -> vector<18x16xf32>
    %c0_20 = arith.constant 0 : index
    %c0_21 = arith.constant 0 : index
    %37 = vector.load %arg4[%c0_20, %c0_21] : memref<1x16xf32, #tpu.memory_space<vmem>>, vector<1x16xf32>
    %38 = vector.broadcast %37 : vector<1x16xf32> to vector<18x16xf32>
    %39 = arith.addf %36, %38 : vector<18x16xf32>
    %cst_22 = arith.constant dense<0.000000e+00> : vector<16xf32>
    %40 = vector.multi_reduction <add>, %39, %cst_22 [0] : vector<18x16xf32> to vector<16xf32>
    %41 = vector.shape_cast %40 : vector<16xf32> to vector<1x16xf32>
    %cst_23 = arith.constant 1.800000e+01 : f32
    %42 = vector.broadcast %cst_23 : f32 to vector<1x16xf32>
    %43 = arith.divf %41, %42 : vector<1x16xf32>
    %44 = vector.broadcast %43 : vector<1x16xf32> to vector<18x16xf32>
    %45 = arith.subf %39, %44 : vector<18x16xf32>
    %46 = arith.mulf %45, %45 : vector<18x16xf32>
    %cst_24 = arith.constant dense<0.000000e+00> : vector<16xf32>
    %47 = vector.multi_reduction <add>, %46, %cst_24 [0] : vector<18x16xf32> to vector<16xf32>
    %48 = vector.shape_cast %47 : vector<16xf32> to vector<1x16xf32>
    %cst_25 = arith.constant 1.800000e+01 : f32
    %49 = vector.broadcast %cst_25 : f32 to vector<1x16xf32>
    %50 = arith.divf %48, %49 : vector<1x16xf32>
    %cst_26 = arith.constant 9.99999974E-6 : f32
    %51 = vector.broadcast %cst_26 : f32 to vector<1x16xf32>
    %52 = arith.addf %50, %51 : vector<1x16xf32>
    %53 = math.rsqrt %52 : vector<1x16xf32>
    %54 = vector.broadcast %53 : vector<1x16xf32> to vector<18x16xf32>
    %55 = arith.mulf %45, %54 : vector<18x16xf32>
    %c0_27 = arith.constant 0 : index
    %c0_28 = arith.constant 0 : index
    %56 = vector.load %arg5[%c0_27, %c0_28] : memref<1x16xf32, #tpu.memory_space<vmem>>, vector<1x16xf32>
    %57 = vector.broadcast %56 : vector<1x16xf32> to vector<18x16xf32>
    %58 = arith.mulf %55, %57 : vector<18x16xf32>
    %c0_29 = arith.constant 0 : index
    %c0_30 = arith.constant 0 : index
    %59 = vector.load %arg6[%c0_29, %c0_30] : memref<1x16xf32, #tpu.memory_space<vmem>>, vector<1x16xf32>
    %60 = vector.broadcast %59 : vector<1x16xf32> to vector<18x16xf32>
    %61 = arith.addf %58, %60 : vector<18x16xf32>
    %c0_31 = arith.constant 0 : index
    %c0_32 = arith.constant 0 : index
    %62 = vector.load %arg7[%c0_31, %c0_32] : memref<18x16xf32, #tpu.memory_space<vmem>>, vector<18x16xf32>
    tpu.vector_store %arg7[%c0_31, %c0_32], %61 {strides = array<i32>} : memref<18x16xf32, #tpu.memory_space<vmem>>, vector<18x16xf32>,
    %c0_33 = arith.constant 0 : index
    %c0_34 = arith.constant 0 : index
    %63 = vector.load %arg8[%c0_33, %c0_34] : memref<18x32xf32, #tpu.memory_space<vmem>>, vector<18x32xf32>
    tpu.vector_store %arg8[%c0_33, %c0_34], %10 {strides = array<i32>} : memref<18x32xf32, #tpu.memory_space<vmem>>, vector<18x32xf32>,
    return
  }
}

module attributes {stable_mosaic.version = 11 : i64} {
  func.func @_conv3x3_kernel(%arg0: i32, %arg1: memref<18x144xf32, #tpu.memory_space<vmem>>, %arg2: memref<144x32xf32, #tpu.memory_space<vmem>>, %arg3: memref<1x32xf32, #tpu.memory_space<vmem>>, %arg4: memref<18x32xf32, #tpu.memory_space<vmem>>, %arg5: memref<18x32xf32, #tpu.memory_space<vmem>>) attributes {dimension_semantics = [#tpu.dimension_semantics<parallel>], iteration_bounds = array<i64: 1>, scalar_prefetch = 0 : i64, scratch_operands = 0 : i64, tpu.core_type = #tpu.core_type<tc>, window_params = [{transform_indices = @transform_0, window_bounds = array<i64: 18, 144>}, {pipeline_mode = #tpu.pipeline_mode<synchronous>, transform_indices = @transform_1, window_bounds = array<i64: 144, 32>}, {pipeline_mode = #tpu.pipeline_mode<synchronous>, transform_indices = @transform_2, window_bounds = array<i64: 1, 32>}, {transform_indices = @transform_3, window_bounds = array<i64: 18, 32>}, {transform_indices = @transform_4, window_bounds = array<i64: 18, 32>}]} {
    %c0 = arith.constant 0 : index
    %c0_0 = arith.constant 0 : index
    %0 = vector.load %arg1[%c0, %c0_0] : memref<18x144xf32, #tpu.memory_space<vmem>>, vector<18x144xf32>
    %c0_1 = arith.constant 0 : index
    %c0_2 = arith.constant 0 : index
    %1 = vector.load %arg2[%c0_1, %c0_2] : memref<144x32xf32, #tpu.memory_space<vmem>>, vector<144x32xf32>
    %cst = arith.constant dense<0.000000e+00> : vector<18x32xf32>
    %2 = tpu.matmul %0, %1, %cst {dimension_numbers = #tpu.dot_dimension_numbers<[1], [0], [0], [1], [0, 0, 1, 1], [], []>} : vector<18x144xf32>, vector<144x32xf32>, vector<18x32xf32> -> vector<18x32xf32>
    %c0_3 = arith.constant 0 : index
    %c0_4 = arith.constant 0 : index
    %3 = vector.load %arg3[%c0_3, %c0_4] : memref<1x32xf32, #tpu.memory_space<vmem>>, vector<1x32xf32>
    %4 = vector.broadcast %3 : vector<1x32xf32> to vector<18x32xf32>
    %5 = arith.addf %2, %4 : vector<18x32xf32>
    %cst_5 = arith.constant 0.000000e+00 : f32
    %6 = vector.broadcast %cst_5 : f32 to vector<18x32xf32>
    %7 = arith.maximumf %5, %6 : vector<18x32xf32>
    %c0_6 = arith.constant 0 : index
    %c0_7 = arith.constant 0 : index
    %8 = vector.load %arg4[%c0_6, %c0_7] : memref<18x32xf32, #tpu.memory_space<vmem>>, vector<18x32xf32>
    %9 = arith.addf %7, %8 : vector<18x32xf32>
    %c0_8 = arith.constant 0 : index
    %c0_9 = arith.constant 0 : index
    %10 = vector.load %arg5[%c0_8, %c0_9] : memref<18x32xf32, #tpu.memory_space<vmem>>, vector<18x32xf32>
    tpu.vector_store %arg5[%c0_8, %c0_9], %9 {strides = array<i32>} : memref<18x32xf32, #tpu.memory_space<vmem>>, vector<18x32xf32>,
    return
  }
  func.func @transform_0(%arg0: i32) -> (i32, i32) {
    %c0_i32 = arith.constant 0 : i32
    %c0_i32_0 = arith.constant 0 : i32
    return %arg0, %c0_i32 : i32, i32
  }
  func.func @transform_1(%arg0: i32) -> (i32, i32) {
    %c0_i32 = arith.constant 0 : i32
    %c0_i32_0 = arith.constant 0 : i32
    %c0_i32_1 = arith.constant 0 : i32
    return %c0_i32, %c0_i32_0 : i32, i32
  }
  func.func @transform_2(%arg0: i32) -> (i32, i32) {
    %c0_i32 = arith.constant 0 : i32
    %c0_i32_0 = arith.constant 0 : i32
    %c0_i32_1 = arith.constant 0 : i32
    return %c0_i32, %c0_i32_0 : i32, i32
  }
  func.func @transform_3(%arg0: i32) -> (i32, i32) {
    %c0_i32 = arith.constant 0 : i32
    %c0_i32_0 = arith.constant 0 : i32
    return %arg0, %c0_i32 : i32, i32
  }
  func.func @transform_4(%arg0: i32) -> (i32, i32) {
    %c0_i32 = arith.constant 0 : i32
    %c0_i32_0 = arith.constant 0 : i32
    return %arg0, %c0_i32 : i32, i32
  }
}

module attributes {stable_mosaic.version = 11 : i64} {
  func.func @_head_kernel(%arg0: memref<18x32xf32, #tpu.memory_space<vmem>>, %arg1: memref<32x10xf32, #tpu.memory_space<vmem>>, %arg2: memref<1x10xf32, #tpu.memory_space<vmem>>, %arg3: memref<2x18xf32, #tpu.memory_space<vmem>>, %arg4: memref<2x10xf32, #tpu.memory_space<vmem>>) attributes {dimension_semantics = [], scalar_prefetch = 0 : i64, scratch_operands = 0 : i64, tpu.core_type = #tpu.core_type<tc>} {
    %c0 = arith.constant 0 : index
    %c0_0 = arith.constant 0 : index
    %0 = vector.load %arg0[%c0, %c0_0] : memref<18x32xf32, #tpu.memory_space<vmem>>, vector<18x32xf32>
    %c0_1 = arith.constant 0 : index
    %c0_2 = arith.constant 0 : index
    %1 = vector.load %arg1[%c0_1, %c0_2] : memref<32x10xf32, #tpu.memory_space<vmem>>, vector<32x10xf32>
    %cst = arith.constant dense<0.000000e+00> : vector<18x10xf32>
    %2 = tpu.matmul %0, %1, %cst {dimension_numbers = #tpu.dot_dimension_numbers<[1], [0], [0], [1], [0, 0, 1, 1], [], []>} : vector<18x32xf32>, vector<32x10xf32>, vector<18x10xf32> -> vector<18x10xf32>
    %c0_3 = arith.constant 0 : index
    %c0_4 = arith.constant 0 : index
    %3 = vector.load %arg2[%c0_3, %c0_4] : memref<1x10xf32, #tpu.memory_space<vmem>>, vector<1x10xf32>
    %4 = vector.broadcast %3 : vector<1x10xf32> to vector<18x10xf32>
    %5 = arith.addf %2, %4 : vector<18x10xf32>
    %cst_5 = arith.constant 0.000000e+00 : f32
    %6 = vector.broadcast %cst_5 : f32 to vector<18x10xf32>
    %7 = arith.maximumf %5, %6 : vector<18x10xf32>
    %c0_6 = arith.constant 0 : index
    %c0_7 = arith.constant 0 : index
    %8 = vector.load %arg3[%c0_6, %c0_7] : memref<2x18xf32, #tpu.memory_space<vmem>>, vector<2x18xf32>
    %cst_8 = arith.constant dense<0.000000e+00> : vector<2x10xf32>
    %9 = tpu.matmul %8, %7, %cst_8 {dimension_numbers = #tpu.dot_dimension_numbers<[1], [0], [0], [1], [0, 0, 1, 1], [], []>} : vector<2x18xf32>, vector<18x10xf32>, vector<2x10xf32> -> vector<2x10xf32>
    %cst_9 = arith.constant dense<0xFF800000> : vector<2xf32>
    %10 = vector.multi_reduction <maximumf>, %9, %cst_9 [1] : vector<2x10xf32> to vector<2xf32>
    %11 = vector.shape_cast %10 : vector<2xf32> to vector<2x1xf32>
    %12 = vector.broadcast %11 : vector<2x1xf32> to vector<2x10xf32>
    %13 = arith.subf %9, %12 : vector<2x10xf32>
    %14 = math.exp %13 : vector<2x10xf32>
    %cst_10 = arith.constant dense<0.000000e+00> : vector<2xf32>
    %15 = vector.multi_reduction <add>, %14, %cst_10 [1] : vector<2x10xf32> to vector<2xf32>
    %16 = vector.shape_cast %15 : vector<2xf32> to vector<2x1xf32>
    %17 = math.log %16 : vector<2x1xf32>
    %18 = vector.broadcast %17 : vector<2x1xf32> to vector<2x10xf32>
    %19 = arith.subf %13, %18 : vector<2x10xf32>
    %c0_11 = arith.constant 0 : index
    %c0_12 = arith.constant 0 : index
    %20 = vector.load %arg4[%c0_11, %c0_12] : memref<2x10xf32, #tpu.memory_space<vmem>>, vector<2x10xf32>
    tpu.vector_store %arg4[%c0_11, %c0_12], %19 {strides = array<i32>} : memref<2x10xf32, #tpu.memory_space<vmem>>, vector<2x10xf32>,
    return
  }
}

</mosaic_0001>

<llo_original>
// kernel: resnet_like_net.12
$region0: #{resnet_like_net.12}
  #allocation0 [shape = 'u32[]', space=smem, size = 0x4, offset = 0x4, fixed_abs, tag = 'smem constant byte address 0x4 - core index']
  #allocation1 [shape = 'u32[144,128]{1,0:T(1,128)}', space=vmem, size = 0x12000, scoped, tag = 'internal scratch']
  %s0 = inlined_call_operand.vmem [shape: f32[392,36], index: 0, kind: input, shape index: {}]
  %s1 = inlined_call_operand.vmem [shape: f32[36,32], index: 1, kind: input, shape index: {}]
  %s2 = inlined_call_operand.vmem [shape: f32[1,32], index: 2, kind: input, shape index: {}]
  %s3 = inlined_call_operand.vmem [shape: f32[392,32], index: 3, kind: output, shape index: {}]
  %s4 = sld [smem:[#allocation0]]
  $region22: #{resnet_like_net.12} parent=0
    _
  %s6 = ssub.s32 1, %s4
  %s7 = scalar_select 0, %s6, %s4
  // Predicated region
  $region2: #{resnet_like_net.12} parent=0 // pred_check
    _
  $region3: #{resnet_like_net.12} parent=0 // pred_check_branch
    %9 = sbr.rel (0) target = $region5
  $region4: #{resnet_like_net.12} parent=0 // pred_region
    _
  $region5: #{resnet_like_net.12} parent=0 // pred_fallthru
    _
  // Predicated region
  $region6: #{resnet_like_net.12} parent=0 // pred_check
    _
  $region7: #{resnet_like_net.12} parent=0 // pred_check_branch
    %11 = sbr.rel (0) target = $region9
  $region8: #{resnet_like_net.12} parent=0 // pred_region
    _
  $region9: #{resnet_like_net.12} parent=0 // pred_fallthru
    _
  // Predicated region
  $region10: #{resnet_like_net.12} parent=0 // pred_check
    _
  $region11: #{resnet_like_net.12} parent=0 // pred_check_branch
    %13 = sbr.rel (0) target = $region13
  $region12: #{resnet_like_net.12} parent=0 // pred_region
    _
  $region13: #{resnet_like_net.12} parent=0 // pred_fallthru
    _
  %v14 = vld [vmem:[%s0] sm:$0xff]
  %v15 = vld [vmem:[%s0 + $0x8] sm:$0xff]
  %v16 = vld [vmem:[%s0 + $0x10] sm:$0xff]
  %v17 = vld [vmem:[%s0 + $0x18] sm:$0xff]
  %v18 = vld [vmem:[%s0 + $0x20] sm:$0xff]
  %v19 = vld [vmem:[%s0 + $0x28] sm:$0xff]
  %v20 = vld [vmem:[%s0 + $0x30] sm:$0xff]
  %v21 = vld [vmem:[%s0 + $0x38] sm:$0xff]
  %v22 = vld [vmem:[%s0 + $0x40] sm:$0xff]
  %v23 = vld [vmem:[%s0 + $0x48] sm:$0xff]
  %v24 = vld [vmem:[%s0 + $0x50] sm:$0xff]
  %v25 = vld [vmem:[%s0 + $0x58] sm:$0xff]
  %v26 = vld [vmem:[%s0 + $0x60] sm:$0xff]
  %v27 = vld [vmem:[%s0 + $0x68] sm:$0xff]
  %v28 = vld [vmem:[%s0 + $0x70] sm:$0xff]
  %v29 = vld [vmem:[%s0 + $0x78] sm:$0xff]
  %v30 = vld [vmem:[%s0 + $0x80] sm:$0xff]
  %v31 = vld [vmem:[%s0 + $0x88] sm:$0xff]
  %v32 = vld [vmem:[%s0 + $0x90] sm:$0xff]
  %v33 = vld [vmem:[%s0 + $0x98] sm:$0xff]
  %v34 = vld [vmem:[%s0 + $0xa0] sm:$0xff]
  %v35 = vld [vmem:[%s0 + $0xa8] sm:$0xff]
  %v36 = vld [vmem:[%s0 + $0xb0] sm:$0xff]
  %v37 = vld [vmem:[%s0 + $0xb8] sm:$0xff]
  %v38 = vld [vmem:[%s0 + $0xc0] sm:$0xff]
  %v39 = vld [vmem:[%s0 + $0xc8] sm:$0xff]
  %v40 = vld [vmem:[%s0 + $0xd0] sm:$0xff]
  %v41 = vld [vmem:[%s0 + $0xd8] sm:$0xff]
  %v42 = vld [vmem:[%s0 + $0xe0] sm:$0xff]
  %v43 = vld [vmem:[%s0 + $0xe8] sm:$0xff]
  %v44 = vld [vmem:[%s0 + $0xf0] sm:$0xff]
  %v45 = vld [vmem:[%s0 + $0xf8] sm:$0xff]
  %v46 = vld [vmem:[%s0 + $0x100] sm:$0xff]
  %v47 = vld [vmem:[%s0 + $0x108] sm:$0xff]
  %v48 = vld [vmem:[%s0 + $0x110] sm:$0xff]
  %v49 = vld [vmem:[%s0 + $0x118] sm:$0xff]
  %v50 = vld [vmem:[%s0 + $0x120] sm:$0xff]
  %v51 = vld [vmem:[%s0 + $0x128] sm:$0xff]
  %v52 = vld [vmem:[%s0 + $0x130] sm:$0xff]
  %v53 = vld [vmem:[%s0 + $0x138] sm:$0xff]
  %v54 = vld [vmem:[%s0 + $0x140] sm:$0xff]
  %v55 = vld [vmem:[%s0 + $0x148] sm:$0xff]
  %v56 = vld [vmem:[%s0 + $0x150] sm:$0xff]
  %v57 = vld [vmem:[%s0 + $0x158] sm:$0xff]
  %v58 = vld [vmem:[%s0 + $0x160] sm:$0xff]
  %v59 = vld [vmem:[%s0 + $0x168] sm:$0xff]
  %v60 = vld [vmem:[%s0 + $0x170] sm:$0xff]
  %v61 = vld [vmem:[%s0 + $0x178] sm:$0xff]
  %v62 = vld [vmem:[%s0 + $0x180] sm:$0xff]
  %v63 = vld [vmem:[%s1] sm:$0xff]
  %v64 = vld [vmem:[%s1 + $0x8] sm:$0xff]
  %v65 = vld [vmem:[%s1 + $0x10] sm:$0xff]
  %v66 = vld [vmem:[%s1 + $0x18] sm:$0xff]
  %v67 = vld [vmem:[%s1 + $0x20] sm:$0xf]
  %v68 = vld [vmem:[%s2] sm:$0x1]
  %v70 = vlaneseq
  %v71 = vshrl.u32 %v70, 7
  %v72 = vsub.s32 0, %v71
  %v73 = vrot.slane %v68, %v72
  %vm75 = vcmask 293888
  %v77 = vsel %vm75, %v14, 0
  %v80 = vsel %vm75, %v15, 0
  %v83 = vsel %vm75, %v16, 0
  %v86 = vsel %vm75, %v17, 0
  %v89 = vsel %vm75, %v18, 0
  %v92 = vsel %vm75, %v19, 0
  %v95 = vsel %vm75, %v20, 0
  %v98 = vsel %vm75, %v21, 0
  %v101 = vsel %vm75, %v22, 0
  %v104 = vsel %vm75, %v23, 0
  %v107 = vsel %vm75, %v24, 0
  %v110 = vsel %vm75, %v25, 0
  %v113 = vsel %vm75, %v26, 0
  %v116 = vsel %vm75, %v27, 0
  %v119 = vsel %vm75, %v28, 0
  %v122 = vsel %vm75, %v29, 0
  %v125 = vsel %vm75, %v30, 0
  %v128 = vsel %vm75, %v31, 0
  %v131 = vsel %vm75, %v32, 0
  %v134 = vsel %vm75, %v33, 0
  %v137 = vsel %vm75, %v34, 0
  %v140 = vsel %vm75, %v35, 0
  %v143 = vsel %vm75, %v36, 0
  %v146 = vsel %vm75, %v37, 0
  %v149 = vsel %vm75, %v38, 0
  %v152 = vsel %vm75, %v39, 0
  %v155 = vsel %vm75, %v40, 0
  %v158 = vsel %vm75, %v41, 0
  %v161 = vsel %vm75, %v42, 0
  %v164 = vsel %vm75, %v43, 0
  %v167 = vsel %vm75, %v44, 0
  %v170 = vsel %vm75, %v45, 0
  %v173 = vsel %vm75, %v46, 0
  %v176 = vsel %vm75, %v47, 0
  %v179 = vsel %vm75, %v48, 0
  %v182 = vsel %vm75, %v49, 0
  %v185 = vsel %vm75, %v50, 0
  %v188 = vsel %vm75, %v51, 0
  %v191 = vsel %vm75, %v52, 0
  %v194 = vsel %vm75, %v53, 0
  %v197 = vsel %vm75, %v54, 0
  %v200 = vsel %vm75, %v55, 0
  %v203 = vsel %vm75, %v56, 0
  %v206 = vsel %vm75, %v57, 0
  %v209 = vsel %vm75, %v58, 0
  %v212 = vsel %vm75, %v59, 0
  %v215 = vsel %vm75, %v60, 0
  %v218 = vsel %vm75, %v61, 0
  %v221 = vsel %vm75, %v62, 0
  %vm223 = vcmask 1043456
  %v225 = vsel %vm223, %v67, 0
  %227 = vmatprep.subr.mxu0 0.0
  %228 = vmatpush1.msra.mxu0 %v63
  %229 = vmatprep.subr.mxu0 0.0
  %230 = vmatpush1.msra.mxu0 %v64
  %231 = vmatprep.subr.mxu0 0.0
  %232 = vmatpush1.msra.mxu0 %v65
  %233 = vmatprep.subr.mxu0 0.0
  %234 = vmatpush1.msra.mxu0 %v66
  %235 = vmatprep.subr.mxu0 0.0
  %236 = vmatpush1.msra.mxu0 %v225
  %237 = vmatprep.subr.mxu0 0.0
  %238 = vmatpush1.msra.mxu0 0.0
  %239 = vmatprep.subr.mxu0 0.0
  %240 = vmatpush1.msra.mxu0 0.0
  %241 = vmatprep.subr.mxu0 0.0
  %242 = vmatpush1.msra.mxu0 0.0
  %243 = vmatprep.subr.mxu0 0.0
  %244 = vmatpush1.msra.mxu0 0.0
  %245 = vmatprep.subr.mxu0 0.0
  %246 = vmatpush1.msra.mxu0 0.0
  %247 = vmatprep.subr.mxu0 0.0
  %248 = vmatpush1.msra.mxu0 0.0
  %249 = vmatprep.subr.mxu0 0.0
  %250 = vmatpush1.msra.mxu0 0.0
  %251 = vmatprep.subr.mxu0 0.0
  %252 = vmatpush1.msra.mxu0 0.0
  %253 = vmatprep.subr.mxu0 0.0
  %254 = vmatpush1.msra.mxu0 0.0
  %255 = vmatprep.subr.mxu0 0.0
  %256 = vmatpush1.msra.mxu0 0.0
  %257 = vmatprep.subr.mxu0 0.0
  %258 = vmatpush1.msra.mxu0 0.0
  %259 = vmatprep.subr.mxu0 0.0
  %260 = vmatpush1.msra.mxu0 0.0
  %261 = vmatprep.subr.mxu0 0.0
  %262 = vmatpush1.msra.mxu0 0.0
  %263 = vmatprep.subr.mxu0 0.0
  %264 = vmatpush1.msra.mxu0 0.0
  %265 = vmatprep.subr.mxu0 0.0
  %266 = vmatpush1.msra.mxu0 0.0
  %267 = vmatprep.subr.mxu0 0.0
  %268 = vmatpush1.msra.mxu0 0.0
  %269 = vmatprep.subr.mxu0 0.0
  %270 = vmatpush1.msra.mxu0 0.0
  %271 = vmatprep.subr.mxu0 0.0
  %272 = vmatpush1.msra.mxu0 0.0
  %273 = vmatprep.subr.mxu0 0.0
  %274 = vmatpush1.msra.mxu0 0.0
  %275 = vmatprep.subr.mxu0 0.0
  %276 = vmatpush1.msra.mxu0 0.0
  %277 = vmatprep.subr.mxu0 0.0
  %278 = vmatpush1.msra.mxu0 0.0
  %279 = vmatprep.subr.mxu0 0.0
  %280 = vmatpush1.msra.mxu0 0.0
  %281 = vmatprep.subr.mxu0 0.0
  %282 = vmatpush1.msra.mxu0 0.0
  %283 = vmatprep.subr.mxu0 0.0
  %284 = vmatpush1.msra.mxu0 0.0
  %285 = vmatprep.subr.mxu0 0.0
  %286 = vmatpush1.msra.mxu0 0.0
  %287 = vmatprep.subr.mxu0 0.0
  %288 = vmatpush1.msra.mxu0 0.0
  %289 = vmatprep.subr.mxu0 0.0
  %290 = vmatpush1.msra.mxu0 0.0
  %291 = vmatprep.mubr.f32.mxu0 0.0
  %292 = vmatmul.mubr.f32.gmra.mrb[0].mxu0 %v77
  %v293 = vpop.f32.mrb[0].mxu0
  %v294 = vadd.f32 %v73, %v293
  %v295 = vpop.f32.mrb[0].mxu0
  %296 = vmatprep.mubr.f32.mxu0 0.0
  %297 = vmatmul.mubr.f32.gmra.mrb[0].mxu0 %v80
  %v298 = vpop.f32.mrb[0].mxu0
  %v299 = vadd.f32 %v73, %v298
  %v300 = vpop.f32.mrb[0].mxu0
  %301 = vmatprep.mubr.f32.mxu0 0.0
  %302 = vmatmul.mubr.f32.gmra.mrb[0].mxu0 %v83
  %v303 = vpop.f32.mrb[0].mxu0
  %v304 = vadd.f32 %v73, %v303
  %v305 = vpop.f32.mrb[0].mxu0
  %306 = vmatprep.mubr.f32.mxu0 0.0
  %307 = vmatmul.mubr.f32.gmra.mrb[0].mxu0 %v86
  %v308 = vpop.f32.mrb[0].mxu0
  %v309 = vadd.f32 %v73, %v308
  %v310 = vpop.f32.mrb[0].mxu0
  %311 = vmatprep.mubr.f32.mxu0 0.0
  %312 = vmatmul.mubr.f32.gmra.mrb[0].mxu0 %v89
  %v313 = vpop.f32.mrb[0].mxu0
  %v314 = vadd.f32 %v73, %v313
  %v315 = vpop.f32.mrb[0].mxu0
  %316 = vmatprep.mubr.f32.mxu0 0.0
  %317 = vmatmul.mubr.f32.gmra.mrb[0].mxu0 %v92
  %v318 = vpop.f32.mrb[0].mxu0
  %v319 = vadd.f32 %v73, %v318
  %v320 = vpop.f32.mrb[0].mxu0
  %321 = vmatprep.mubr.f32.mxu0 0.0
  %322 = vmatmul.mubr.f32.gmra.mrb[0].mxu0 %v95
  %v323 = vpop.f32.mrb[0].mxu0
  %v324 = vadd.f32 %v73, %v323
  %v325 = vpop.f32.mrb[0].mxu0
  %326 = vmatprep.mubr.f32.mxu0 0.0
  %327 = vmatmul.mubr.f32.gmra.mrb[0].mxu0 %v98
  %v328 = vpop.f32.mrb[0].mxu0
  %v329 = vadd.f32 %v73, %v328
  %v330 = vpop.f32.mrb[0].mxu0
  %331 = vmatprep.mubr.f32.mxu0 0.0
  %332 = vmatmul.mubr.f32.gmra.mrb[0].mxu0 %v101
  %v333 = vpop.f32.mrb[0].mxu0
  %v334 = vadd.f32 %v73, %v333
  %v335 = vpop.f32.mrb[0].mxu0
  %336 = vmatprep.mubr.f32.mxu0 0.0
  %337 = vmatmul.mubr.f32.gmra.mrb[0].mxu0 %v104
  %v338 = vpop.f32.mrb[0].mxu0
  %v339 = vadd.f32 %v73, %v338
  %v340 = vpop.f32.mrb[0].mxu0
  %341 = vmatprep.mubr.f32.mxu0 0.0
  %342 = vmatmul.mubr.f32.gmra.mrb[0].mxu0 %v107
  %v343 = vpop.f32.mrb[0].mxu0
  %v344 = vadd.f32 %v73, %v343
  %v345 = vpop.f32.mrb[0].mxu0
  %346 = vmatprep.mubr.f32.mxu0 0.0
  %347 = vmatmul.mubr.f32.gmra.mrb[0].mxu0 %v110
  %v348 = vpop.f32.mrb[0].mxu0
  %v349 = vadd.f32 %v73, %v348
  %v350 = vpop.f32.mrb[0].mxu0
  %351 = vmatprep.mubr.f32.mxu0 0.0
  %352 = vmatmul.mubr.f32.gmra.mrb[0].mxu0 %v113
  %v353 = vpop.f32.mrb[0].mxu0
  %v354 = vadd.f32 %v73, %v353
  %v355 = vpop.f32.mrb[0].mxu0
  %356 = vmatprep.mubr.f32.mxu0 0.0
  %357 = vmatmul.mubr.f32.gmra.mrb[0].mxu0 %v116
  %v358 = vpop.f32.mrb[0].mxu0
  %v359 = vadd.f32 %v73, %v358
  %v360 = vpop.f32.mrb[0].mxu0
  %361 = vmatprep.mubr.f32.mxu0 0.0
  %362 = vmatmul.mubr.f32.gmra.mrb[0].mxu0 %v119
  %v363 = vpop.f32.mrb[0].mxu0
  %v364 = vadd.f32 %v73, %v363
  %v365 = vpop.f32.mrb[0].mxu0
  %366 = vmatprep.mubr.f32.mxu0 0.0
  %367 = vmatmul.mubr.f32.gmra.mrb[0].mxu0 %v122
  %v368 = vpop.f32.mrb[0].mxu0
  %v369 = vadd.f32 %v73, %v368
  %v370 = vpop.f32.mrb[0].mxu0
  %371 = vmatprep.mubr.f32.mxu0 0.0
  %372 = vmatmul.mubr.f32.gmra.mrb[0].mxu0 %v125
  %v373 = vpop.f32.mrb[0].mxu0
  %v374 = vadd.f32 %v73, %v373
  %v375 = vpop.f32.mrb[0].mxu0
  %376 = vmatprep.mubr.f32.mxu0 0.0
  %377 = vmatmul.mubr.f32.gmra.mrb[0].mxu0 %v128
  %v378 = vpop.f32.mrb[0].mxu0
  %v379 = vadd.f32 %v73, %v378
  %v380 = vpop.f32.mrb[0].mxu0
  %381 = vmatprep.mubr.f32.mxu0 0.0
  %382 = vmatmul.mubr.f32.gmra.mrb[0].mxu0 %v131
  %v383 = vpop.f32.mrb[0].mxu0
  %v384 = vadd.f32 %v73, %v383
  %v385 = vpop.f32.mrb[0].mxu0
  %386 = vmatprep.mubr.f32.mxu0 0.0
  %387 = vmatmul.mubr.f32.gmra.mrb[0].mxu0 %v134
  %v388 = vpop.f32.mrb[0].mxu0
  %v389 = vadd.f32 %v73, %v388
  %v390 = vpop.f32.mrb[0].mxu0
  %391 = vmatprep.mubr.f32.mxu0 0.0
  %392 = vmatmul.mubr.f32.gmra.mrb[0].mxu0 %v137
  %v393 = vpop.f32.mrb[0].mxu0
  %v394 = vadd.f32 %v73, %v393
  %v395 = vpop.f32.mrb[0].mxu0
  %396 = vmatprep.mubr.f32.mxu0 0.0
  %397 = vmatmul.mubr.f32.gmra.mrb[0].mxu0 %v140
  %v398 = vpop.f32.mrb[0].mxu0
  %v399 = vadd.f32 %v73, %v398
  %v400 = vpop.f32.mrb[0].mxu0
  %401 = vmatprep.mubr.f32.mxu0 0.0
  %402 = vmatmul.mubr.f32.gmra.mrb[0].mxu0 %v143
  %v403 = vpop.f32.mrb[0].mxu0
  %v404 = vadd.f32 %v73, %v403
  %v405 = vpop.f32.mrb[0].mxu0
  %406 = vmatprep.mubr.f32.mxu0 0.0
  %407 = vmatmul.mubr.f32.gmra.mrb[0].mxu0 %v146
  %v408 = vpop.f32.mrb[0].mxu0
  %v409 = vadd.f32 %v73, %v408
  %v410 = vpop.f32.mrb[0].mxu0
  %411 = vmatprep.mubr.f32.mxu0 0.0
  %412 = vmatmul.mubr.f32.gmra.mrb[0].mxu0 %v149
  %v413 = vpop.f32.mrb[0].mxu0
  %v414 = vadd.f32 %v73, %v413
  %v415 = vpop.f32.mrb[0].mxu0
  %416 = vmatprep.mubr.f32.mxu0 0.0
  %417 = vmatmul.mubr.f32.gmra.mrb[0].mxu0 %v152
  %v418 = vpop.f32.mrb[0].mxu0
  %v419 = vadd.f32 %v73, %v418
  %v420 = vpop.f32.mrb[0].mxu0
  %421 = vmatprep.mubr.f32.mxu0 0.0
  %422 = vmatmul.mubr.f32.gmra.mrb[0].mxu0 %v155
  %v423 = vpop.f32.mrb[0].mxu0
  %v424 = vadd.f32 %v73, %v423
  %v425 = vpop.f32.mrb[0].mxu0
  %426 = vmatprep.mubr.f32.mxu0 0.0
  %427 = vmatmul.mubr.f32.gmra.mrb[0].mxu0 %v158
  %v428 = vpop.f32.mrb[0].mxu0
  %v429 = vadd.f32 %v73, %v428
  %v430 = vpop.f32.mrb[0].mxu0
  %431 = vmatprep.mubr.f32.mxu0 0.0
  %432 = vmatmul.mubr.f32.gmra.mrb[0].mxu0 %v161
  %v433 = vpop.f32.mrb[0].mxu0
  %v434 = vadd.f32 %v73, %v433
  %v435 = vpop.f32.mrb[0].mxu0
  %436 = vmatprep.mubr.f32.mxu0 0.0
  %437 = vmatmul.mubr.f32.gmra.mrb[0].mxu0 %v164
  %v438 = vpop.f32.mrb[0].mxu0
  %v439 = vadd.f32 %v73, %v438
  %v440 = vpop.f32.mrb[0].mxu0
  %441 = vmatprep.mubr.f32.mxu0 0.0
  %442 = vmatmul.mubr.f32.gmra.mrb[0].mxu0 %v167
  %v443 = vpop.f32.mrb[0].mxu0
  %v444 = vadd.f32 %v73, %v443
  %v445 = vpop.f32.mrb[0].mxu0
  %446 = vmatprep.mubr.f32.mxu0 0.0
  %447 = vmatmul.mubr.f32.gmra.mrb[0].mxu0 %v170
  %v448 = vpop.f32.mrb[0].mxu0
  %v449 = vadd.f32 %v73, %v448
  %v450 = vpop.f32.mrb[0].mxu0
  %451 = vmatprep.mubr.f32.mxu0 0.0
  %452 = vmatmul.mubr.f32.gmra.mrb[0].mxu0 %v173
  %v453 = vpop.f32.mrb[0].mxu0
  %v454 = vadd.f32 %v73, %v453
  %v455 = vpop.f32.mrb[0].mxu0
  %456 = vmatprep.mubr.f32.mxu0 0.0
  %457 = vmatmul.mubr.f32.gmra.mrb[0].mxu0 %v176
  %v458 = vpop.f32.mrb[0].mxu0
  %v459 = vadd.f32 %v73, %v458
  %v460 = vpop.f32.mrb[0].mxu0
  %461 = vmatprep.mubr.f32.mxu0 0.0
  %462 = vmatmul.mubr.f32.gmra.mrb[0].mxu0 %v179
  %v463 = vpop.f32.mrb[0].mxu0
  %v464 = vadd.f32 %v73, %v463
  %v465 = vpop.f32.mrb[0].mxu0
  %466 = vmatprep.mubr.f32.mxu0 0.0
  %467 = vmatmul.mubr.f32.gmra.mrb[0].mxu0 %v182
  %v468 = vpop.f32.mrb[0].mxu0
  %v469 = vadd.f32 %v73, %v468
  %v470 = vpop.f32.mrb[0].mxu0
  %471 = vmatprep.mubr.f32.mxu0 0.0
  %472 = vmatmul.mubr.f32.gmra.mrb[0].mxu0 %v185
  %v473 = vpop.f32.mrb[0].mxu0
  %v474 = vadd.f32 %v73, %v473
  %v475 = vpop.f32.mrb[0].mxu0
  %476 = vmatprep.mubr.f32.mxu0 0.0
  %477 = vmatmul.mubr.f32.gmra.mrb[0].mxu0 %v188
  %v478 = vpop.f32.mrb[0].mxu0
  %v479 = vadd.f32 %v73, %v478
  %v480 = vpop.f32.mrb[0].mxu0
  %481 = vmatprep.mubr.f32.mxu0 0.0
  %482 = vmatmul.mubr.f32.gmra.mrb[0].mxu0 %v191
  %v483 = vpop.f32.mrb[0].mxu0
  %v484 = vadd.f32 %v73, %v483
  %v485 = vpop.f32.mrb[0].mxu0
  %486 = vmatprep.mubr.f32.mxu0 0.0
  %487 = vmatmul.mubr.f32.gmra.mrb[0].mxu0 %v194
  %v488 = vpop.f32.mrb[0].mxu0
  %v489 = vadd.f32 %v73, %v488
  %v490 = vpop.f32.mrb[0].mxu0
  %491 = vmatprep.mubr.f32.mxu0 0.0
  %492 = vmatmul.mubr.f32.gmra.mrb[0].mxu0 %v197
  %v493 = vpop.f32.mrb[0].mxu0
  %v494 = vadd.f32 %v73, %v493
  %v495 = vpop.f32.mrb[0].mxu0
  %496 = vmatprep.mubr.f32.mxu0 0.0
  %497 = vmatmul.mubr.f32.gmra.mrb[0].mxu0 %v200
  %v498 = vpop.f32.mrb[0].mxu0
  %v499 = vadd.f32 %v73, %v498
  %v500 = vpop.f32.mrb[0].mxu0
  %501 = vmatprep.mubr.f32.mxu0 0.0
  %502 = vmatmul.mubr.f32.gmra.mrb[0].mxu0 %v203
  %v503 = vpop.f32.mrb[0].mxu0
  %v504 = vadd.f32 %v73, %v503
  %v505 = vpop.f32.mrb[0].mxu0
  %506 = vmatprep.mubr.f32.mxu0 0.0
  %507 = vmatmul.mubr.f32.gmra.mrb[0].mxu0 %v206
  %v508 = vpop.f32.mrb[0].mxu0
  %v509 = vadd.f32 %v73, %v508
  %v510 = vpop.f32.mrb[0].mxu0
  %511 = vmatprep.mubr.f32.mxu0 0.0
  %512 = vmatmul.mubr.f32.gmra.mrb[0].mxu0 %v209
  %v513 = vpop.f32.mrb[0].mxu0
  %v514 = vadd.f32 %v73, %v513
  %v515 = vpop.f32.mrb[0].mxu0
  %516 = vmatprep.mubr.f32.mxu0 0.0
  %517 = vmatmul.mubr.f32.gmra.mrb[0].mxu0 %v212
  %v518 = vpop.f32.mrb[0].mxu0
  %v519 = vadd.f32 %v73, %v518
  %v520 = vpop.f32.mrb[0].mxu0
  %521 = vmatprep.mubr.f32.mxu0 0.0
  %522 = vmatmul.mubr.f32.gmra.mrb[0].mxu0 %v215
  %v523 = vpop.f32.mrb[0].mxu0
  %v524 = vadd.f32 %v73, %v523
  %v525 = vpop.f32.mrb[0].mxu0
  %526 = vmatprep.mubr.f32.mxu0 0.0
  %527 = vmatmul.mubr.f32.gmra.mrb[0].mxu0 %v218
  %v528 = vpop.f32.mrb[0].mxu0
  %v529 = vadd.f32 %v73, %v528
  %v530 = vpop.f32.mrb[0].mxu0
  %531 = vmatprep.mubr.f32.mxu0 0.0
  %532 = vmatmul.mubr.f32.gmra.mrb[0].mxu0 %v221
  %v533 = vpop.f32.mrb[0].mxu0
  %v534 = vadd.f32 %v73, %v533
  %v535 = vpop.f32.mrb[0].mxu0
  %536 = vdwg.mxu0
  %v537 = vmax.f32 %v294, 0.0
  %v538 = vmax.f32 %v299, 0.0
  %v539 = vmax.f32 %v304, 0.0
  %v540 = vmax.f32 %v309, 0.0
  %v541 = vmax.f32 %v314, 0.0
  %v542 = vmax.f32 %v319, 0.0
  %v543 = vmax.f32 %v324, 0.0
  %v544 = vmax.f32 %v329, 0.0
  %v545 = vmax.f32 %v334, 0.0
  %v546 = vmax.f32 %v339, 0.0
  %v547 = vmax.f32 %v344, 0.0
  %v548 = vmax.f32 %v349, 0.0
  %v549 = vmax.f32 %v354, 0.0
  %v550 = vmax.f32 %v359, 0.0
  %v551 = vmax.f32 %v364, 0.0
  %v552 = vmax.f32 %v369, 0.0
  %v553 = vmax.f32 %v374, 0.0
  %v554 = vmax.f32 %v379, 0.0
  %v555 = vmax.f32 %v384, 0.0
  %v556 = vmax.f32 %v389, 0.0
  %v557 = vmax.f32 %v394, 0.0
  %v558 = vmax.f32 %v399, 0.0
  %v559 = vmax.f32 %v404, 0.0
  %v560 = vmax.f32 %v409, 0.0
  %v561 = vmax.f32 %v414, 0.0
  %v562 = vmax.f32 %v419, 0.0
  %v563 = vmax.f32 %v424, 0.0
  %v564 = vmax.f32 %v429, 0.0
  %v565 = vmax.f32 %v434, 0.0
  %v566 = vmax.f32 %v439, 0.0
  %v567 = vmax.f32 %v444, 0.0
  %v568 = vmax.f32 %v449, 0.0
  %v569 = vmax.f32 %v454, 0.0
  %v570 = vmax.f32 %v459, 0.0
  %v571 = vmax.f32 %v464, 0.0
  %v572 = vmax.f32 %v469, 0.0
  %v573 = vmax.f32 %v474, 0.0
  %v574 = vmax.f32 %v479, 0.0
  %v575 = vmax.f32 %v484, 0.0
  %v576 = vmax.f32 %v489, 0.0
  %v577 = vmax.f32 %v494, 0.0
  %v578 = vmax.f32 %v499, 0.0
  %v579 = vmax.f32 %v504, 0.0
  %v580 = vmax.f32 %v509, 0.0
  %v581 = vmax.f32 %v514, 0.0
  %v582 = vmax.f32 %v519, 0.0
  %v583 = vmax.f32 %v524, 0.0
  %v584 = vmax.f32 %v529, 0.0
  %v585 = vmax.f32 %v534, 0.0
  %vm586 = vcmask 261120
  %587 = vst.msk [vmem:[%s3] sm:$0xff] %vm586, %v537
  %588 = vst.msk [vmem:[%s3 + $0x8] sm:$0xff] %vm586, %v538
  %589 = vst.msk [vmem:[%s3 + $0x10] sm:$0xff] %vm586, %v539
  %590 = vst.msk [vmem:[%s3 + $0x18] sm:$0xff] %vm586, %v540
  %591 = vst.msk [vmem:[%s3 + $0x20] sm:$0xff] %vm586, %v541
  %592 = vst.msk [vmem:[%s3 + $0x28] sm:$0xff] %vm586, %v542
  %593 = vst.msk [vmem:[%s3 + $0x30] sm:$0xff] %vm586, %v543
  %594 = vst.msk [vmem:[%s3 + $0x38] sm:$0xff] %vm586, %v544
  %595 = vst.msk [vmem:[%s3 + $0x40] sm:$0xff] %vm586, %v545
  %596 = vst.msk [vmem:[%s3 + $0x48] sm:$0xff] %vm586, %v546
  %597 = vst.msk [vmem:[%s3 + $0x50] sm:$0xff] %vm586, %v547
  %598 = vst.msk [vmem:[%s3 + $0x58] sm:$0xff] %vm586, %v548
  %599 = vst.msk [vmem:[%s3 + $0x60] sm:$0xff] %vm586, %v549
  %600 = vst.msk [vmem:[%s3 + $0x68] sm:$0xff] %vm586, %v550
  %601 = vst.msk [vmem:[%s3 + $0x70] sm:$0xff] %vm586, %v551
  %602 = vst.msk [vmem:[%s3 + $0x78] sm:$0xff] %vm586, %v552
  %603 = vst.msk [vmem:[%s3 + $0x80] sm:$0xff] %vm586, %v553
  %604 = vst.msk [vmem:[%s3 + $0x88] sm:$0xff] %vm586, %v554
  %605 = vst.msk [vmem:[%s3 + $0x90] sm:$0xff] %vm586, %v555
  %606 = vst.msk [vmem:[%s3 + $0x98] sm:$0xff] %vm586, %v556
  %607 = vst.msk [vmem:[%s3 + $0xa0] sm:$0xff] %vm586, %v557
  %608 = vst.msk [vmem:[%s3 + $0xa8] sm:$0xff] %vm586, %v558
  %609 = vst.msk [vmem:[%s3 + $0xb0] sm:$0xff] %vm586, %v559
  %610 = vst.msk [vmem:[%s3 + $0xb8] sm:$0xff] %vm586, %v560
  %611 = vst.msk [vmem:[%s3 + $0xc0] sm:$0xff] %vm586, %v561
  %612 = vst.msk [vmem:[%s3 + $0xc8] sm:$0xff] %vm586, %v562
  %613 = vst.msk [vmem:[%s3 + $0xd0] sm:$0xff] %vm586, %v563
  %614 = vst.msk [vmem:[%s3 + $0xd8] sm:$0xff] %vm586, %v564
  %615 = vst.msk [vmem:[%s3 + $0xe0] sm:$0xff] %vm586, %v565
  %616 = vst.msk [vmem:[%s3 + $0xe8] sm:$0xff] %vm586, %v566
  %617 = vst.msk [vmem:[%s3 + $0xf0] sm:$0xff] %vm586, %v567
  %618 = vst.msk [vmem:[%s3 + $0xf8] sm:$0xff] %vm586, %v568
  %619 = vst.msk [vmem:[%s3 + $0x100] sm:$0xff] %vm586, %v569
  %620 = vst.msk [vmem:[%s3 + $0x108] sm:$0xff] %vm586, %v570
  %621 = vst.msk [vmem:[%s3 + $0x110] sm:$0xff] %vm586, %v571
  %622 = vst.msk [vmem:[%s3 + $0x118] sm:$0xff] %vm586, %v572
  %623 = vst.msk [vmem:[%s3 + $0x120] sm:$0xff] %vm586, %v573
  %624 = vst.msk [vmem:[%s3 + $0x128] sm:$0xff] %vm586, %v574
  %625 = vst.msk [vmem:[%s3 + $0x130] sm:$0xff] %vm586, %v575
  %626 = vst.msk [vmem:[%s3 + $0x138] sm:$0xff] %vm586, %v576
  %627 = vst.msk [vmem:[%s3 + $0x140] sm:$0xff] %vm586, %v577
  %628 = vst.msk [vmem:[%s3 + $0x148] sm:$0xff] %vm586, %v578
  %629 = vst.msk [vmem:[%s3 + $0x150] sm:$0xff] %vm586, %v579
  %630 = vst.msk [vmem:[%s3 + $0x158] sm:$0xff] %vm586, %v580
  %631 = vst.msk [vmem:[%s3 + $0x160] sm:$0xff] %vm586, %v581
  %632 = vst.msk [vmem:[%s3 + $0x168] sm:$0xff] %vm586, %v582
  %633 = vst.msk [vmem:[%s3 + $0x170] sm:$0xff] %vm586, %v583
  %634 = vst.msk [vmem:[%s3 + $0x178] sm:$0xff] %vm586, %v584
  %635 = vst.msk [vmem:[%s3 + $0x180] sm:$0xff] %vm586, %v585
  // Predicated region
  $region14: #{resnet_like_net.12} parent=0 // pred_check
    _
  $region15: #{resnet_like_net.12} parent=0 // pred_check_branch
    %637 = sbr.rel (0) target = $region17
  $region16: #{resnet_like_net.12} parent=0 // pred_region
    _
  $region17: #{resnet_like_net.12} parent=0 // pred_fallthru
    _
  // Predicated region
  $region18: #{resnet_like_net.12} parent=0 // pred_check
    _
  $region19: #{resnet_like_net.12} parent=0 // pred_check_branch
    %639 = sbr.rel (0) target = $region21
  $region20: #{resnet_like_net.12} parent=0 // pred_region
    _
  $region21: #{resnet_like_net.12} parent=0 // pred_fallthru
    _

// kernel: resnet_like_net.13
$region0: #{resnet_like_net.13}
  #allocation0 [shape = 'u32[]', space=smem, size = 0x4, offset = 0x4, fixed_abs, tag = 'smem constant byte address 0x4 - core index']
  #allocation1 [shape = 'u32[144,128]{1,0:T(1,128)}', space=vmem, size = 0x12000, scoped, tag = 'internal scratch']
  %s0 = inlined_call_operand.vmem [shape: f32[1,392,32], index: 0, kind: input, shape index: {}]
  %s1 = inlined_call_operand.vmem [shape: f32[1,32], index: 1, kind: input, shape index: {}]
  %s2 = inlined_call_operand.vmem [shape: f32[1,32], index: 2, kind: input, shape index: {}]
  %s3 = inlined_call_operand.vmem [shape: f32[32,16], index: 3, kind: input, shape index: {}]
  %s4 = inlined_call_operand.vmem [shape: f32[1,16], index: 4, kind: input, shape index: {}]
  %s5 = inlined_call_operand.vmem [shape: f32[1,16], index: 5, kind: input, shape index: {}]
  %s6 = inlined_call_operand.vmem [shape: f32[1,16], index: 6, kind: input, shape index: {}]
  %s7 = inlined_call_operand.vmem [shape: f32[392,16], index: 7, kind: output, shape index: {}]
  %s8 = sld [smem:[#allocation0]]
  $region38: #{resnet_like_net.13} parent=0
    _
  %s10 = ssub.s32 1, %s8
  %s11 = scalar_select 0, %s10, %s8
  // Predicated region
  $region2: #{resnet_like_net.13} parent=0 // pred_check
    _
  $region3: #{resnet_like_net.13} parent=0 // pred_check_branch
    %13 = sbr.rel (0) target = $region5
  $region4: #{resnet_like_net.13} parent=0 // pred_region
    _
  $region5: #{resnet_like_net.13} parent=0 // pred_fallthru
    _
  // Predicated region
  $region6: #{resnet_like_net.13} parent=0 // pred_check
    _
  $region7: #{resnet_like_net.13} parent=0 // pred_check_branch
    %15 = sbr.rel (0) target = $region9
  $region8: #{resnet_like_net.13} parent=0 // pred_region
    _
  $region9: #{resnet_like_net.13} parent=0 // pred_fallthru
    _
  // Predicated region
  $region10: #{resnet_like_net.13} parent=0 // pred_check
    _
  $region11: #{resnet_like_net.13} parent=0 // pred_check_branch
    %17 = sbr.rel (0) target = $region13
  $region12: #{resnet_like_net.13} parent=0 // pred_region
    _
  $region13: #{resnet_like_net.13} parent=0 // pred_fallthru
    _
  // Predicated region
  $region14: #{resnet_like_net.13} parent=0 // pred_check
    _
  $region15: #{resnet_like_net.13} parent=0 // pred_check_branch
    %19 = sbr.rel (0) target = $region17
  $region16: #{resnet_like_net.13} parent=0 // pred_region
    _
  $region17: #{resnet_like_net.13} parent=0 // pred_fallthru
    _
  // Predicated region
  $region18: #{resnet_like_net.13} parent=0 // pred_check
    _
  $region19: #{resnet_like_net.13} parent=0 // pred_check_branch
    %21 = sbr.rel (0) target = $region21
  $region20: #{resnet_like_net.13} parent=0 // pred_region
    _
  $region21: #{resnet_like_net.13} parent=0 // pred_fallthru
    _
  // Predicated region
  $region22: #{resnet_like_net.13} parent=0 // pred_check
    _
  $region23: #{resnet_like_net.13} parent=0 // pred_check_branch
    %23 = sbr.rel (0) target = $region25
  $region24: #{resnet_like_net.13} parent=0 // pred_region
    _
  $region25: #{resnet_like_net.13} parent=0 // pred_fallthru
    _
  // Predicated region
  $region26: #{resnet_like_net.13} parent=0 // pred_check
    _
  $region27: #{resnet_like_net.13} parent=0 // pred_check_branch
    %25 = sbr.rel (0) target = $region29
  $region28: #{resnet_like_net.13} parent=0 // pred_region
    _
  $region29: #{resnet_like_net.13} parent=0 // pred_fallthru
    _
  %v26 = vld [vmem:[%s0] sm:$0xff]
  %v27 = vld [vmem:[%s0 + $0x8] sm:$0xff]
  %v28 = vld [vmem:[%s0 + $0x10] sm:$0xff]
  %v29 = vld [vmem:[%s0 + $0x18] sm:$0xff]
  %v30 = vld [vmem:[%s0 + $0x20] sm:$0xff]
  %v31 = vld [vmem:[%s0 + $0x28] sm:$0xff]
  %v32 = vld [vmem:[%s0 + $0x30] sm:$0xff]
  %v33 = vld [vmem:[%s0 + $0x38] sm:$0xff]
  %v34 = vld [vmem:[%s0 + $0x40] sm:$0xff]
  %v35 = vld [vmem:[%s0 + $0x48] sm:$0xff]
  %v36 = vld [vmem:[%s0 + $0x50] sm:$0xff]
  %v37 = vld [vmem:[%s0 + $0x58] sm:$0xff]
  %v38 = vld [vmem:[%s0 + $0x60] sm:$0xff]
  %v39 = vld [vmem:[%s0 + $0x68] sm:$0xff]
  %v40 = vld [vmem:[%s0 + $0x70] sm:$0xff]
  %v41 = vld [vmem:[%s0 + $0x78] sm:$0xff]
  %v42 = vld [vmem:[%s0 + $0x80] sm:$0xff]
  %v43 = vld [vmem:[%s0 + $0x88] sm:$0xff]
  %v44 = vld [vmem:[%s0 + $0x90] sm:$0xff]
  %v45 = vld [vmem:[%s0 + $0x98] sm:$0xff]
  %v46 = vld [vmem:[%s0 + $0xa0] sm:$0xff]
  %v47 = vld [vmem:[%s0 + $0xa8] sm:$0xff]
  %v48 = vld [vmem:[%s0 + $0xb0] sm:$0xff]
  %v49 = vld [vmem:[%s0 + $0xb8] sm:$0xff]
  %v50 = vld [vmem:[%s0 + $0xc0] sm:$0xff]
  %v51 = vld [vmem:[%s0 + $0xc8] sm:$0xff]
  %v52 = vld [vmem:[%s0 + $0xd0] sm:$0xff]
  %v53 = vld [vmem:[%s0 + $0xd8] sm:$0xff]
  %v54 = vld [vmem:[%s0 + $0xe0] sm:$0xff]
  %v55 = vld [vmem:[%s0 + $0xe8] sm:$0xff]
  %v56 = vld [vmem:[%s0 + $0xf0] sm:$0xff]
  %v57 = vld [vmem:[%s0 + $0xf8] sm:$0xff]
  %v58 = vld [vmem:[%s0 + $0x100] sm:$0xff]
  %v59 = vld [vmem:[%s0 + $0x108] sm:$0xff]
  %v60 = vld [vmem:[%s0 + $0x110] sm:$0xff]
  %v61 = vld [vmem:[%s0 + $0x118] sm:$0xff]
  %v62 = vld [vmem:[%s0 + $0x120] sm:$0xff]
  %v63 = vld [vmem:[%s0 + $0x128] sm:$0xff]
  %v64 = vld [vmem:[%s0 + $0x130] sm:$0xff]
  %v65 = vld [vmem:[%s0 + $0x138] sm:$0xff]
  %v66 = vld [vmem:[%s0 + $0x140] sm:$0xff]
  %v67 = vld [vmem:[%s0 + $0x148] sm:$0xff]
  %v68 = vld [vmem:[%s0 + $0x150] sm:$0xff]
  %v69 = vld [vmem:[%s0 + $0x158] sm:$0xff]
  %v70 = vld [vmem:[%s0 + $0x160] sm:$0xff]
  %v71 = vld [vmem:[%s0 + $0x168] sm:$0xff]
  %v72 = vld [vmem:[%s0 + $0x170] sm:$0xff]
  %v73 = vld [vmem:[%s0 + $0x178] sm:$0xff]
  %v74 = vld [vmem:[%s0 + $0x180] sm:$0xff]
  %vm75 = vcmask 261120
  %v76 = vsel %vm75, %v26, 0.0
  %v77 = vsel %vm75, %v27, 0.0
  %v78 = vadd.f32 %v76, %v77
  %v79 = vsel %vm75, %v28, 0.0
  %v80 = vadd.f32 %v78, %v79
  %v81 = vsel %vm75, %v29, 0.0
  %v82 = vadd.f32 %v80, %v81
  %v83 = vsel %vm75, %v30, 0.0
  %v84 = vadd.f32 %v82, %v83
  %v85 = vsel %vm75, %v31, 0.0
  %v86 = vadd.f32 %v84, %v85
  %v87 = vsel %vm75, %v32, 0.0
  %v88 = vadd.f32 %v86, %v87
  %v89 = vsel %vm75, %v33, 0.0
  %v90 = vadd.f32 %v88, %v89
  %v91 = vsel %vm75, %v34, 0.0
  %v92 = vadd.f32 %v90, %v91
  %v93 = vsel %vm75, %v35, 0.0
  %v94 = vadd.f32 %v92, %v93
  %v95 = vsel %vm75, %v36, 0.0
  %v96 = vadd.f32 %v94, %v95
  %v97 = vsel %vm75, %v37, 0.0
  %v98 = vadd.f32 %v96, %v97
  %v99 = vsel %vm75, %v38, 0.0
  %v100 = vadd.f32 %v98, %v99
  %v101 = vsel %vm75, %v39, 0.0
  %v102 = vadd.f32 %v100, %v101
  %v103 = vsel %vm75, %v40, 0.0
  %v104 = vadd.f32 %v102, %v103
  %v105 = vsel %vm75, %v41, 0.0
  %v106 = vadd.f32 %v104, %v105
  %v107 = vsel %vm75, %v42, 0.0
  %v108 = vadd.f32 %v106, %v107
  %v109 = vsel %vm75, %v43, 0.0
  %v110 = vadd.f32 %v108, %v109
  %v111 = vsel %vm75, %v44, 0.0
  %v112 = vadd.f32 %v110, %v111
  %v113 = vsel %vm75, %v45, 0.0
  %v114 = vadd.f32 %v112, %v113
  %v115 = vsel %vm75, %v46, 0.0
  %v116 = vadd.f32 %v114, %v115
  %v117 = vsel %vm75, %v47, 0.0
  %v118 = vadd.f32 %v116, %v117
  %v119 = vsel %vm75, %v48, 0.0
  %v120 = vadd.f32 %v118, %v119
  %v121 = vsel %vm75, %v49, 0.0
  %v122 = vadd.f32 %v120, %v121
  %v123 = vsel %vm75, %v50, 0.0
  %v124 = vadd.f32 %v122, %v123
  %v125 = vsel %vm75, %v51, 0.0
  %v126 = vadd.f32 %v124, %v125
  %v127 = vsel %vm75, %v52, 0.0
  %v128 = vadd.f32 %v126, %v127
  %v129 = vsel %vm75, %v53, 0.0
  %v130 = vadd.f32 %v128, %v129
  %v131 = vsel %vm75, %v54, 0.0
  %v132 = vadd.f32 %v130, %v131
  %v133 = vsel %vm75, %v55, 0.0
  %v134 = vadd.f32 %v132, %v133
  %v135 = vsel %vm75, %v56, 0.0
  %v136 = vadd.f32 %v134, %v135
  %v137 = vsel %vm75, %v57, 0.0
  %v138 = vadd.f32 %v136, %v137
  %v139 = vsel %vm75, %v58, 0.0
  %v140 = vadd.f32 %v138, %v139
  %v141 = vsel %vm75, %v59, 0.0
  %v142 = vadd.f32 %v140, %v141
  %v143 = vsel %vm75, %v60, 0.0
  %v144 = vadd.f32 %v142, %v143
  %v145 = vsel %vm75, %v61, 0.0
  %v146 = vadd.f32 %v144, %v145
  %v147 = vsel %vm75, %v62, 0.0
  %v148 = vadd.f32 %v146, %v147
  %v149 = vsel %vm75, %v63, 0.0
  %v150 = vadd.f32 %v148, %v149
  %v151 = vsel %vm75, %v64, 0.0
  %v152 = vadd.f32 %v150, %v151
  %v153 = vsel %vm75, %v65, 0.0
  %v154 = vadd.f32 %v152, %v153
  %v155 = vsel %vm75, %v66, 0.0
  %v156 = vadd.f32 %v154, %v155
  %v157 = vsel %vm75, %v67, 0.0
  %v158 = vadd.f32 %v156, %v157
  %v159 = vsel %vm75, %v68, 0.0
  %v160 = vadd.f32 %v158, %v159
  %v161 = vsel %vm75, %v69, 0.0
  %v162 = vadd.f32 %v160, %v161
  %v163 = vsel %vm75, %v70, 0.0
  %v164 = vadd.f32 %v162, %v163
  %v165 = vsel %vm75, %v71, 0.0
  %v166 = vadd.f32 %v164, %v165
  %v167 = vsel %vm75, %v72, 0.0
  %v168 = vadd.f32 %v166, %v167
  %v169 = vsel %vm75, %v73, 0.0
  %v170 = vadd.f32 %v168, %v169
  %v171 = vsel %vm75, %v74, 0.0
  %v172 = vadd.f32 %v170, %v171
  %v173 = vrot.slane %v172, 4
  %v174 = vadd.f32 %v172, %v173
  %v175 = vrot.slane %v174, 2
  %v176 = vadd.f32 %v174, %v175
  %v177 = vrot.slane %v176, 1
  %v178 = vadd.f32 %v176, %v177
  %v179 = vrcp.pop 392.0
  %v180 = vmul.f32 %v178, %v179
  %v181 = vsub.f32 %v26, %v180
  %v182 = vsub.f32 %v27, %v180
  %v183 = vsub.f32 %v28, %v180
  %v184 = vsub.f32 %v29, %v180
  %v185 = vsub.f32 %v30, %v180
  %v186 = vsub.f32 %v31, %v180
  %v187 = vsub.f32 %v32, %v180
  %v188 = vsub.f32 %v33, %v180
  %v189 = vsub.f32 %v34, %v180
  %v190 = vsub.f32 %v35, %v180
  %v191 = vsub.f32 %v36, %v180
  %v192 = vsub.f32 %v37, %v180
  %v193 = vsub.f32 %v38, %v180
  %v194 = vsub.f32 %v39, %v180
  %v195 = vsub.f32 %v40, %v180
  %v196 = vsub.f32 %v41, %v180
  %v197 = vsub.f32 %v42, %v180
  %v198 = vsub.f32 %v43, %v180
  %v199 = vsub.f32 %v44, %v180
  %v200 = vsub.f32 %v45, %v180
  %v201 = vsub.f32 %v46, %v180
  %v202 = vsub.f32 %v47, %v180
  %v203 = vsub.f32 %v48, %v180
  %v204 = vsub.f32 %v49, %v180
  %v205 = vsub.f32 %v50, %v180
  %v206 = vsub.f32 %v51, %v180
  %v207 = vsub.f32 %v52, %v180
  %v208 = vsub.f32 %v53, %v180
  %v209 = vsub.f32 %v54, %v180
  %v210 = vsub.f32 %v55, %v180
  %v211 = vsub.f32 %v56, %v180
  %v212 = vsub.f32 %v57, %v180
  %v213 = vsub.f32 %v58, %v180
  %v214 = vsub.f32 %v59, %v180
  %v215 = vsub.f32 %v60, %v180
  %v216 = vsub.f32 %v61, %v180
  %v217 = vsub.f32 %v62, %v180
  %v218 = vsub.f32 %v63, %v180
  %v219 = vsub.f32 %v64, %v180
  %v220 = vsub.f32 %v65, %v180
  %v221 = vsub.f32 %v66, %v180
  %v222 = vsub.f32 %v67, %v180
  %v223 = vsub.f32 %v68, %v180
  %v224 = vsub.f32 %v69, %v180
  %v225 = vsub.f32 %v70, %v180
  %v226 = vsub.f32 %v71, %v180
  %v227 = vsub.f32 %v72, %v180
  %v228 = vsub.f32 %v73, %v180
  %v229 = vsub.f32 %v74, %v180
  %v230 = vmul.f32 %v181, %v181
  %v231 = vmul.f32 %v182, %v182
  %v232 = vmul.f32 %v183, %v183
  %v233 = vmul.f32 %v184, %v184
  %v234 = vmul.f32 %v185, %v185
  %v235 = vmul.f32 %v186, %v186
  %v236 = vmul.f32 %v187, %v187
  %v237 = vmul.f32 %v188, %v188
  %v238 = vmul.f32 %v189, %v189
  %v239 = vmul.f32 %v190, %v190
  %v240 = vmul.f32 %v191, %v191
  %v241 = vmul.f32 %v192, %v192
  %v242 = vmul.f32 %v193, %v193
  %v243 = vmul.f32 %v194, %v194
  %v244 = vmul.f32 %v195, %v195
  %v245 = vmul.f32 %v196, %v196
  %v246 = vmul.f32 %v197, %v197
  %v247 = vmul.f32 %v198, %v198
  %v248 = vmul.f32 %v199, %v199
  %v249 = vmul.f32 %v200, %v200
  %v250 = vmul.f32 %v201, %v201
  %v251 = vmul.f32 %v202, %v202
  %v252 = vmul.f32 %v203, %v203
  %v253 = vmul.f32 %v204, %v204
  %v254 = vmul.f32 %v205, %v205
  %v255 = vmul.f32 %v206, %v206
  %v256 = vmul.f32 %v207, %v207
  %v257 = vmul.f32 %v208, %v208
  %v258 = vmul.f32 %v209, %v209
  %v259 = vmul.f32 %v210, %v210
  %v260 = vmul.f32 %v211, %v211
  %v261 = vmul.f32 %v212, %v212
  %v262 = vmul.f32 %v213, %v213
  %v263 = vmul.f32 %v214, %v214
  %v264 = vmul.f32 %v215, %v215
  %v265 = vmul.f32 %v216, %v216
  %v266 = vmul.f32 %v217, %v217
  %v267 = vmul.f32 %v218, %v218
  %v268 = vmul.f32 %v219, %v219
  %v269 = vmul.f32 %v220, %v220
  %v270 = vmul.f32 %v221, %v221
  %v271 = vmul.f32 %v222, %v222
  %v272 = vmul.f32 %v223, %v223
  %v273 = vmul.f32 %v224, %v224
  %v274 = vmul.f32 %v225, %v225
  %v275 = vmul.f32 %v226, %v226
  %v276 = vmul.f32 %v227, %v227
  %v277 = vmul.f32 %v228, %v228
  %v278 = vmul.f32 %v229, %v229
  %v279 = vsel %vm75, %v230, 0.0
  %v280 = vsel %vm75, %v231, 0.0
  %v281 = vadd.f32 %v279, %v280
  %v282 = vsel %vm75, %v232, 0.0
  %v283 = vadd.f32 %v281, %v282
  %v284 = vsel %vm75, %v233, 0.0
  %v285 = vadd.f32 %v283, %v284
  %v286 = vsel %vm75, %v234, 0.0
  %v287 = vadd.f32 %v285, %v286
  %v288 = vsel %vm75, %v235, 0.0
  %v289 = vadd.f32 %v287, %v288
  %v290 = vsel %vm75, %v236, 0.0
  %v291 = vadd.f32 %v289, %v290
  %v292 = vsel %vm75, %v237, 0.0
  %v293 = vadd.f32 %v291, %v292
  %v294 = vsel %vm75, %v238, 0.0
  %v295 = vadd.f32 %v293, %v294
  %v296 = vsel %vm75, %v239, 0.0
  %v297 = vadd.f32 %v295, %v296
  %v298 = vsel %vm75, %v240, 0.0
  %v299 = vadd.f32 %v297, %v298
  %v300 = vsel %vm75, %v241, 0.0
  %v301 = vadd.f32 %v299, %v300
  %v302 = vsel %vm75, %v242, 0.0
  %v303 = vadd.f32 %v301, %v302
  %v304 = vsel %vm75, %v243, 0.0
  %v305 = vadd.f32 %v303, %v304
  %v306 = vsel %vm75, %v244, 0.0
  %v307 = vadd.f32 %v305, %v306
  %v308 = vsel %vm75, %v245, 0.0
  %v309 = vadd.f32 %v307, %v308
  %v310 = vsel %vm75, %v246, 0.0
  %v311 = vadd.f32 %v309, %v310
  %v312 = vsel %vm75, %v247, 0.0
  %v313 = vadd.f32 %v311, %v312
  %v314 = vsel %vm75, %v248, 0.0
  %v315 = vadd.f32 %v313, %v314
  %v316 = vsel %vm75, %v249, 0.0
  %v317 = vadd.f32 %v315, %v316
  %v318 = vsel %vm75, %v250, 0.0
  %v319 = vadd.f32 %v317, %v318
  %v320 = vsel %vm75, %v251, 0.0
  %v321 = vadd.f32 %v319, %v320
  %v322 = vsel %vm75, %v252, 0.0
  %v323 = vadd.f32 %v321, %v322
  %v324 = vsel %vm75, %v253, 0.0
  %v325 = vadd.f32 %v323, %v324
  %v326 = vsel %vm75, %v254, 0.0
  %v327 = vadd.f32 %v325, %v326
  %v328 = vsel %vm75, %v255, 0.0
  %v329 = vadd.f32 %v327, %v328
  %v330 = vsel %vm75, %v256, 0.0
  %v331 = vadd.f32 %v329, %v330
  %v332 = vsel %vm75, %v257, 0.0
  %v333 = vadd.f32 %v331, %v332
  %v334 = vsel %vm75, %v258, 0.0
  %v335 = vadd.f32 %v333, %v334
  %v336 = vsel %vm75, %v259, 0.0
  %v337 = vadd.f32 %v335, %v336
  %v338 = vsel %vm75, %v260, 0.0
  %v339 = vadd.f32 %v337, %v338
  %v340 = vsel %vm75, %v261, 0.0
  %v341 = vadd.f32 %v339, %v340
  %v342 = vsel %vm75, %v262, 0.0
  %v343 = vadd.f32 %v341, %v342
  %v344 = vsel %vm75, %v263, 0.0
  %v345 = vadd.f32 %v343, %v344
  %v346 = vsel %vm75, %v264, 0.0
  %v347 = vadd.f32 %v345, %v346
  %v348 = vsel %vm75, %v265, 0.0
  %v349 = vadd.f32 %v347, %v348
  %v350 = vsel %vm75, %v266, 0.0
  %v351 = vadd.f32 %v349, %v350
  %v352 = vsel %vm75, %v267, 0.0
  %v353 = vadd.f32 %v351, %v352
  %v354 = vsel %vm75, %v268, 0.0
  %v355 = vadd.f32 %v353, %v354
  %v356 = vsel %vm75, %v269, 0.0
  %v357 = vadd.f32 %v355, %v356
  %v358 = vsel %vm75, %v270, 0.0
  %v359 = vadd.f32 %v357, %v358
  %v360 = vsel %vm75, %v271, 0.0
  %v361 = vadd.f32 %v359, %v360
  %v362 = vsel %vm75, %v272, 0.0
  %v363 = vadd.f32 %v361, %v362
  %v364 = vsel %vm75, %v273, 0.0
  %v365 = vadd.f32 %v363, %v364
  %v366 = vsel %vm75, %v274, 0.0
  %v367 = vadd.f32 %v365, %v366
  %v368 = vsel %vm75, %v275, 0.0
  %v369 = vadd.f32 %v367, %v368
  %v370 = vsel %vm75, %v276, 0.0
  %v371 = vadd.f32 %v369, %v370
  %v372 = vsel %vm75, %v277, 0.0
  %v373 = vadd.f32 %v371, %v372
  %v374 = vsel %vm75, %v278, 0.0
  %v375 = vadd.f32 %v373, %v374
  %v376 = vrot.slane %v375, 4
  %v377 = vadd.f32 %v375, %v376
  %v378 = vrot.slane %v377, 2
  %v379 = vadd.f32 %v377, %v378
  %v380 = vrot.slane %v379, 1
  %v381 = vadd.f32 %v379, %v380
  %v382 = vmul.f32 %v381, %v179
  %v383 = vadd.f32 %v382, 1e-05
  %v384 = vrsqrt.pop %v383
  %v385 = vmul.f32 %v181, %v384
  %v386 = vmul.f32 %v182, %v384
  %v387 = vmul.f32 %v183, %v384
  %v388 = vmul.f32 %v184, %v384
  %v389 = vmul.f32 %v185, %v384
  %v390 = vmul.f32 %v186, %v384
  %v391 = vmul.f32 %v187, %v384
  %v392 = vmul.f32 %v188, %v384
  %v393 = vmul.f32 %v189, %v384
  %v394 = vmul.f32 %v190, %v384
  %v395 = vmul.f32 %v191, %v384
  %v396 = vmul.f32 %v192, %v384
  %v397 = vmul.f32 %v193, %v384
  %v398 = vmul.f32 %v194, %v384
  %v399 = vmul.f32 %v195, %v384
  %v400 = vmul.f32 %v196, %v384
  %v401 = vmul.f32 %v197, %v384
  %v402 = vmul.f32 %v198, %v384
  %v403 = vmul.f32 %v199, %v384
  %v404 = vmul.f32 %v200, %v384
  %v405 = vmul.f32 %v201, %v384
  %v406 = vmul.f32 %v202, %v384
  %v407 = vmul.f32 %v203, %v384
  %v408 = vmul.f32 %v204, %v384
  %v409 = vmul.f32 %v205, %v384
  %v410 = vmul.f32 %v206, %v384
  %v411 = vmul.f32 %v207, %v384
  %v412 = vmul.f32 %v208, %v384
  %v413 = vmul.f32 %v209, %v384
  %v414 = vmul.f32 %v210, %v384
  %v415 = vmul.f32 %v211, %v384
  %v416 = vmul.f32 %v212, %v384
  %v417 = vmul.f32 %v213, %v384
  %v418 = vmul.f32 %v214, %v384
  %v419 = vmul.f32 %v215, %v384
  %v420 = vmul.f32 %v216, %v384
  %v421 = vmul.f32 %v217, %v384
  %v422 = vmul.f32 %v218, %v384
  %v423 = vmul.f32 %v219, %v384
  %v424 = vmul.f32 %v220, %v384
  %v425 = vmul.f32 %v221, %v384
  %v426 = vmul.f32 %v222, %v384
  %v427 = vmul.f32 %v223, %v384
  %v428 = vmul.f32 %v224, %v384
  %v429 = vmul.f32 %v225, %v384
  %v430 = vmul.f32 %v226, %v384
  %v431 = vmul.f32 %v227, %v384
  %v432 = vmul.f32 %v228, %v384
  %v433 = vmul.f32 %v229, %v384
  %v434 = vld [vmem:[%s1] sm:$0x1]
  %v436 = vlaneseq
  %v437 = vshrl.u32 %v436, 7
  %v438 = vsub.s32 0, %v437
  %v439 = vrot.slane %v434, %v438
  %v441 = vmul.f32 %v385, %v439
  %v442 = vmul.f32 %v386, %v439
  %v443 = vmul.f32 %v387, %v439
  %v444 = vmul.f32 %v388, %v439
  %v445 = vmul.f32 %v389, %v439
  %v446 = vmul.f32 %v390, %v439
  %v447 = vmul.f32 %v391, %v439
  %v448 = vmul.f32 %v392, %v439
  %v449 = vmul.f32 %v393, %v439
  %v450 = vmul.f32 %v394, %v439
  %v451 = vmul.f32 %v395, %v439
  %v452 = vmul.f32 %v396, %v439
  %v453 = vmul.f32 %v397, %v439
  %v454 = vmul.f32 %v398, %v439
  %v455 = vmul.f32 %v399, %v439
  %v456 = vmul.f32 %v400, %v439
  %v457 = vmul.f32 %v401, %v439
  %v458 = vmul.f32 %v402, %v439
  %v459 = vmul.f32 %v403, %v439
  %v460 = vmul.f32 %v404, %v439
  %v461 = vmul.f32 %v405, %v439
  %v462 = vmul.f32 %v406, %v439
  %v463 = vmul.f32 %v407, %v439
  %v464 = vmul.f32 %v408, %v439
  %v465 = vmul.f32 %v409, %v439
  %v466 = vmul.f32 %v410, %v439
  %v467 = vmul.f32 %v411, %v439
  %v468 = vmul.f32 %v412, %v439
  %v469 = vmul.f32 %v413, %v439
  %v470 = vmul.f32 %v414, %v439
  %v471 = vmul.f32 %v415, %v439
  %v472 = vmul.f32 %v416, %v439
  %v473 = vmul.f32 %v417, %v439
  %v474 = vmul.f32 %v418, %v439
  %v475 = vmul.f32 %v419, %v439
  %v476 = vmul.f32 %v420, %v439
  %v477 = vmul.f32 %v421, %v439
  %v478 = vmul.f32 %v422, %v439
  %v479 = vmul.f32 %v423, %v439
  %v480 = vmul.f32 %v424, %v439
  %v481 = vmul.f32 %v425, %v439
  %v482 = vmul.f32 %v426, %v439
  %v483 = vmul.f32 %v427, %v439
  %v484 = vmul.f32 %v428, %v439
  %v485 = vmul.f32 %v429, %v439
  %v486 = vmul.f32 %v430, %v439
  %v487 = vmul.f32 %v431, %v439
  %v488 = vmul.f32 %v432, %v439
  %v489 = vmul.f32 %v433, %v439
  %v490 = vld [vmem:[%s2] sm:$0x1]
  %v492 = vlaneseq
  %v493 = vshrl.u32 %v492, 7
  %v494 = vsub.s32 0, %v493
  %v495 = vrot.slane %v490, %v494
  %v497 = vadd.f32 %v441, %v495
  %v498 = vadd.f32 %v442, %v495
  %v499 = vadd.f32 %v443, %v495
  %v500 = vadd.f32 %v444, %v495
  %v501 = vadd.f32 %v445, %v495
  %v502 = vadd.f32 %v446, %v495
  %v503 = vadd.f32 %v447, %v495
  %v504 = vadd.f32 %v448, %v495
  %v505 = vadd.f32 %v449, %v495
  %v506 = vadd.f32 %v450, %v495
  %v507 = vadd.f32 %v451, %v495
  %v508 = vadd.f32 %v452, %v495
  %v509 = vadd.f32 %v453, %v495
  %v510 = vadd.f32 %v454, %v495
  %v511 = vadd.f32 %v455, %v495
  %v512 = vadd.f32 %v456, %v495
  %v513 = vadd.f32 %v457, %v495
  %v514 = vadd.f32 %v458, %v495
  %v515 = vadd.f32 %v459, %v495
  %v516 = vadd.f32 %v460, %v495
  %v517 = vadd.f32 %v461, %v495
  %v518 = vadd.f32 %v462, %v495
  %v519 = vadd.f32 %v463, %v495
  %v520 = vadd.f32 %v464, %v495
  %v521 = vadd.f32 %v465, %v495
  %v522 = vadd.f32 %v466, %v495
  %v523 = vadd.f32 %v467, %v495
  %v524 = vadd.f32 %v468, %v495
  %v525 = vadd.f32 %v469, %v495
  %v526 = vadd.f32 %v470, %v495
  %v527 = vadd.f32 %v471, %v495
  %v528 = vadd.f32 %v472, %v495
  %v529 = vadd.f32 %v473, %v495
  %v530 = vadd.f32 %v474, %v495
  %v531 = vadd.f32 %v475, %v495
  %v532 = vadd.f32 %v476, %v495
  %v533 = vadd.f32 %v477, %v495
  %v534 = vadd.f32 %v478, %v495
  %v535 = vadd.f32 %v479, %v495
  %v536 = vadd.f32 %v480, %v495
  %v537 = vadd.f32 %v481, %v495
  %v538 = vadd.f32 %v482, %v495
  %v539 = vadd.f32 %v483, %v495
  %v540 = vadd.f32 %v484, %v495
  %v541 = vadd.f32 %v485, %v495
  %v542 = vadd.f32 %v486, %v495
  %v543 = vadd.f32 %v487, %v495
  %v544 = vadd.f32 %v488, %v495
  %v545 = vadd.f32 %v489, %v495
  %v546 = vmax.f32 %v497, 0.0
  %v547 = vmax.f32 %v498, 0.0
  %v548 = vmax.f32 %v499, 0.0
  %v549 = vmax.f32 %v500, 0.0
  %v550 = vmax.f32 %v501, 0.0
  %v551 = vmax.f32 %v502, 0.0
  %v552 = vmax.f32 %v503, 0.0
  %v553 = vmax.f32 %v504, 0.0
  %v554 = vmax.f32 %v505, 0.0
  %v555 = vmax.f32 %v506, 0.0
  %v556 = vmax.f32 %v507, 0.0
  %v557 = vmax.f32 %v508, 0.0
  %v558 = vmax.f32 %v509, 0.0
  %v559 = vmax.f32 %v510, 0.0
  %v560 = vmax.f32 %v511, 0.0
  %v561 = vmax.f32 %v512, 0.0
  %v562 = vmax.f32 %v513, 0.0
  %v563 = vmax.f32 %v514, 0.0
  %v564 = vmax.f32 %v515, 0.0
  %v565 = vmax.f32 %v516, 0.0
  %v566 = vmax.f32 %v517, 0.0
  %v567 = vmax.f32 %v518, 0.0
  %v568 = vmax.f32 %v519, 0.0
  %v569 = vmax.f32 %v520, 0.0
  %v570 = vmax.f32 %v521, 0.0
  %v571 = vmax.f32 %v522, 0.0
  %v572 = vmax.f32 %v523, 0.0
  %v573 = vmax.f32 %v524, 0.0
  %v574 = vmax.f32 %v525, 0.0
  %v575 = vmax.f32 %v526, 0.0
  %v576 = vmax.f32 %v527, 0.0
  %v577 = vmax.f32 %v528, 0.0
  %v578 = vmax.f32 %v529, 0.0
  %v579 = vmax.f32 %v530, 0.0
  %v580 = vmax.f32 %v531, 0.0
  %v581 = vmax.f32 %v532, 0.0
  %v582 = vmax.f32 %v533, 0.0
  %v583 = vmax.f32 %v534, 0.0
  %v584 = vmax.f32 %v535, 0.0
  %v585 = vmax.f32 %v536, 0.0
  %v586 = vmax.f32 %v537, 0.0
  %v587 = vmax.f32 %v538, 0.0
  %v588 = vmax.f32 %v539, 0.0
  %v589 = vmax.f32 %v540, 0.0
  %v590 = vmax.f32 %v541, 0.0
  %v591 = vmax.f32 %v542, 0.0
  %v592 = vmax.f32 %v543, 0.0
  %v593 = vmax.f32 %v544, 0.0
  %v594 = vmax.f32 %v545, 0.0
  %v595 = vld [vmem:[%s3] sm:$0xff]
  %v596 = vld [vmem:[%s3 + $0x8] sm:$0xff]
  %v597 = vld [vmem:[%s3 + $0x10] sm:$0xff]
  %v598 = vld [vmem:[%s3 + $0x18] sm:$0xff]
  %v599 = vld [vmem:[%s4] sm:$0x1]
  %v601 = vlaneseq
  %v602 = vshrl.u32 %v601, 7
  %v603 = vsub.s32 0, %v602
  %v604 = vrot.slane %v599, %v603
  %v607 = vsel %vm75, %v546, 0
  %v610 = vsel %vm75, %v547, 0
  %v613 = vsel %vm75, %v548, 0
  %v616 = vsel %vm75, %v549, 0
  %v619 = vsel %vm75, %v550, 0
  %v622 = vsel %vm75, %v551, 0
  %v625 = vsel %vm75, %v552, 0
  %v628 = vsel %vm75, %v553, 0
  %v631 = vsel %vm75, %v554, 0
  %v634 = vsel %vm75, %v555, 0
  %v637 = vsel %vm75, %v556, 0
  %v640 = vsel %vm75, %v557, 0
  %v643 = vsel %vm75, %v558, 0
  %v646 = vsel %vm75, %v559, 0
  %v649 = vsel %vm75, %v560, 0
  %v652 = vsel %vm75, %v561, 0
  %v655 = vsel %vm75, %v562, 0
  %v658 = vsel %vm75, %v563, 0
  %v661 = vsel %vm75, %v564, 0
  %v664 = vsel %vm75, %v565, 0
  %v667 = vsel %vm75, %v566, 0
  %v670 = vsel %vm75, %v567, 0
  %v673 = vsel %vm75, %v568, 0
  %v676 = vsel %vm75, %v569, 0
  %v679 = vsel %vm75, %v570, 0
  %v682 = vsel %vm75, %v571, 0
  %v685 = vsel %vm75, %v572, 0
  %v688 = vsel %vm75, %v573, 0
  %v691 = vsel %vm75, %v574, 0
  %v694 = vsel %vm75, %v575, 0
  %v697 = vsel %vm75, %v576, 0
  %v700 = vsel %vm75, %v577, 0
  %v703 = vsel %vm75, %v578, 0
  %v706 = vsel %vm75, %v579, 0
  %v709 = vsel %vm75, %v580, 0
  %v712 = vsel %vm75, %v581, 0
  %v715 = vsel %vm75, %v582, 0
  %v718 = vsel %vm75, %v583, 0
  %v721 = vsel %vm75, %v584, 0
  %v724 = vsel %vm75, %v585, 0
  %v727 = vsel %vm75, %v586, 0
  %v730 = vsel %vm75, %v587, 0
  %v733 = vsel %vm75, %v588, 0
  %v736 = vsel %vm75, %v589, 0
  %v739 = vsel %vm75, %v590, 0
  %v742 = vsel %vm75, %v591, 0
  %v745 = vsel %vm75, %v592, 0
  %v748 = vsel %vm75, %v593, 0
  %v751 = vsel %vm75, %v594, 0
  %753 = vmatprep.subr.mxu0 0.0
  %754 = vmatpush1.msra.mxu0 %v595
  %755 = vmatprep.subr.mxu0 0.0
  %756 = vmatpush1.msra.mxu0 %v596
  %757 = vmatprep.subr.mxu0 0.0
  %758 = vmatpush1.msra.mxu0 %v597
  %759 = vmatprep.subr.mxu0 0.0
  %760 = vmatpush1.msra.mxu0 %v598
  %761 = vmatprep.subr.mxu0 0.0
  %762 = vmatpush1.msra.mxu0 0.0
  %763 = vmatprep.subr.mxu0 0.0
  %764 = vmatpush1.msra.mxu0 0.0
  %765 = vmatprep.subr.mxu0 0.0
  %766 = vmatpush1.msra.mxu0 0.0
  %767 = vmatprep.subr.mxu0 0.0
  %768 = vmatpush1.msra.mxu0 0.0
  %769 = vmatprep.subr.mxu0 0.0
  %770 = vmatpush1.msra.mxu0 0.0
  %771 = vmatprep.subr.mxu0 0.0
  %772 = vmatpush1.msra.mxu0 0.0
  %773 = vmatprep.subr.mxu0 0.0
  %774 = vmatpush1.msra.mxu0 0.0
  %775 = vmatprep.subr.mxu0 0.0
  %776 = vmatpush1.msra.mxu0 0.0
  %777 = vmatprep.subr.mxu0 0.0
  %778 = vmatpush1.msra.mxu0 0.0
  %779 = vmatprep.subr.mxu0 0.0
  %780 = vmatpush1.msra.mxu0 0.0
  %781 = vmatprep.subr.mxu0 0.0
  %782 = vmatpush1.msra.mxu0 0.0
  %783 = vmatprep.subr.mxu0 0.0
  %784 = vmatpush1.msra.mxu0 0.0
  %785 = vmatprep.subr.mxu0 0.0
  %786 = vmatpush1.msra.mxu0 0.0
  %787 = vmatprep.subr.mxu0 0.0
  %788 = vmatpush1.msra.mxu0 0.0
  %789 = vmatprep.subr.mxu0 0.0
  %790 = vmatpush1.msra.mxu0 0.0
  %791 = vmatprep.subr.mxu0 0.0
  %792 = vmatpush1.msra.mxu0 0.0
  %793 = vmatprep.subr.mxu0 0.0
  %794 = vmatpush1.msra.mxu0 0.0
  %795 = vmatprep.subr.mxu0 0.0
  %796 = vmatpush1.msra.mxu0 0.0
  %797 = vmatprep.subr.mxu0 0.0
  %798 = vmatpush1.msra.mxu0 0.0
  %799 = vmatprep.subr.mxu0 0.0
  %800 = vmatpush1.msra.mxu0 0.0
  %801 = vmatprep.subr.mxu0 0.0
  %802 = vmatpush1.msra.mxu0 0.0
  %803 = vmatprep.subr.mxu0 0.0
  %804 = vmatpush1.msra.mxu0 0.0
  %805 = vmatprep.subr.mxu0 0.0
  %806 = vmatpush1.msra.mxu0 0.0
  %807 = vmatprep.subr.mxu0 0.0
  %808 = vmatpush1.msra.mxu0 0.0
  %809 = vmatprep.subr.mxu0 0.0
  %810 = vmatpush1.msra.mxu0 0.0
  %811 = vmatprep.subr.mxu0 0.0
  %812 = vmatpush1.msra.mxu0 0.0
  %813 = vmatprep.subr.mxu0 0.0
  %814 = vmatpush1.msra.mxu0 0.0
  %815 = vmatprep.subr.mxu0 0.0
  %816 = vmatpush1.msra.mxu0 0.0
  %817 = vmatprep.mubr.f32.mxu0 0.0
  %818 = vmatmul.mubr.f32.gmra.mrb[0].mxu0 %v607
  %v819 = vpop.f32.mrb[0].mxu0
  %v820 = vadd.f32 %v604, %v819
  %v821 = vpop.f32.mrb[0].mxu0
  %822 = vmatprep.mubr.f32.mxu0 0.0
  %823 = vmatmul.mubr.f32.gmra.mrb[0].mxu0 %v610
  %v824 = vpop.f32.mrb[0].mxu0
  %v825 = vadd.f32 %v604, %v824
  %v826 = vpop.f32.mrb[0].mxu0
  %827 = vmatprep.mubr.f32.mxu0 0.0
  %828 = vmatmul.mubr.f32.gmra.mrb[0].mxu0 %v613
  %v829 = vpop.f32.mrb[0].mxu0
  %v830 = vadd.f32 %v604, %v829
  %v831 = vpop.f32.mrb[0].mxu0
  %832 = vmatprep.mubr.f32.mxu0 0.0
  %833 = vmatmul.mubr.f32.gmra.mrb[0].mxu0 %v616
  %v834 = vpop.f32.mrb[0].mxu0
  %v835 = vadd.f32 %v604, %v834
  %v836 = vpop.f32.mrb[0].mxu0
  %837 = vmatprep.mubr.f32.mxu0 0.0
  %838 = vmatmul.mubr.f32.gmra.mrb[0].mxu0 %v619
  %v839 = vpop.f32.mrb[0].mxu0
  %v840 = vadd.f32 %v604, %v839
  %v841 = vpop.f32.mrb[0].mxu0
  %842 = vmatprep.mubr.f32.mxu0 0.0
  %843 = vmatmul.mubr.f32.gmra.mrb[0].mxu0 %v622
  %v844 = vpop.f32.mrb[0].mxu0
  %v845 = vadd.f32 %v604, %v844
  %v846 = vpop.f32.mrb[0].mxu0
  %847 = vmatprep.mubr.f32.mxu0 0.0
  %848 = vmatmul.mubr.f32.gmra.mrb[0].mxu0 %v625
  %v849 = vpop.f32.mrb[0].mxu0
  %v850 = vadd.f32 %v604, %v849
  %v851 = vpop.f32.mrb[0].mxu0
  %852 = vmatprep.mubr.f32.mxu0 0.0
  %853 = vmatmul.mubr.f32.gmra.mrb[0].mxu0 %v628
  %v854 = vpop.f32.mrb[0].mxu0
  %v855 = vadd.f32 %v604, %v854
  %v856 = vpop.f32.mrb[0].mxu0
  %857 = vmatprep.mubr.f32.mxu0 0.0
  %858 = vmatmul.mubr.f32.gmra.mrb[0].mxu0 %v631
  %v859 = vpop.f32.mrb[0].mxu0
  %v860 = vadd.f32 %v604, %v859
  %v861 = vpop.f32.mrb[0].mxu0
  %862 = vmatprep.mubr.f32.mxu0 0.0
  %863 = vmatmul.mubr.f32.gmra.mrb[0].mxu0 %v634
  %v864 = vpop.f32.mrb[0].mxu0
  %v865 = vadd.f32 %v604, %v864
  %v866 = vpop.f32.mrb[0].mxu0
  %867 = vmatprep.mubr.f32.mxu0 0.0
  %868 = vmatmul.mubr.f32.gmra.mrb[0].mxu0 %v637
  %v869 = vpop.f32.mrb[0].mxu0
  %v870 = vadd.f32 %v604, %v869
  %v871 = vpop.f32.mrb[0].mxu0
  %872 = vmatprep.mubr.f32.mxu0 0.0
  %873 = vmatmul.mubr.f32.gmra.mrb[0].mxu0 %v640
  %v874 = vpop.f32.mrb[0].mxu0
  %v875 = vadd.f32 %v604, %v874
  %v876 = vpop.f32.mrb[0].mxu0
  %877 = vmatprep.mubr.f32.mxu0 0.0
  %878 = vmatmul.mubr.f32.gmra.mrb[0].mxu0 %v643
  %v879 = vpop.f32.mrb[0].mxu0
  %v880 = vadd.f32 %v604, %v879
  %v881 = vpop.f32.mrb[0].mxu0
  %882 = vmatprep.mubr.f32.mxu0 0.0
  %883 = vmatmul.mubr.f32.gmra.mrb[0].mxu0 %v646
  %v884 = vpop.f32.mrb[0].mxu0
  %v885 = vadd.f32 %v604, %v884
  %v886 = vpop.f32.mrb[0].mxu0
  %887 = vmatprep.mubr.f32.mxu0 0.0
  %888 = vmatmul.mubr.f32.gmra.mrb[0].mxu0 %v649
  %v889 = vpop.f32.mrb[0].mxu0
  %v890 = vadd.f32 %v604, %v889
  %v891 = vpop.f32.mrb[0].mxu0
  %892 = vmatprep.mubr.f32.mxu0 0.0
  %893 = vmatmul.mubr.f32.gmra.mrb[0].mxu0 %v652
  %v894 = vpop.f32.mrb[0].mxu0
  %v895 = vadd.f32 %v604, %v894
  %v896 = vpop.f32.mrb[0].mxu0
  %897 = vmatprep.mubr.f32.mxu0 0.0
  %898 = vmatmul.mubr.f32.gmra.mrb[0].mxu0 %v655
  %v899 = vpop.f32.mrb[0].mxu0
  %v900 = vadd.f32 %v604, %v899
  %v901 = vpop.f32.mrb[0].mxu0
  %902 = vmatprep.mubr.f32.mxu0 0.0
  %903 = vmatmul.mubr.f32.gmra.mrb[0].mxu0 %v658
  %v904 = vpop.f32.mrb[0].mxu0
  %v905 = vadd.f32 %v604, %v904
  %v906 = vpop.f32.mrb[0].mxu0
  %907 = vmatprep.mubr.f32.mxu0 0.0
  %908 = vmatmul.mubr.f32.gmra.mrb[0].mxu0 %v661
  %v909 = vpop.f32.mrb[0].mxu0
  %v910 = vadd.f32 %v604, %v909
  %v911 = vpop.f32.mrb[0].mxu0
  %912 = vmatprep.mubr.f32.mxu0 0.0
  %913 = vmatmul.mubr.f32.gmra.mrb[0].mxu0 %v664
  %v914 = vpop.f32.mrb[0].mxu0
  %v915 = vadd.f32 %v604, %v914
  %v916 = vpop.f32.mrb[0].mxu0
  %917 = vmatprep.mubr.f32.mxu0 0.0
  %918 = vmatmul.mubr.f32.gmra.mrb[0].mxu0 %v667
  %v919 = vpop.f32.mrb[0].mxu0
  %v920 = vadd.f32 %v604, %v919
  %v921 = vpop.f32.mrb[0].mxu0
  %922 = vmatprep.mubr.f32.mxu0 0.0
  %923 = vmatmul.mubr.f32.gmra.mrb[0].mxu0 %v670
  %v924 = vpop.f32.mrb[0].mxu0
  %v925 = vadd.f32 %v604, %v924
  %v926 = vpop.f32.mrb[0].mxu0
  %927 = vmatprep.mubr.f32.mxu0 0.0
  %928 = vmatmul.mubr.f32.gmra.mrb[0].mxu0 %v673
  %v929 = vpop.f32.mrb[0].mxu0
  %v930 = vadd.f32 %v604, %v929
  %v931 = vpop.f32.mrb[0].mxu0
  %932 = vmatprep.mubr.f32.mxu0 0.0
  %933 = vmatmul.mubr.f32.gmra.mrb[0].mxu0 %v676
  %v934 = vpop.f32.mrb[0].mxu0
  %v935 = vadd.f32 %v604, %v934
  %v936 = vpop.f32.mrb[0].mxu0
  %937 = vmatprep.mubr.f32.mxu0 0.0
  %938 = vmatmul.mubr.f32.gmra.mrb[0].mxu0 %v679
  %v939 = vpop.f32.mrb[0].mxu0
  %v940 = vadd.f32 %v604, %v939
  %v941 = vpop.f32.mrb[0].mxu0
  %942 = vmatprep.mubr.f32.mxu0 0.0
  %943 = vmatmul.mubr.f32.gmra.mrb[0].mxu0 %v682
  %v944 = vpop.f32.mrb[0].mxu0
  %v945 = vadd.f32 %v604, %v944
  %v946 = vpop.f32.mrb[0].mxu0
  %947 = vmatprep.mubr.f32.mxu0 0.0
  %948 = vmatmul.mubr.f32.gmra.mrb[0].mxu0 %v685
  %v949 = vpop.f32.mrb[0].mxu0
  %v950 = vadd.f32 %v604, %v949
  %v951 = vpop.f32.mrb[0].mxu0
  %952 = vmatprep.mubr.f32.mxu0 0.0
  %953 = vmatmul.mubr.f32.gmra.mrb[0].mxu0 %v688
  %v954 = vpop.f32.mrb[0].mxu0
  %v955 = vadd.f32 %v604, %v954
  %v956 = vpop.f32.mrb[0].mxu0
  %957 = vmatprep.mubr.f32.mxu0 0.0
  %958 = vmatmul.mubr.f32.gmra.mrb[0].mxu0 %v691
  %v959 = vpop.f32.mrb[0].mxu0
  %v960 = vadd.f32 %v604, %v959
  %v961 = vpop.f32.mrb[0].mxu0
  %962 = vmatprep.mubr.f32.mxu0 0.0
  %963 = vmatmul.mubr.f32.gmra.mrb[0].mxu0 %v694
  %v964 = vpop.f32.mrb[0].mxu0
  %v965 = vadd.f32 %v604, %v964
  %v966 = vpop.f32.mrb[0].mxu0
  %967 = vmatprep.mubr.f32.mxu0 0.0
  %968 = vmatmul.mubr.f32.gmra.mrb[0].mxu0 %v697
  %v969 = vpop.f32.mrb[0].mxu0
  %v970 = vadd.f32 %v604, %v969
  %v971 = vpop.f32.mrb[0].mxu0
  %972 = vmatprep.mubr.f32.mxu0 0.0
  %973 = vmatmul.mubr.f32.gmra.mrb[0].mxu0 %v700
  %v974 = vpop.f32.mrb[0].mxu0
  %v975 = vadd.f32 %v604, %v974
  %v976 = vpop.f32.mrb[0].mxu0
  %977 = vmatprep.mubr.f32.mxu0 0.0
  %978 = vmatmul.mubr.f32.gmra.mrb[0].mxu0 %v703
  %v979 = vpop.f32.mrb[0].mxu0
  %v980 = vadd.f32 %v604, %v979
  %v981 = vpop.f32.mrb[0].mxu0
  %982 = vmatprep.mubr.f32.mxu0 0.0
  %983 = vmatmul.mubr.f32.gmra.mrb[0].mxu0 %v706
  %v984 = vpop.f32.mrb[0].mxu0
  %v985 = vadd.f32 %v604, %v984
  %v986 = vpop.f32.mrb[0].mxu0
  %987 = vmatprep.mubr.f32.mxu0 0.0
  %988 = vmatmul.mubr.f32.gmra.mrb[0].mxu0 %v709
  %v989 = vpop.f32.mrb[0].mxu0
  %v990 = vadd.f32 %v604, %v989
  %v991 = vpop.f32.mrb[0].mxu0
  %992 = vmatprep.mubr.f32.mxu0 0.0
  %993 = vmatmul.mubr.f32.gmra.mrb[0].mxu0 %v712
  %v994 = vpop.f32.mrb[0].mxu0
  %v995 = vadd.f32 %v604, %v994
  %v996 = vpop.f32.mrb[0].mxu0
  %997 = vmatprep.mubr.f32.mxu0 0.0
  %998 = vmatmul.mubr.f32.gmra.mrb[0].mxu0 %v715
  %v999 = vpop.f32.mrb[0].mxu0
  %v1000 = vadd.f32 %v604, %v999
  %v1001 = vpop.f32.mrb[0].mxu0
  %1002 = vmatprep.mubr.f32.mxu0 0.0
  %1003 = vmatmul.mubr.f32.gmra.mrb[0].mxu0 %v718
  %v1004 = vpop.f32.mrb[0].mxu0
  %v1005 = vadd.f32 %v604, %v1004
  %v1006 = vpop.f32.mrb[0].mxu0
  %1007 = vmatprep.mubr.f32.mxu0 0.0
  %1008 = vmatmul.mubr.f32.gmra.mrb[0].mxu0 %v721
  %v1009 = vpop.f32.mrb[0].mxu0
  %v1010 = vadd.f32 %v604, %v1009
  %v1011 = vpop.f32.mrb[0].mxu0
  %1012 = vmatprep.mubr.f32.mxu0 0.0
  %1013 = vmatmul.mubr.f32.gmra.mrb[0].mxu0 %v724
  %v1014 = vpop.f32.mrb[0].mxu0
  %v1015 = vadd.f32 %v604, %v1014
  %v1016 = vpop.f32.mrb[0].mxu0
  %1017 = vmatprep.mubr.f32.mxu0 0.0
  %1018 = vmatmul.mubr.f32.gmra.mrb[0].mxu0 %v727
  %v1019 = vpop.f32.mrb[0].mxu0
  %v1020 = vadd.f32 %v604, %v1019
  %v1021 = vpop.f32.mrb[0].mxu0
  %1022 = vmatprep.mubr.f32.mxu0 0.0
  %1023 = vmatmul.mubr.f32.gmra.mrb[0].mxu0 %v730
  %v1024 = vpop.f32.mrb[0].mxu0
  %v1025 = vadd.f32 %v604, %v1024
  %v1026 = vpop.f32.mrb[0].mxu0
  %1027 = vmatprep.mubr.f32.mxu0 0.0
  %1028 = vmatmul.mubr.f32.gmra.mrb[0].mxu0 %v733
  %v1029 = vpop.f32.mrb[0].mxu0
  %v1030 = vadd.f32 %v604, %v1029
  %v1031 = vpop.f32.mrb[0].mxu0
  %1032 = vmatprep.mubr.f32.mxu0 0.0
  %1033 = vmatmul.mubr.f32.gmra.mrb[0].mxu0 %v736
  %v1034 = vpop.f32.mrb[0].mxu0
  %v1035 = vadd.f32 %v604, %v1034
  %v1036 = vpop.f32.mrb[0].mxu0
  %1037 = vmatprep.mubr.f32.mxu0 0.0
  %1038 = vmatmul.mubr.f32.gmra.mrb[0].mxu0 %v739
  %v1039 = vpop.f32.mrb[0].mxu0
  %v1040 = vadd.f32 %v604, %v1039
  %v1041 = vpop.f32.mrb[0].mxu0
  %1042 = vmatprep.mubr.f32.mxu0 0.0
  %1043 = vmatmul.mubr.f32.gmra.mrb[0].mxu0 %v742
  %v1044 = vpop.f32.mrb[0].mxu0
  %v1045 = vadd.f32 %v604, %v1044
  %v1046 = vpop.f32.mrb[0].mxu0
  %1047 = vmatprep.mubr.f32.mxu0 0.0
  %1048 = vmatmul.mubr.f32.gmra.mrb[0].mxu0 %v745
  %v1049 = vpop.f32.mrb[0].mxu0
  %v1050 = vadd.f32 %v604, %v1049
  %v1051 = vpop.f32.mrb[0].mxu0
  %1052 = vmatprep.mubr.f32.mxu0 0.0
  %1053 = vmatmul.mubr.f32.gmra.mrb[0].mxu0 %v748
  %v1054 = vpop.f32.mrb[0].mxu0
  %v1055 = vadd.f32 %v604, %v1054
  %v1056 = vpop.f32.mrb[0].mxu0
  %1057 = vmatprep.mubr.f32.mxu0 0.0
  %1058 = vmatmul.mubr.f32.gmra.mrb[0].mxu0 %v751
  %v1059 = vpop.f32.mrb[0].mxu0
  %v1060 = vadd.f32 %v604, %v1059
  %v1061 = vpop.f32.mrb[0].mxu0
  %1062 = vdwg.mxu0
  %vm1063 = vcmask 130048
  %v1064 = vsel %vm1063, %v820, 0.0
  %v1065 = vsel %vm1063, %v825, 0.0
  %v1066 = vadd.f32 %v1064, %v1065
  %v1067 = vsel %vm1063, %v830, 0.0
  %v1068 = vadd.f32 %v1066, %v1067
  %v1069 = vsel %vm1063, %v835, 0.0
  %v1070 = vadd.f32 %v1068, %v1069
  %v1071 = vsel %vm1063, %v840, 0.0
  %v1072 = vadd.f32 %v1070, %v1071
  %v1073 = vsel %vm1063, %v845, 0.0
  %v1074 = vadd.f32 %v1072, %v1073
  %v1075 = vsel %vm1063, %v850, 0.0
  %v1076 = vadd.f32 %v1074, %v1075
  %v1077 = vsel %vm1063, %v855, 0.0
  %v1078 = vadd.f32 %v1076, %v1077
  %v1079 = vsel %vm1063, %v860, 0.0
  %v1080 = vadd.f32 %v1078, %v1079
  %v1081 = vsel %vm1063, %v865, 0.0
  %v1082 = vadd.f32 %v1080, %v1081
  %v1083 = vsel %vm1063, %v870, 0.0
  %v1084 = vadd.f32 %v1082, %v1083
  %v1085 = vsel %vm1063, %v875, 0.0
  %v1086 = vadd.f32 %v1084, %v1085
  %v1087 = vsel %vm1063, %v880, 0.0
  %v1088 = vadd.f32 %v1086, %v1087
  %v1089 = vsel %vm1063, %v885, 0.0
  %v1090 = vadd.f32 %v1088, %v1089
  %v1091 = vsel %vm1063, %v890, 0.0
  %v1092 = vadd.f32 %v1090, %v1091
  %v1093 = vsel %vm1063, %v895, 0.0
  %v1094 = vadd.f32 %v1092, %v1093
  %v1095 = vsel %vm1063, %v900, 0.0
  %v1096 = vadd.f32 %v1094, %v1095
  %v1097 = vsel %vm1063, %v905, 0.0
  %v1098 = vadd.f32 %v1096, %v1097
  %v1099 = vsel %vm1063, %v910, 0.0
  %v1100 = vadd.f32 %v1098, %v1099
  %v1101 = vsel %vm1063, %v915, 0.0
  %v1102 = vadd.f32 %v1100, %v1101
  %v1103 = vsel %vm1063, %v920, 0.0
  %v1104 = vadd.f32 %v1102, %v1103
  %v1105 = vsel %vm1063, %v925, 0.0
  %v1106 = vadd.f32 %v1104, %v1105
  %v1107 = vsel %vm1063, %v930, 0.0
  %v1108 = vadd.f32 %v1106, %v1107
  %v1109 = vsel %vm1063, %v935, 0.0
  %v1110 = vadd.f32 %v1108, %v1109
  %v1111 = vsel %vm1063, %v940, 0.0
  %v1112 = vadd.f32 %v1110, %v1111
  %v1113 = vsel %vm1063, %v945, 0.0
  %v1114 = vadd.f32 %v1112, %v1113
  %v1115 = vsel %vm1063, %v950, 0.0
  %v1116 = vadd.f32 %v1114, %v1115
  %v1117 = vsel %vm1063, %v955, 0.0
  %v1118 = vadd.f32 %v1116, %v1117
  %v1119 = vsel %vm1063, %v960, 0.0
  %v1120 = vadd.f32 %v1118, %v1119
  %v1121 = vsel %vm1063, %v965, 0.0
  %v1122 = vadd.f32 %v1120, %v1121
  %v1123 = vsel %vm1063, %v970, 0.0
  %v1124 = vadd.f32 %v1122, %v1123
  %v1125 = vsel %vm1063, %v975, 0.0
  %v1126 = vadd.f32 %v1124, %v1125
  %v1127 = vsel %vm1063, %v980, 0.0
  %v1128 = vadd.f32 %v1126, %v1127
  %v1129 = vsel %vm1063, %v985, 0.0
  %v1130 = vadd.f32 %v1128, %v1129
  %v1131 = vsel %vm1063, %v990, 0.0
  %v1132 = vadd.f32 %v1130, %v1131
  %v1133 = vsel %vm1063, %v995, 0.0
  %v1134 = vadd.f32 %v1132, %v1133
  %v1135 = vsel %vm1063, %v1000, 0.0
  %v1136 = vadd.f32 %v1134, %v1135
  %v1137 = vsel %vm1063, %v1005, 0.0
  %v1138 = vadd.f32 %v1136, %v1137
  %v1139 = vsel %vm1063, %v1010, 0.0
  %v1140 = vadd.f32 %v1138, %v1139
  %v1141 = vsel %vm1063, %v1015, 0.0
  %v1142 = vadd.f32 %v1140, %v1141
  %v1143 = vsel %vm1063, %v1020, 0.0
  %v1144 = vadd.f32 %v1142, %v1143
  %v1145 = vsel %vm1063, %v1025, 0.0
  %v1146 = vadd.f32 %v1144, %v1145
  %v1147 = vsel %vm1063, %v1030, 0.0
  %v1148 = vadd.f32 %v1146, %v1147
  %v1149 = vsel %vm1063, %v1035, 0.0
  %v1150 = vadd.f32 %v1148, %v1149
  %v1151 = vsel %vm1063, %v1040, 0.0
  %v1152 = vadd.f32 %v1150, %v1151
  %v1153 = vsel %vm1063, %v1045, 0.0
  %v1154 = vadd.f32 %v1152, %v1153
  %v1155 = vsel %vm1063, %v1050, 0.0
  %v1156 = vadd.f32 %v1154, %v1155
  %v1157 = vsel %vm1063, %v1055, 0.0
  %v1158 = vadd.f32 %v1156, %v1157
  %v1159 = vsel %vm1063, %v1060, 0.0
  %v1160 = vadd.f32 %v1158, %v1159
  %v1161 = vrot.slane %v1160, 4
  %v1162 = vadd.f32 %v1160, %v1161
  %v1163 = vrot.slane %v1162, 2
  %v1164 = vadd.f32 %v1162, %v1163
  %v1165 = vrot.slane %v1164, 1
  %v1166 = vadd.f32 %v1164, %v1165
  %v1167 = vmul.f32 %v1166, %v179
  %v1168 = vsub.f32 %v820, %v1167
  %v1169 = vsub.f32 %v825, %v1167
  %v1170 = vsub.f32 %v830, %v1167
  %v1171 = vsub.f32 %v835, %v1167
  %v1172 = vsub.f32 %v840, %v1167
  %v1173 = vsub.f32 %v845, %v1167
  %v1174 = vsub.f32 %v850, %v1167
  %v1175 = vsub.f32 %v855, %v1167
  %v1176 = vsub.f32 %v860, %v1167
  %v1177 = vsub.f32 %v865, %v1167
  %v1178 = vsub.f32 %v870, %v1167
  %v1179 = vsub.f32 %v875, %v1167
  %v1180 = vsub.f32 %v880, %v1167
  %v1181 = vsub.f32 %v885, %v1167
  %v1182 = vsub.f32 %v890, %v1167
  %v1183 = vsub.f32 %v895, %v1167
  %v1184 = vsub.f32 %v900, %v1167
  %v1185 = vsub.f32 %v905, %v1167
  %v1186 = vsub.f32 %v910, %v1167
  %v1187 = vsub.f32 %v915, %v1167
  %v1188 = vsub.f32 %v920, %v1167
  %v1189 = vsub.f32 %v925, %v1167
  %v1190 = vsub.f32 %v930, %v1167
  %v1191 = vsub.f32 %v935, %v1167
  %v1192 = vsub.f32 %v940, %v1167
  %v1193 = vsub.f32 %v945, %v1167
  %v1194 = vsub.f32 %v950, %v1167
  %v1195 = vsub.f32 %v955, %v1167
  %v1196 = vsub.f32 %v960, %v1167
  %v1197 = vsub.f32 %v965, %v1167
  %v1198 = vsub.f32 %v970, %v1167
  %v1199 = vsub.f32 %v975, %v1167
  %v1200 = vsub.f32 %v980, %v1167
  %v1201 = vsub.f32 %v985, %v1167
  %v1202 = vsub.f32 %v990, %v1167
  %v1203 = vsub.f32 %v995, %v1167
  %v1204 = vsub.f32 %v1000, %v1167
  %v1205 = vsub.f32 %v1005, %v1167
  %v1206 = vsub.f32 %v1010, %v1167
  %v1207 = vsub.f32 %v1015, %v1167
  %v1208 = vsub.f32 %v1020, %v1167
  %v1209 = vsub.f32 %v1025, %v1167
  %v1210 = vsub.f32 %v1030, %v1167
  %v1211 = vsub.f32 %v1035, %v1167
  %v1212 = vsub.f32 %v1040, %v1167
  %v1213 = vsub.f32 %v1045, %v1167
  %v1214 = vsub.f32 %v1050, %v1167
  %v1215 = vsub.f32 %v1055, %v1167
  %v1216 = vsub.f32 %v1060, %v1167
  %v1217 = vmul.f32 %v1168, %v1168
  %v1218 = vmul.f32 %v1169, %v1169
  %v1219 = vmul.f32 %v1170, %v1170
  %v1220 = vmul.f32 %v1171, %v1171
  %v1221 = vmul.f32 %v1172, %v1172
  %v1222 = vmul.f32 %v1173, %v1173
  %v1223 = vmul.f32 %v1174, %v1174
  %v1224 = vmul.f32 %v1175, %v1175
  %v1225 = vmul.f32 %v1176, %v1176
  %v1226 = vmul.f32 %v1177, %v1177
  %v1227 = vmul.f32 %v1178, %v1178
  %v1228 = vmul.f32 %v1179, %v1179
  %v1229 = vmul.f32 %v1180, %v1180
  %v1230 = vmul.f32 %v1181, %v1181
  %v1231 = vmul.f32 %v1182, %v1182
  %v1232 = vmul.f32 %v1183, %v1183
  %v1233 = vmul.f32 %v1184, %v1184
  %v1234 = vmul.f32 %v1185, %v1185
  %v1235 = vmul.f32 %v1186, %v1186
  %v1236 = vmul.f32 %v1187, %v1187
  %v1237 = vmul.f32 %v1188, %v1188
  %v1238 = vmul.f32 %v1189, %v1189
  %v1239 = vmul.f32 %v1190, %v1190
  %v1240 = vmul.f32 %v1191, %v1191
  %v1241 = vmul.f32 %v1192, %v1192
  %v1242 = vmul.f32 %v1193, %v1193
  %v1243 = vmul.f32 %v1194, %v1194
  %v1244 = vmul.f32 %v1195, %v1195
  %v1245 = vmul.f32 %v1196, %v1196
  %v1246 = vmul.f32 %v1197, %v1197
  %v1247 = vmul.f32 %v1198, %v1198
  %v1248 = vmul.f32 %v1199, %v1199
  %v1249 = vmul.f32 %v1200, %v1200
  %v1250 = vmul.f32 %v1201, %v1201
  %v1251 = vmul.f32 %v1202, %v1202
  %v1252 = vmul.f32 %v1203, %v1203
  %v1253 = vmul.f32 %v1204, %v1204
  %v1254 = vmul.f32 %v1205, %v1205
  %v1255 = vmul.f32 %v1206, %v1206
  %v1256 = vmul.f32 %v1207, %v1207
  %v1257 = vmul.f32 %v1208, %v1208
  %v1258 = vmul.f32 %v1209, %v1209
  %v1259 = vmul.f32 %v1210, %v1210
  %v1260 = vmul.f32 %v1211, %v1211
  %v1261 = vmul.f32 %v1212, %v1212
  %v1262 = vmul.f32 %v1213, %v1213
  %v1263 = vmul.f32 %v1214, %v1214
  %v1264 = vmul.f32 %v1215, %v1215
  %v1265 = vmul.f32 %v1216, %v1216
  %v1266 = vsel %vm1063, %v1217, 0.0
  %v1267 = vsel %vm1063, %v1218, 0.0
  %v1268 = vadd.f32 %v1266, %v1267
  %v1269 = vsel %vm1063, %v1219, 0.0
  %v1270 = vadd.f32 %v1268, %v1269
  %v1271 = vsel %vm1063, %v1220, 0.0
  %v1272 = vadd.f32 %v1270, %v1271
  %v1273 = vsel %vm1063, %v1221, 0.0
  %v1274 = vadd.f32 %v1272, %v1273
  %v1275 = vsel %vm1063, %v1222, 0.0
  %v1276 = vadd.f32 %v1274, %v1275
  %v1277 = vsel %vm1063, %v1223, 0.0
  %v1278 = vadd.f32 %v1276, %v1277
  %v1279 = vsel %vm1063, %v1224, 0.0
  %v1280 = vadd.f32 %v1278, %v1279
  %v1281 = vsel %vm1063, %v1225, 0.0
  %v1282 = vadd.f32 %v1280, %v1281
  %v1283 = vsel %vm1063, %v1226, 0.0
  %v1284 = vadd.f32 %v1282, %v1283
  %v1285 = vsel %vm1063, %v1227, 0.0
  %v1286 = vadd.f32 %v1284, %v1285
  %v1287 = vsel %vm1063, %v1228, 0.0
  %v1288 = vadd.f32 %v1286, %v1287
  %v1289 = vsel %vm1063, %v1229, 0.0
  %v1290 = vadd.f32 %v1288, %v1289
  %v1291 = vsel %vm1063, %v1230, 0.0
  %v1292 = vadd.f32 %v1290, %v1291
  %v1293 = vsel %vm1063, %v1231, 0.0
  %v1294 = vadd.f32 %v1292, %v1293
  %v1295 = vsel %vm1063, %v1232, 0.0
  %v1296 = vadd.f32 %v1294, %v1295
  %v1297 = vsel %vm1063, %v1233, 0.0
  %v1298 = vadd.f32 %v1296, %v1297
  %v1299 = vsel %vm1063, %v1234, 0.0
  %v1300 = vadd.f32 %v1298, %v1299
  %v1301 = vsel %vm1063, %v1235, 0.0
  %v1302 = vadd.f32 %v1300, %v1301
  %v1303 = vsel %vm1063, %v1236, 0.0
  %v1304 = vadd.f32 %v1302, %v1303
  %v1305 = vsel %vm1063, %v1237, 0.0
  %v1306 = vadd.f32 %v1304, %v1305
  %v1307 = vsel %vm1063, %v1238, 0.0
  %v1308 = vadd.f32 %v1306, %v1307
  %v1309 = vsel %vm1063, %v1239, 0.0
  %v1310 = vadd.f32 %v1308, %v1309
  %v1311 = vsel %vm1063, %v1240, 0.0
  %v1312 = vadd.f32 %v1310, %v1311
  %v1313 = vsel %vm1063, %v1241, 0.0
  %v1314 = vadd.f32 %v1312, %v1313
  %v1315 = vsel %vm1063, %v1242, 0.0
  %v1316 = vadd.f32 %v1314, %v1315
  %v1317 = vsel %vm1063, %v1243, 0.0
  %v1318 = vadd.f32 %v1316, %v1317
  %v1319 = vsel %vm1063, %v1244, 0.0
  %v1320 = vadd.f32 %v1318, %v1319
  %v1321 = vsel %vm1063, %v1245, 0.0
  %v1322 = vadd.f32 %v1320, %v1321
  %v1323 = vsel %vm1063, %v1246, 0.0
  %v1324 = vadd.f32 %v1322, %v1323
  %v1325 = vsel %vm1063, %v1247, 0.0
  %v1326 = vadd.f32 %v1324, %v1325
  %v1327 = vsel %vm1063, %v1248, 0.0
  %v1328 = vadd.f32 %v1326, %v1327
  %v1329 = vsel %vm1063, %v1249, 0.0
  %v1330 = vadd.f32 %v1328, %v1329
  %v1331 = vsel %vm1063, %v1250, 0.0
  %v1332 = vadd.f32 %v1330, %v1331
  %v1333 = vsel %vm1063, %v1251, 0.0
  %v1334 = vadd.f32 %v1332, %v1333
  %v1335 = vsel %vm1063, %v1252, 0.0
  %v1336 = vadd.f32 %v1334, %v1335
  %v1337 = vsel %vm1063, %v1253, 0.0
  %v1338 = vadd.f32 %v1336, %v1337
  %v1339 = vsel %vm1063, %v1254, 0.0
  %v1340 = vadd.f32 %v1338, %v1339
  %v1341 = vsel %vm1063, %v1255, 0.0
  %v1342 = vadd.f32 %v1340, %v1341
  %v1343 = vsel %vm1063, %v1256, 0.0
  %v1344 = vadd.f32 %v1342, %v1343
  %v1345 = vsel %vm1063, %v1257, 0.0
  %v1346 = vadd.f32 %v1344, %v1345
  %v1347 = vsel %vm1063, %v1258, 0.0
  %v1348 = vadd.f32 %v1346, %v1347
  %v1349 = vsel %vm1063, %v1259, 0.0
  %v1350 = vadd.f32 %v1348, %v1349
  %v1351 = vsel %vm1063, %v1260, 0.0
  %v1352 = vadd.f32 %v1350, %v1351
  %v1353 = vsel %vm1063, %v1261, 0.0
  %v1354 = vadd.f32 %v1352, %v1353
  %v1355 = vsel %vm1063, %v1262, 0.0
  %v1356 = vadd.f32 %v1354, %v1355
  %v1357 = vsel %vm1063, %v1263, 0.0
  %v1358 = vadd.f32 %v1356, %v1357
  %v1359 = vsel %vm1063, %v1264, 0.0
  %v1360 = vadd.f32 %v1358, %v1359
  %v1361 = vsel %vm1063, %v1265, 0.0
  %v1362 = vadd.f32 %v1360, %v1361
  %v1363 = vrot.slane %v1362, 4
  %v1364 = vadd.f32 %v1362, %v1363
  %v1365 = vrot.slane %v1364, 2
  %v1366 = vadd.f32 %v1364, %v1365
  %v1367 = vrot.slane %v1366, 1
  %v1368 = vadd.f32 %v1366, %v1367
  %v1369 = vmul.f32 %v1368, %v179
  %v1370 = vadd.f32 %v1369, 1e-05
  %v1371 = vrsqrt.pop %v1370
  %v1372 = vmul.f32 %v1168, %v1371
  %v1373 = vmul.f32 %v1169, %v1371
  %v1374 = vmul.f32 %v1170, %v1371
  %v1375 = vmul.f32 %v1171, %v1371
  %v1376 = vmul.f32 %v1172, %v1371
  %v1377 = vmul.f32 %v1173, %v1371
  %v1378 = vmul.f32 %v1174, %v1371
  %v1379 = vmul.f32 %v1175, %v1371
  %v1380 = vmul.f32 %v1176, %v1371
  %v1381 = vmul.f32 %v1177, %v1371
  %v1382 = vmul.f32 %v1178, %v1371
  %v1383 = vmul.f32 %v1179, %v1371
  %v1384 = vmul.f32 %v1180, %v1371
  %v1385 = vmul.f32 %v1181, %v1371
  %v1386 = vmul.f32 %v1182, %v1371
  %v1387 = vmul.f32 %v1183, %v1371
  %v1388 = vmul.f32 %v1184, %v1371
  %v1389 = vmul.f32 %v1185, %v1371
  %v1390 = vmul.f32 %v1186, %v1371
  %v1391 = vmul.f32 %v1187, %v1371
  %v1392 = vmul.f32 %v1188, %v1371
  %v1393 = vmul.f32 %v1189, %v1371
  %v1394 = vmul.f32 %v1190, %v1371
  %v1395 = vmul.f32 %v1191, %v1371
  %v1396 = vmul.f32 %v1192, %v1371
  %v1397 = vmul.f32 %v1193, %v1371
  %v1398 = vmul.f32 %v1194, %v1371
  %v1399 = vmul.f32 %v1195, %v1371
  %v1400 = vmul.f32 %v1196, %v1371
  %v1401 = vmul.f32 %v1197, %v1371
  %v1402 = vmul.f32 %v1198, %v1371
  %v1403 = vmul.f32 %v1199, %v1371
  %v1404 = vmul.f32 %v1200, %v1371
  %v1405 = vmul.f32 %v1201, %v1371
  %v1406 = vmul.f32 %v1202, %v1371
  %v1407 = vmul.f32 %v1203, %v1371
  %v1408 = vmul.f32 %v1204, %v1371
  %v1409 = vmul.f32 %v1205, %v1371
  %v1410 = vmul.f32 %v1206, %v1371
  %v1411 = vmul.f32 %v1207, %v1371
  %v1412 = vmul.f32 %v1208, %v1371
  %v1413 = vmul.f32 %v1209, %v1371
  %v1414 = vmul.f32 %v1210, %v1371
  %v1415 = vmul.f32 %v1211, %v1371
  %v1416 = vmul.f32 %v1212, %v1371
  %v1417 = vmul.f32 %v1213, %v1371
  %v1418 = vmul.f32 %v1214, %v1371
  %v1419 = vmul.f32 %v1215, %v1371
  %v1420 = vmul.f32 %v1216, %v1371
  %v1421 = vld [vmem:[%s5] sm:$0x1]
  %v1423 = vlaneseq
  %v1424 = vshrl.u32 %v1423, 7
  %v1425 = vsub.s32 0, %v1424
  %v1426 = vrot.slane %v1421, %v1425
  %v1428 = vmul.f32 %v1372, %v1426
  %v1429 = vmul.f32 %v1373, %v1426
  %v1430 = vmul.f32 %v1374, %v1426
  %v1431 = vmul.f32 %v1375, %v1426
  %v1432 = vmul.f32 %v1376, %v1426
  %v1433 = vmul.f32 %v1377, %v1426
  %v1434 = vmul.f32 %v1378, %v1426
  %v1435 = vmul.f32 %v1379, %v1426
  %v1436 = vmul.f32 %v1380, %v1426
  %v1437 = vmul.f32 %v1381, %v1426
  %v1438 = vmul.f32 %v1382, %v1426
  %v1439 = vmul.f32 %v1383, %v1426
  %v1440 = vmul.f32 %v1384, %v1426
  %v1441 = vmul.f32 %v1385, %v1426
  %v1442 = vmul.f32 %v1386, %v1426
  %v1443 = vmul.f32 %v1387, %v1426
  %v1444 = vmul.f32 %v1388, %v1426
  %v1445 = vmul.f32 %v1389, %v1426
  %v1446 = vmul.f32 %v1390, %v1426
  %v1447 = vmul.f32 %v1391, %v1426
  %v1448 = vmul.f32 %v1392, %v1426
  %v1449 = vmul.f32 %v1393, %v1426
  %v1450 = vmul.f32 %v1394, %v1426
  %v1451 = vmul.f32 %v1395, %v1426
  %v1452 = vmul.f32 %v1396, %v1426
  %v1453 = vmul.f32 %v1397, %v1426
  %v1454 = vmul.f32 %v1398, %v1426
  %v1455 = vmul.f32 %v1399, %v1426
  %v1456 = vmul.f32 %v1400, %v1426
  %v1457 = vmul.f32 %v1401, %v1426
  %v1458 = vmul.f32 %v1402, %v1426
  %v1459 = vmul.f32 %v1403, %v1426
  %v1460 = vmul.f32 %v1404, %v1426
  %v1461 = vmul.f32 %v1405, %v1426
  %v1462 = vmul.f32 %v1406, %v1426
  %v1463 = vmul.f32 %v1407, %v1426
  %v1464 = vmul.f32 %v1408, %v1426
  %v1465 = vmul.f32 %v1409, %v1426
  %v1466 = vmul.f32 %v1410, %v1426
  %v1467 = vmul.f32 %v1411, %v1426
  %v1468 = vmul.f32 %v1412, %v1426
  %v1469 = vmul.f32 %v1413, %v1426
  %v1470 = vmul.f32 %v1414, %v1426
  %v1471 = vmul.f32 %v1415, %v1426
  %v1472 = vmul.f32 %v1416, %v1426
  %v1473 = vmul.f32 %v1417, %v1426
  %v1474 = vmul.f32 %v1418, %v1426
  %v1475 = vmul.f32 %v1419, %v1426
  %v1476 = vmul.f32 %v1420, %v1426
  %v1477 = vld [vmem:[%s6] sm:$0x1]
  %v1479 = vlaneseq
  %v1480 = vshrl.u32 %v1479, 7
  %v1481 = vsub.s32 0, %v1480
  %v1482 = vrot.slane %v1477, %v1481
  %v1484 = vadd.f32 %v1428, %v1482
  %v1485 = vadd.f32 %v1429, %v1482
  %v1486 = vadd.f32 %v1430, %v1482
  %v1487 = vadd.f32 %v1431, %v1482
  %v1488 = vadd.f32 %v1432, %v1482
  %v1489 = vadd.f32 %v1433, %v1482
  %v1490 = vadd.f32 %v1434, %v1482
  %v1491 = vadd.f32 %v1435, %v1482
  %v1492 = vadd.f32 %v1436, %v1482
  %v1493 = vadd.f32 %v1437, %v1482
  %v1494 = vadd.f32 %v1438, %v1482
  %v1495 = vadd.f32 %v1439, %v1482
  %v1496 = vadd.f32 %v1440, %v1482
  %v1497 = vadd.f32 %v1441, %v1482
  %v1498 = vadd.f32 %v1442, %v1482
  %v1499 = vadd.f32 %v1443, %v1482
  %v1500 = vadd.f32 %v1444, %v1482
  %v1501 = vadd.f32 %v1445, %v1482
  %v1502 = vadd.f32 %v1446, %v1482
  %v1503 = vadd.f32 %v1447, %v1482
  %v1504 = vadd.f32 %v1448, %v1482
  %v1505 = vadd.f32 %v1449, %v1482
  %v1506 = vadd.f32 %v1450, %v1482
  %v1507 = vadd.f32 %v1451, %v1482
  %v1508 = vadd.f32 %v1452, %v1482
  %v1509 = vadd.f32 %v1453, %v1482
  %v1510 = vadd.f32 %v1454, %v1482
  %v1511 = vadd.f32 %v1455, %v1482
  %v1512 = vadd.f32 %v1456, %v1482
  %v1513 = vadd.f32 %v1457, %v1482
  %v1514 = vadd.f32 %v1458, %v1482
  %v1515 = vadd.f32 %v1459, %v1482
  %v1516 = vadd.f32 %v1460, %v1482
  %v1517 = vadd.f32 %v1461, %v1482
  %v1518 = vadd.f32 %v1462, %v1482
  %v1519 = vadd.f32 %v1463, %v1482
  %v1520 = vadd.f32 %v1464, %v1482
  %v1521 = vadd.f32 %v1465, %v1482
  %v1522 = vadd.f32 %v1466, %v1482
  %v1523 = vadd.f32 %v1467, %v1482
  %v1524 = vadd.f32 %v1468, %v1482
  %v1525 = vadd.f32 %v1469, %v1482
  %v1526 = vadd.f32 %v1470, %v1482
  %v1527 = vadd.f32 %v1471, %v1482
  %v1528 = vadd.f32 %v1472, %v1482
  %v1529 = vadd.f32 %v1473, %v1482
  %v1530 = vadd.f32 %v1474, %v1482
  %v1531 = vadd.f32 %v1475, %v1482
  %v1532 = vadd.f32 %v1476, %v1482
  %1533 = vst.msk [vmem:[%s7] sm:$0xff] %vm1063, %v1484
  %1534 = vst.msk [vmem:[%s7 + $0x8] sm:$0xff] %vm1063, %v1485
  %1535 = vst.msk [vmem:[%s7 + $0x10] sm:$0xff] %vm1063, %v1486
  %1536 = vst.msk [vmem:[%s7 + $0x18] sm:$0xff] %vm1063, %v1487
  %1537 = vst.msk [vmem:[%s7 + $0x20] sm:$0xff] %vm1063, %v1488
  %1538 = vst.msk [vmem:[%s7 + $0x28] sm:$0xff] %vm1063, %v1489
  %1539 = vst.msk [vmem:[%s7 + $0x30] sm:$0xff] %vm1063, %v1490
  %1540 = vst.msk [vmem:[%s7 + $0x38] sm:$0xff] %vm1063, %v1491
  %1541 = vst.msk [vmem:[%s7 + $0x40] sm:$0xff] %vm1063, %v1492
  %1542 = vst.msk [vmem:[%s7 + $0x48] sm:$0xff] %vm1063, %v1493
  %1543 = vst.msk [vmem:[%s7 + $0x50] sm:$0xff] %vm1063, %v1494
  %1544 = vst.msk [vmem:[%s7 + $0x58] sm:$0xff] %vm1063, %v1495
  %1545 = vst.msk [vmem:[%s7 + $0x60] sm:$0xff] %vm1063, %v1496
  %1546 = vst.msk [vmem:[%s7 + $0x68] sm:$0xff] %vm1063, %v1497
  %1547 = vst.msk [vmem:[%s7 + $0x70] sm:$0xff] %vm1063, %v1498
  %1548 = vst.msk [vmem:[%s7 + $0x78] sm:$0xff] %vm1063, %v1499
  %1549 = vst.msk [vmem:[%s7 + $0x80] sm:$0xff] %vm1063, %v1500
  %1550 = vst.msk [vmem:[%s7 + $0x88] sm:$0xff] %vm1063, %v1501
  %1551 = vst.msk [vmem:[%s7 + $0x90] sm:$0xff] %vm1063, %v1502
  %1552 = vst.msk [vmem:[%s7 + $0x98] sm:$0xff] %vm1063, %v1503
  %1553 = vst.msk [vmem:[%s7 + $0xa0] sm:$0xff] %vm1063, %v1504
  %1554 = vst.msk [vmem:[%s7 + $0xa8] sm:$0xff] %vm1063, %v1505
  %1555 = vst.msk [vmem:[%s7 + $0xb0] sm:$0xff] %vm1063, %v1506
  %1556 = vst.msk [vmem:[%s7 + $0xb8] sm:$0xff] %vm1063, %v1507
  %1557 = vst.msk [vmem:[%s7 + $0xc0] sm:$0xff] %vm1063, %v1508
  %1558 = vst.msk [vmem:[%s7 + $0xc8] sm:$0xff] %vm1063, %v1509
  %1559 = vst.msk [vmem:[%s7 + $0xd0] sm:$0xff] %vm1063, %v1510
  %1560 = vst.msk [vmem:[%s7 + $0xd8] sm:$0xff] %vm1063, %v1511
  %1561 = vst.msk [vmem:[%s7 + $0xe0] sm:$0xff] %vm1063, %v1512
  %1562 = vst.msk [vmem:[%s7 + $0xe8] sm:$0xff] %vm1063, %v1513
  %1563 = vst.msk [vmem:[%s7 + $0xf0] sm:$0xff] %vm1063, %v1514
  %1564 = vst.msk [vmem:[%s7 + $0xf8] sm:$0xff] %vm1063, %v1515
  %1565 = vst.msk [vmem:[%s7 + $0x100] sm:$0xff] %vm1063, %v1516
  %1566 = vst.msk [vmem:[%s7 + $0x108] sm:$0xff] %vm1063, %v1517
  %1567 = vst.msk [vmem:[%s7 + $0x110] sm:$0xff] %vm1063, %v1518
  %1568 = vst.msk [vmem:[%s7 + $0x118] sm:$0xff] %vm1063, %v1519
  %1569 = vst.msk [vmem:[%s7 + $0x120] sm:$0xff] %vm1063, %v1520
  %1570 = vst.msk [vmem:[%s7 + $0x128] sm:$0xff] %vm1063, %v1521
  %1571 = vst.msk [vmem:[%s7 + $0x130] sm:$0xff] %vm1063, %v1522
  %1572 = vst.msk [vmem:[%s7 + $0x138] sm:$0xff] %vm1063, %v1523
  %1573 = vst.msk [vmem:[%s7 + $0x140] sm:$0xff] %vm1063, %v1524
  %1574 = vst.msk [vmem:[%s7 + $0x148] sm:$0xff] %vm1063, %v1525
  %1575 = vst.msk [vmem:[%s7 + $0x150] sm:$0xff] %vm1063, %v1526
  %1576 = vst.msk [vmem:[%s7 + $0x158] sm:$0xff] %vm1063, %v1527
  %1577 = vst.msk [vmem:[%s7 + $0x160] sm:$0xff] %vm1063, %v1528
  %1578 = vst.msk [vmem:[%s7 + $0x168] sm:$0xff] %vm1063, %v1529
  %1579 = vst.msk [vmem:[%s7 + $0x170] sm:$0xff] %vm1063, %v1530
  %1580 = vst.msk [vmem:[%s7 + $0x178] sm:$0xff] %vm1063, %v1531
  %1581 = vst.msk [vmem:[%s7 + $0x180] sm:$0xff] %vm1063, %v1532
  // Predicated region
  $region30: #{resnet_like_net.13} parent=0 // pred_check
    _
  $region31: #{resnet_like_net.13} parent=0 // pred_check_branch
    %1583 = sbr.rel (0) target = $region33
  $region32: #{resnet_like_net.13} parent=0 // pred_region
    _
  $region33: #{resnet_like_net.13} parent=0 // pred_fallthru
    _
  // Predicated region
  $region34: #{resnet_like_net.13} parent=0 // pred_check
    _
  $region35: #{resnet_like_net.13} parent=0 // pred_check_branch
    %1585 = sbr.rel (0) target = $region37
  $region36: #{resnet_like_net.13} parent=0 // pred_region
    _
  $region37: #{resnet_like_net.13} parent=0 // pred_fallthru
    _

// kernel: resnet_like_net.14
$region0: #{resnet_like_net.14}
  #allocation0 [shape = 'u32[]', space=smem, size = 0x4, offset = 0x4, fixed_abs, tag = 'smem constant byte address 0x4 - core index']
  #allocation1 [shape = 'u32[144,128]{1,0:T(1,128)}', space=vmem, size = 0x12000, scoped, tag = 'internal scratch']
  %s0 = inlined_call_operand.vmem [shape: f32[392,144], index: 0, kind: input, shape index: {}]
  %s1 = inlined_call_operand.vmem [shape: f32[144,32], index: 1, kind: input, shape index: {}]
  %s2 = inlined_call_operand.vmem [shape: f32[1,32], index: 2, kind: input, shape index: {}]
  %s3 = inlined_call_operand.vmem [shape: f32[392,32], index: 3, kind: input, shape index: {}]
  %s4 = inlined_call_operand.vmem [shape: f32[392,32], index: 4, kind: output, shape index: {}]
  %s5 = sld [smem:[#allocation0]]
  $region26: #{resnet_like_net.14} parent=0
    _
  %s7 = ssub.s32 1, %s5
  %s8 = scalar_select 0, %s7, %s5
  // Predicated region
  $region2: #{resnet_like_net.14} parent=0 // pred_check
    _
  $region3: #{resnet_like_net.14} parent=0 // pred_check_branch
    %10 = sbr.rel (0) target = $region5
  $region4: #{resnet_like_net.14} parent=0 // pred_region
    _
  $region5: #{resnet_like_net.14} parent=0 // pred_fallthru
    _
  // Predicated region
  $region6: #{resnet_like_net.14} parent=0 // pred_check
    _
  $region7: #{resnet_like_net.14} parent=0 // pred_check_branch
    %12 = sbr.rel (0) target = $region9
  $region8: #{resnet_like_net.14} parent=0 // pred_region
    _
  $region9: #{resnet_like_net.14} parent=0 // pred_fallthru
    _
  // Predicated region
  $region10: #{resnet_like_net.14} parent=0 // pred_check
    _
  $region11: #{resnet_like_net.14} parent=0 // pred_check_branch
    %14 = sbr.rel (0) target = $region13
  $region12: #{resnet_like_net.14} parent=0 // pred_region
    _
  $region13: #{resnet_like_net.14} parent=0 // pred_fallthru
    _
  // Predicated region
  $region14: #{resnet_like_net.14} parent=0 // pred_check
    _
  $region15: #{resnet_like_net.14} parent=0 // pred_check_branch
    %16 = sbr.rel (0) target = $region17
  $region16: #{resnet_like_net.14} parent=0 // pred_region
    _
  $region17: #{resnet_like_net.14} parent=0 // pred_fallthru
    _
  %v17 = vld [vmem:[%s0] sm:$0xff]
  %v18 = vld [vmem:[%s0 + $0x8] sm:$0xff]
  %v19 = vld [vmem:[%s0 + $0x10] sm:$0xff]
  %v20 = vld [vmem:[%s0 + $0x18] sm:$0xff]
  %v21 = vld [vmem:[%s0 + $0x20] sm:$0xff]
  %v22 = vld [vmem:[%s0 + $0x28] sm:$0xff]
  %v23 = vld [vmem:[%s0 + $0x30] sm:$0xff]
  %v24 = vld [vmem:[%s0 + $0x38] sm:$0xff]
  %v25 = vld [vmem:[%s0 + $0x40] sm:$0xff]
  %v26 = vld [vmem:[%s0 + $0x48] sm:$0xff]
  %v27 = vld [vmem:[%s0 + $0x50] sm:$0xff]
  %v28 = vld [vmem:[%s0 + $0x58] sm:$0xff]
  %v29 = vld [vmem:[%s0 + $0x60] sm:$0xff]
  %v30 = vld [vmem:[%s0 + $0x68] sm:$0xff]
  %v31 = vld [vmem:[%s0 + $0x70] sm:$0xff]
  %v32 = vld [vmem:[%s0 + $0x78] sm:$0xff]
  %v33 = vld [vmem:[%s0 + $0x80] sm:$0xff]
  %v34 = vld [vmem:[%s0 + $0x88] sm:$0xff]
  %v35 = vld [vmem:[%s0 + $0x90] sm:$0xff]
  %v36 = vld [vmem:[%s0 + $0x98] sm:$0xff]
  %v37 = vld [vmem:[%s0 + $0xa0] sm:$0xff]
  %v38 = vld [vmem:[%s0 + $0xa8] sm:$0xff]
  %v39 = vld [vmem:[%s0 + $0xb0] sm:$0xff]
  %v40 = vld [vmem:[%s0 + $0xb8] sm:$0xff]
  %v41 = vld [vmem:[%s0 + $0xc0] sm:$0xff]
  %v42 = vld [vmem:[%s0 + $0xc8] sm:$0xff]
  %v43 = vld [vmem:[%s0 + $0xd0] sm:$0xff]
  %v44 = vld [vmem:[%s0 + $0xd8] sm:$0xff]
  %v45 = vld [vmem:[%s0 + $0xe0] sm:$0xff]
  %v46 = vld [vmem:[%s0 + $0xe8] sm:$0xff]
  %v47 = vld [vmem:[%s0 + $0xf0] sm:$0xff]
  %v48 = vld [vmem:[%s0 + $0xf8] sm:$0xff]
  %v49 = vld [vmem:[%s0 + $0x100] sm:$0xff]
  %v50 = vld [vmem:[%s0 + $0x108] sm:$0xff]
  %v51 = vld [vmem:[%s0 + $0x110] sm:$0xff]
  %v52 = vld [vmem:[%s0 + $0x118] sm:$0xff]
  %v53 = vld [vmem:[%s0 + $0x120] sm:$0xff]
  %v54 = vld [vmem:[%s0 + $0x128] sm:$0xff]
  %v55 = vld [vmem:[%s0 + $0x130] sm:$0xff]
  %v56 = vld [vmem:[%s0 + $0x138] sm:$0xff]
  %v57 = vld [vmem:[%s0 + $0x140] sm:$0xff]
  %v58 = vld [vmem:[%s0 + $0x148] sm:$0xff]
  %v59 = vld [vmem:[%s0 + $0x150] sm:$0xff]
  %v60 = vld [vmem:[%s0 + $0x158] sm:$0xff]
  %v61 = vld [vmem:[%s0 + $0x160] sm:$0xff]
  %v62 = vld [vmem:[%s0 + $0x168] sm:$0xff]
  %v63 = vld [vmem:[%s0 + $0x170] sm:$0xff]
  %v64 = vld [vmem:[%s0 + $0x178] sm:$0xff]
  %v65 = vld [vmem:[%s0 + $0x180] sm:$0xff]
  %v66 = vld [vmem:[%s0 + $0x188] sm:$0xff]
  %v67 = vld [vmem:[%s0 + $0x190] sm:$0xff]
  %v68 = vld [vmem:[%s0 + $0x198] sm:$0xff]
  %v69 = vld [vmem:[%s0 + $0x1a0] sm:$0xff]
  %v70 = vld [vmem:[%s0 + $0x1a8] sm:$0xff]
  %v71 = vld [vmem:[%s0 + $0x1b0] sm:$0xff]
  %v72 = vld [vmem:[%s0 + $0x1b8] sm:$0xff]
  %v73 = vld [vmem:[%s0 + $0x1c0] sm:$0xff]
  %v74 = vld [vmem:[%s0 + $0x1c8] sm:$0xff]
  %v75 = vld [vmem:[%s0 + $0x1d0] sm:$0xff]
  %v76 = vld [vmem:[%s0 + $0x1d8] sm:$0xff]
  %v77 = vld [vmem:[%s0 + $0x1e0] sm:$0xff]
  %v78 = vld [vmem:[%s0 + $0x1e8] sm:$0xff]
  %v79 = vld [vmem:[%s0 + $0x1f0] sm:$0xff]
  %v80 = vld [vmem:[%s0 + $0x1f8] sm:$0xff]
  %v81 = vld [vmem:[%s0 + $0x200] sm:$0xff]
  %v82 = vld [vmem:[%s0 + $0x208] sm:$0xff]
  %v83 = vld [vmem:[%s0 + $0x210] sm:$0xff]
  %v84 = vld [vmem:[%s0 + $0x218] sm:$0xff]
  %v85 = vld [vmem:[%s0 + $0x220] sm:$0xff]
  %v86 = vld [vmem:[%s0 + $0x228] sm:$0xff]
  %v87 = vld [vmem:[%s0 + $0x230] sm:$0xff]
  %v88 = vld [vmem:[%s0 + $0x238] sm:$0xff]
  %v89 = vld [vmem:[%s0 + $0x240] sm:$0xff]
  %v90 = vld [vmem:[%s0 + $0x248] sm:$0xff]
  %v91 = vld [vmem:[%s0 + $0x250] sm:$0xff]
  %v92 = vld [vmem:[%s0 + $0x258] sm:$0xff]
  %v93 = vld [vmem:[%s0 + $0x260] sm:$0xff]
  %v94 = vld [vmem:[%s0 + $0x268] sm:$0xff]
  %v95 = vld [vmem:[%s0 + $0x270] sm:$0xff]
  %v96 = vld [vmem:[%s0 + $0x278] sm:$0xff]
  %v97 = vld [vmem:[%s0 + $0x280] sm:$0xff]
  %v98 = vld [vmem:[%s0 + $0x288] sm:$0xff]
  %v99 = vld [vmem:[%s0 + $0x290] sm:$0xff]
  %v100 = vld [vmem:[%s0 + $0x298] sm:$0xff]
  %v101 = vld [vmem:[%s0 + $0x2a0] sm:$0xff]
  %v102 = vld [vmem:[%s0 + $0x2a8] sm:$0xff]
  %v103 = vld [vmem:[%s0 + $0x2b0] sm:$0xff]
  %v104 = vld [vmem:[%s0 + $0x2b8] sm:$0xff]
  %v105 = vld [vmem:[%s0 + $0x2c0] sm:$0xff]
  %v106 = vld [vmem:[%s0 + $0x2c8] sm:$0xff]
  %v107 = vld [vmem:[%s0 + $0x2d0] sm:$0xff]
  %v108 = vld [vmem:[%s0 + $0x2d8] sm:$0xff]
  %v109 = vld [vmem:[%s0 + $0x2e0] sm:$0xff]
  %v110 = vld [vmem:[%s0 + $0x2e8] sm:$0xff]
  %v111 = vld [vmem:[%s0 + $0x2f0] sm:$0xff]
  %v112 = vld [vmem:[%s0 + $0x2f8] sm:$0xff]
  %v113 = vld [vmem:[%s0 + $0x300] sm:$0xff]
  %v114 = vld [vmem:[%s0 + $0x308] sm:$0xff]
  %v115 = vld [vmem:[%s1] sm:$0xff]
  %v116 = vld [vmem:[%s1 + $0x8] sm:$0xff]
  %v117 = vld [vmem:[%s1 + $0x10] sm:$0xff]
  %v118 = vld [vmem:[%s1 + $0x18] sm:$0xff]
  %v119 = vld [vmem:[%s1 + $0x20] sm:$0xff]
  %v120 = vld [vmem:[%s1 + $0x28] sm:$0xff]
  %v121 = vld [vmem:[%s1 + $0x30] sm:$0xff]
  %v122 = vld [vmem:[%s1 + $0x38] sm:$0xff]
  %v123 = vld [vmem:[%s1 + $0x40] sm:$0xff]
  %v124 = vld [vmem:[%s1 + $0x48] sm:$0xff]
  %v125 = vld [vmem:[%s1 + $0x50] sm:$0xff]
  %v126 = vld [vmem:[%s1 + $0x58] sm:$0xff]
  %v127 = vld [vmem:[%s1 + $0x60] sm:$0xff]
  %v128 = vld [vmem:[%s1 + $0x68] sm:$0xff]
  %v129 = vld [vmem:[%s1 + $0x70] sm:$0xff]
  %v130 = vld [vmem:[%s1 + $0x78] sm:$0xff]
  %v131 = vld [vmem:[%s1 + $0x80] sm:$0xff]
  %v132 = vld [vmem:[%s1 + $0x88] sm:$0xff]
  %v133 = vld [vmem:[%s2] sm:$0x1]
  %v135 = vlaneseq
  %v136 = vshrl.u32 %v135, 7
  %v137 = vsub.s32 0, %v136
  %v138 = vrot.slane %v133, %v137
  %vm140 = vcmask 130048
  %v142 = vsel %vm140, %v18, 0
  %v145 = vsel %vm140, %v20, 0
  %v148 = vsel %vm140, %v22, 0
  %v151 = vsel %vm140, %v24, 0
  %v154 = vsel %vm140, %v26, 0
  %v157 = vsel %vm140, %v28, 0
  %v160 = vsel %vm140, %v30, 0
  %v163 = vsel %vm140, %v32, 0
  %v166 = vsel %vm140, %v34, 0
  %v169 = vsel %vm140, %v36, 0
  %v172 = vsel %vm140, %v38, 0
  %v175 = vsel %vm140, %v40, 0
  %v178 = vsel %vm140, %v42, 0
  %v181 = vsel %vm140, %v44, 0
  %v184 = vsel %vm140, %v46, 0
  %v187 = vsel %vm140, %v48, 0
  %v190 = vsel %vm140, %v50, 0
  %v193 = vsel %vm140, %v52, 0
  %v196 = vsel %vm140, %v54, 0
  %v199 = vsel %vm140, %v56, 0
  %v202 = vsel %vm140, %v58, 0
  %v205 = vsel %vm140, %v60, 0
  %v208 = vsel %vm140, %v62, 0
  %v211 = vsel %vm140, %v64, 0
  %v214 = vsel %vm140, %v66, 0
  %v217 = vsel %vm140, %v68, 0
  %v220 = vsel %vm140, %v70, 0
  %v223 = vsel %vm140, %v72, 0
  %v226 = vsel %vm140, %v74, 0
  %v229 = vsel %vm140, %v76, 0
  %v232 = vsel %vm140, %v78, 0
  %v235 = vsel %vm140, %v80, 0
  %v238 = vsel %vm140, %v82, 0
  %v241 = vsel %vm140, %v84, 0
  %v244 = vsel %vm140, %v86, 0
  %v247 = vsel %vm140, %v88, 0
  %v250 = vsel %vm140, %v90, 0
  %v253 = vsel %vm140, %v92, 0
  %v256 = vsel %vm140, %v94, 0
  %v259 = vsel %vm140, %v96, 0
  %v262 = vsel %vm140, %v98, 0
  %v265 = vsel %vm140, %v100, 0
  %v268 = vsel %vm140, %v102, 0
  %v271 = vsel %vm140, %v104, 0
  %v274 = vsel %vm140, %v106, 0
  %v277 = vsel %vm140, %v108, 0
  %v280 = vsel %vm140, %v110, 0
  %v283 = vsel %vm140, %v112, 0
  %v286 = vsel %vm140, %v114, 0
  %288 = vmatprep.subr.mxu0 0.0
  %289 = vmatpush1.msra.mxu0 %v115
  %290 = vmatprep.subr.mxu0 0.0
  %291 = vmatpush1.msra.mxu0 %v116
  %292 = vmatprep.subr.mxu0 0.0
  %293 = vmatpush1.msra.mxu0 %v117
  %294 = vmatprep.subr.mxu0 0.0
  %295 = vmatpush1.msra.mxu0 %v118
  %296 = vmatprep.subr.mxu0 0.0
  %297 = vmatpush1.msra.mxu0 %v119
  %298 = vmatprep.subr.mxu0 0.0
  %299 = vmatpush1.msra.mxu0 %v120
  %300 = vmatprep.subr.mxu0 0.0
  %301 = vmatpush1.msra.mxu0 %v121
  %302 = vmatprep.subr.mxu0 0.0
  %303 = vmatpush1.msra.mxu0 %v122
  %304 = vmatprep.subr.mxu0 0.0
  %305 = vmatpush1.msra.mxu0 %v123
  %306 = vmatprep.subr.mxu0 0.0
  %307 = vmatpush1.msra.mxu0 %v124
  %308 = vmatprep.subr.mxu0 0.0
  %309 = vmatpush1.msra.mxu0 %v125
  %310 = vmatprep.subr.mxu0 0.0
  %311 = vmatpush1.msra.mxu0 %v126
  %312 = vmatprep.subr.mxu0 0.0
  %313 = vmatpush1.msra.mxu0 %v127
  %314 = vmatprep.subr.mxu0 0.0
  %315 = vmatpush1.msra.mxu0 %v128
  %316 = vmatprep.subr.mxu0 0.0
  %317 = vmatpush1.msra.mxu0 %v129
  %318 = vmatprep.subr.mxu0 0.0
  %319 = vmatpush1.msra.mxu0 %v130
  %320 = vmatprep.subr.mxu0 0.0
  %321 = vmatpush1.msra.mxu0 %v131
  %322 = vmatprep.subr.mxu0 0.0
  %323 = vmatpush1.msra.mxu0 %v132
  %324 = vmatprep.subr.mxu0 0.0
  %325 = vmatpush1.msra.mxu0 0.0
  %326 = vmatprep.subr.mxu0 0.0
  %327 = vmatpush1.msra.mxu0 0.0
  %328 = vmatprep.subr.mxu0 0.0
  %329 = vmatpush1.msra.mxu0 0.0
  %330 = vmatprep.subr.mxu0 0.0
  %331 = vmatpush1.msra.mxu0 0.0
  %332 = vmatprep.subr.mxu0 0.0
  %333 = vmatpush1.msra.mxu0 0.0
  %334 = vmatprep.subr.mxu0 0.0
  %335 = vmatpush1.msra.mxu0 0.0
  %336 = vmatprep.subr.mxu0 0.0
  %337 = vmatpush1.msra.mxu0 0.0
  %338 = vmatprep.subr.mxu0 0.0
  %339 = vmatpush1.msra.mxu0 0.0
  %340 = vmatprep.subr.mxu0 0.0
  %341 = vmatpush1.msra.mxu0 0.0
  %342 = vmatprep.subr.mxu0 0.0
  %343 = vmatpush1.msra.mxu0 0.0
  %344 = vmatprep.subr.mxu0 0.0
  %345 = vmatpush1.msra.mxu0 0.0
  %346 = vmatprep.subr.mxu0 0.0
  %347 = vmatpush1.msra.mxu0 0.0
  %348 = vmatprep.subr.mxu0 0.0
  %349 = vmatpush1.msra.mxu0 0.0
  %350 = vmatprep.subr.mxu0 0.0
  %351 = vmatpush1.msra.mxu0 0.0
  %352 = vmatprep.mubr.f32.mxu0 %v142
  %353 = vmatmul.mubr.f32.gmra.mrb[0].mxu0 %v17
  %v354 = vpop.f32.mrb[0].mxu0
  %v355 = vadd.f32 %v138, %v354
  %v356 = vpop.f32.mrb[0].mxu0
  %357 = vmatprep.mubr.f32.mxu0 %v145
  %358 = vmatmul.mubr.f32.gmra.mrb[0].mxu0 %v19
  %v359 = vpop.f32.mrb[0].mxu0
  %v360 = vadd.f32 %v138, %v359
  %v361 = vpop.f32.mrb[0].mxu0
  %362 = vmatprep.mubr.f32.mxu0 %v148
  %363 = vmatmul.mubr.f32.gmra.mrb[0].mxu0 %v21
  %v364 = vpop.f32.mrb[0].mxu0
  %v365 = vadd.f32 %v138, %v364
  %v366 = vpop.f32.mrb[0].mxu0
  %367 = vmatprep.mubr.f32.mxu0 %v151
  %368 = vmatmul.mubr.f32.gmra.mrb[0].mxu0 %v23
  %v369 = vpop.f32.mrb[0].mxu0
  %v370 = vadd.f32 %v138, %v369
  %v371 = vpop.f32.mrb[0].mxu0
  %372 = vmatprep.mubr.f32.mxu0 %v154
  %373 = vmatmul.mubr.f32.gmra.mrb[0].mxu0 %v25
  %v374 = vpop.f32.mrb[0].mxu0
  %v375 = vadd.f32 %v138, %v374
  %v376 = vpop.f32.mrb[0].mxu0
  %377 = vmatprep.mubr.f32.mxu0 %v157
  %378 = vmatmul.mubr.f32.gmra.mrb[0].mxu0 %v27
  %v379 = vpop.f32.mrb[0].mxu0
  %v380 = vadd.f32 %v138, %v379
  %v381 = vpop.f32.mrb[0].mxu0
  %382 = vmatprep.mubr.f32.mxu0 %v160
  %383 = vmatmul.mubr.f32.gmra.mrb[0].mxu0 %v29
  %v384 = vpop.f32.mrb[0].mxu0
  %v385 = vadd.f32 %v138, %v384
  %v386 = vpop.f32.mrb[0].mxu0
  %387 = vmatprep.mubr.f32.mxu0 %v163
  %388 = vmatmul.mubr.f32.gmra.mrb[0].mxu0 %v31
  %v389 = vpop.f32.mrb[0].mxu0
  %v390 = vadd.f32 %v138, %v389
  %v391 = vpop.f32.mrb[0].mxu0
  %392 = vmatprep.mubr.f32.mxu0 %v166
  %393 = vmatmul.mubr.f32.gmra.mrb[0].mxu0 %v33
  %v394 = vpop.f32.mrb[0].mxu0
  %v395 = vadd.f32 %v138, %v394
  %v396 = vpop.f32.mrb[0].mxu0
  %397 = vmatprep.mubr.f32.mxu0 %v169
  %398 = vmatmul.mubr.f32.gmra.mrb[0].mxu0 %v35
  %v399 = vpop.f32.mrb[0].mxu0
  %v400 = vadd.f32 %v138, %v399
  %v401 = vpop.f32.mrb[0].mxu0
  %402 = vmatprep.mubr.f32.mxu0 %v172
  %403 = vmatmul.mubr.f32.gmra.mrb[0].mxu0 %v37
  %v404 = vpop.f32.mrb[0].mxu0
  %v405 = vadd.f32 %v138, %v404
  %v406 = vpop.f32.mrb[0].mxu0
  %407 = vmatprep.mubr.f32.mxu0 %v175
  %408 = vmatmul.mubr.f32.gmra.mrb[0].mxu0 %v39
  %v409 = vpop.f32.mrb[0].mxu0
  %v410 = vadd.f32 %v138, %v409
  %v411 = vpop.f32.mrb[0].mxu0
  %412 = vmatprep.mubr.f32.mxu0 %v178
  %413 = vmatmul.mubr.f32.gmra.mrb[0].mxu0 %v41
  %v414 = vpop.f32.mrb[0].mxu0
  %v415 = vadd.f32 %v138, %v414
  %v416 = vpop.f32.mrb[0].mxu0
  %417 = vmatprep.mubr.f32.mxu0 %v181
  %418 = vmatmul.mubr.f32.gmra.mrb[0].mxu0 %v43
  %v419 = vpop.f32.mrb[0].mxu0
  %v420 = vadd.f32 %v138, %v419
  %v421 = vpop.f32.mrb[0].mxu0
  %422 = vmatprep.mubr.f32.mxu0 %v184
  %423 = vmatmul.mubr.f32.gmra.mrb[0].mxu0 %v45
  %v424 = vpop.f32.mrb[0].mxu0
  %v425 = vadd.f32 %v138, %v424
  %v426 = vpop.f32.mrb[0].mxu0
  %427 = vmatprep.mubr.f32.mxu0 %v187
  %428 = vmatmul.mubr.f32.gmra.mrb[0].mxu0 %v47
  %v429 = vpop.f32.mrb[0].mxu0
  %v430 = vadd.f32 %v138, %v429
  %v431 = vpop.f32.mrb[0].mxu0
  %432 = vmatprep.mubr.f32.mxu0 %v190
  %433 = vmatmul.mubr.f32.gmra.mrb[0].mxu0 %v49
  %v434 = vpop.f32.mrb[0].mxu0
  %v435 = vadd.f32 %v138, %v434
  %v436 = vpop.f32.mrb[0].mxu0
  %437 = vmatprep.mubr.f32.mxu0 %v193
  %438 = vmatmul.mubr.f32.gmra.mrb[0].mxu0 %v51
  %v439 = vpop.f32.mrb[0].mxu0
  %v440 = vadd.f32 %v138, %v439
  %v441 = vpop.f32.mrb[0].mxu0
  %442 = vmatprep.mubr.f32.mxu0 %v196
  %443 = vmatmul.mubr.f32.gmra.mrb[0].mxu0 %v53
  %v444 = vpop.f32.mrb[0].mxu0
  %v445 = vadd.f32 %v138, %v444
  %v446 = vpop.f32.mrb[0].mxu0
  %447 = vmatprep.mubr.f32.mxu0 %v199
  %448 = vmatmul.mubr.f32.gmra.mrb[0].mxu0 %v55
  %v449 = vpop.f32.mrb[0].mxu0
  %v450 = vadd.f32 %v138, %v449
  %v451 = vpop.f32.mrb[0].mxu0
  %452 = vmatprep.mubr.f32.mxu0 %v202
  %453 = vmatmul.mubr.f32.gmra.mrb[0].mxu0 %v57
  %v454 = vpop.f32.mrb[0].mxu0
  %v455 = vadd.f32 %v138, %v454
  %v456 = vpop.f32.mrb[0].mxu0
  %457 = vmatprep.mubr.f32.mxu0 %v205
  %458 = vmatmul.mubr.f32.gmra.mrb[0].mxu0 %v59
  %v459 = vpop.f32.mrb[0].mxu0
  %v460 = vadd.f32 %v138, %v459
  %v461 = vpop.f32.mrb[0].mxu0
  %462 = vmatprep.mubr.f32.mxu0 %v208
  %463 = vmatmul.mubr.f32.gmra.mrb[0].mxu0 %v61
  %v464 = vpop.f32.mrb[0].mxu0
  %v465 = vadd.f32 %v138, %v464
  %v466 = vpop.f32.mrb[0].mxu0
  %467 = vmatprep.mubr.f32.mxu0 %v211
  %468 = vmatmul.mubr.f32.gmra.mrb[0].mxu0 %v63
  %v469 = vpop.f32.mrb[0].mxu0
  %v470 = vadd.f32 %v138, %v469
  %v471 = vpop.f32.mrb[0].mxu0
  %472 = vmatprep.mubr.f32.mxu0 %v214
  %473 = vmatmul.mubr.f32.gmra.mrb[0].mxu0 %v65
  %v474 = vpop.f32.mrb[0].mxu0
  %v475 = vadd.f32 %v138, %v474
  %v476 = vpop.f32.mrb[0].mxu0
  %477 = vmatprep.mubr.f32.mxu0 %v217
  %478 = vmatmul.mubr.f32.gmra.mrb[0].mxu0 %v67
  %v479 = vpop.f32.mrb[0].mxu0
  %v480 = vadd.f32 %v138, %v479
  %v481 = vpop.f32.mrb[0].mxu0
  %482 = vmatprep.mubr.f32.mxu0 %v220
  %483 = vmatmul.mubr.f32.gmra.mrb[0].mxu0 %v69
  %v484 = vpop.f32.mrb[0].mxu0
  %v485 = vadd.f32 %v138, %v484
  %v486 = vpop.f32.mrb[0].mxu0
  %487 = vmatprep.mubr.f32.mxu0 %v223
  %488 = vmatmul.mubr.f32.gmra.mrb[0].mxu0 %v71
  %v489 = vpop.f32.mrb[0].mxu0
  %v490 = vadd.f32 %v138, %v489
  %v491 = vpop.f32.mrb[0].mxu0
  %492 = vmatprep.mubr.f32.mxu0 %v226
  %493 = vmatmul.mubr.f32.gmra.mrb[0].mxu0 %v73
  %v494 = vpop.f32.mrb[0].mxu0
  %v495 = vadd.f32 %v138, %v494
  %v496 = vpop.f32.mrb[0].mxu0
  %497 = vmatprep.mubr.f32.mxu0 %v229
  %498 = vmatmul.mubr.f32.gmra.mrb[0].mxu0 %v75
  %v499 = vpop.f32.mrb[0].mxu0
  %v500 = vadd.f32 %v138, %v499
  %v501 = vpop.f32.mrb[0].mxu0
  %502 = vmatprep.mubr.f32.mxu0 %v232
  %503 = vmatmul.mubr.f32.gmra.mrb[0].mxu0 %v77
  %v504 = vpop.f32.mrb[0].mxu0
  %v505 = vadd.f32 %v138, %v504
  %v506 = vpop.f32.mrb[0].mxu0
  %507 = vmatprep.mubr.f32.mxu0 %v235
  %508 = vmatmul.mubr.f32.gmra.mrb[0].mxu0 %v79
  %v509 = vpop.f32.mrb[0].mxu0
  %v510 = vadd.f32 %v138, %v509
  %v511 = vpop.f32.mrb[0].mxu0
  %512 = vmatprep.mubr.f32.mxu0 %v238
  %513 = vmatmul.mubr.f32.gmra.mrb[0].mxu0 %v81
  %v514 = vpop.f32.mrb[0].mxu0
  %v515 = vadd.f32 %v138, %v514
  %v516 = vpop.f32.mrb[0].mxu0
  %517 = vmatprep.mubr.f32.mxu0 %v241
  %518 = vmatmul.mubr.f32.gmra.mrb[0].mxu0 %v83
  %v519 = vpop.f32.mrb[0].mxu0
  %v520 = vadd.f32 %v138, %v519
  %v521 = vpop.f32.mrb[0].mxu0
  %522 = vmatprep.mubr.f32.mxu0 %v244
  %523 = vmatmul.mubr.f32.gmra.mrb[0].mxu0 %v85
  %v524 = vpop.f32.mrb[0].mxu0
  %v525 = vadd.f32 %v138, %v524
  %v526 = vpop.f32.mrb[0].mxu0
  %527 = vmatprep.mubr.f32.mxu0 %v247
  %528 = vmatmul.mubr.f32.gmra.mrb[0].mxu0 %v87
  %v529 = vpop.f32.mrb[0].mxu0
  %v530 = vadd.f32 %v138, %v529
  %v531 = vpop.f32.mrb[0].mxu0
  %532 = vmatprep.mubr.f32.mxu0 %v250
  %533 = vmatmul.mubr.f32.gmra.mrb[0].mxu0 %v89
  %v534 = vpop.f32.mrb[0].mxu0
  %v535 = vadd.f32 %v138, %v534
  %v536 = vpop.f32.mrb[0].mxu0
  %537 = vmatprep.mubr.f32.mxu0 %v253
  %538 = vmatmul.mubr.f32.gmra.mrb[0].mxu0 %v91
  %v539 = vpop.f32.mrb[0].mxu0
  %v540 = vadd.f32 %v138, %v539
  %v541 = vpop.f32.mrb[0].mxu0
  %542 = vmatprep.mubr.f32.mxu0 %v256
  %543 = vmatmul.mubr.f32.gmra.mrb[0].mxu0 %v93
  %v544 = vpop.f32.mrb[0].mxu0
  %v545 = vadd.f32 %v138, %v544
  %v546 = vpop.f32.mrb[0].mxu0
  %547 = vmatprep.mubr.f32.mxu0 %v259
  %548 = vmatmul.mubr.f32.gmra.mrb[0].mxu0 %v95
  %v549 = vpop.f32.mrb[0].mxu0
  %v550 = vadd.f32 %v138, %v549
  %v551 = vpop.f32.mrb[0].mxu0
  %552 = vmatprep.mubr.f32.mxu0 %v262
  %553 = vmatmul.mubr.f32.gmra.mrb[0].mxu0 %v97
  %v554 = vpop.f32.mrb[0].mxu0
  %v555 = vadd.f32 %v138, %v554
  %v556 = vpop.f32.mrb[0].mxu0
  %557 = vmatprep.mubr.f32.mxu0 %v265
  %558 = vmatmul.mubr.f32.gmra.mrb[0].mxu0 %v99
  %v559 = vpop.f32.mrb[0].mxu0
  %v560 = vadd.f32 %v138, %v559
  %v561 = vpop.f32.mrb[0].mxu0
  %562 = vmatprep.mubr.f32.mxu0 %v268
  %563 = vmatmul.mubr.f32.gmra.mrb[0].mxu0 %v101
  %v564 = vpop.f32.mrb[0].mxu0
  %v565 = vadd.f32 %v138, %v564
  %v566 = vpop.f32.mrb[0].mxu0
  %567 = vmatprep.mubr.f32.mxu0 %v271
  %568 = vmatmul.mubr.f32.gmra.mrb[0].mxu0 %v103
  %v569 = vpop.f32.mrb[0].mxu0
  %v570 = vadd.f32 %v138, %v569
  %v571 = vpop.f32.mrb[0].mxu0
  %572 = vmatprep.mubr.f32.mxu0 %v274
  %573 = vmatmul.mubr.f32.gmra.mrb[0].mxu0 %v105
  %v574 = vpop.f32.mrb[0].mxu0
  %v575 = vadd.f32 %v138, %v574
  %v576 = vpop.f32.mrb[0].mxu0
  %577 = vmatprep.mubr.f32.mxu0 %v277
  %578 = vmatmul.mubr.f32.gmra.mrb[0].mxu0 %v107
  %v579 = vpop.f32.mrb[0].mxu0
  %v580 = vadd.f32 %v138, %v579
  %v581 = vpop.f32.mrb[0].mxu0
  %582 = vmatprep.mubr.f32.mxu0 %v280
  %583 = vmatmul.mubr.f32.gmra.mrb[0].mxu0 %v109
  %v584 = vpop.f32.mrb[0].mxu0
  %v585 = vadd.f32 %v138, %v584
  %v586 = vpop.f32.mrb[0].mxu0
  %587 = vmatprep.mubr.f32.mxu0 %v283
  %588 = vmatmul.mubr.f32.gmra.mrb[0].mxu0 %v111
  %v589 = vpop.f32.mrb[0].mxu0
  %v590 = vadd.f32 %v138, %v589
  %v591 = vpop.f32.mrb[0].mxu0
  %592 = vmatprep.mubr.f32.mxu0 %v286
  %593 = vmatmul.mubr.f32.gmra.mrb[0].mxu0 %v113
  %v594 = vpop.f32.mrb[0].mxu0
  %v595 = vadd.f32 %v138, %v594
  %v596 = vpop.f32.mrb[0].mxu0
  %597 = vdwg.mxu0
  %v598 = vmax.f32 %v355, 0.0
  %v599 = vmax.f32 %v360, 0.0
  %v600 = vmax.f32 %v365, 0.0
  %v601 = vmax.f32 %v370, 0.0
  %v602 = vmax.f32 %v375, 0.0
  %v603 = vmax.f32 %v380, 0.0
  %v604 = vmax.f32 %v385, 0.0
  %v605 = vmax.f32 %v390, 0.0
  %v606 = vmax.f32 %v395, 0.0
  %v607 = vmax.f32 %v400, 0.0
  %v608 = vmax.f32 %v405, 0.0
  %v609 = vmax.f32 %v410, 0.0
  %v610 = vmax.f32 %v415, 0.0
  %v611 = vmax.f32 %v420, 0.0
  %v612 = vmax.f32 %v425, 0.0
  %v613 = vmax.f32 %v430, 0.0
  %v614 = vmax.f32 %v435, 0.0
  %v615 = vmax.f32 %v440, 0.0
  %v616 = vmax.f32 %v445, 0.0
  %v617 = vmax.f32 %v450, 0.0
  %v618 = vmax.f32 %v455, 0.0
  %v619 = vmax.f32 %v460, 0.0
  %v620 = vmax.f32 %v465, 0.0
  %v621 = vmax.f32 %v470, 0.0
  %v622 = vmax.f32 %v475, 0.0
  %v623 = vmax.f32 %v480, 0.0
  %v624 = vmax.f32 %v485, 0.0
  %v625 = vmax.f32 %v490, 0.0
  %v626 = vmax.f32 %v495, 0.0
  %v627 = vmax.f32 %v500, 0.0
  %v628 = vmax.f32 %v505, 0.0
  %v629 = vmax.f32 %v510, 0.0
  %v630 = vmax.f32 %v515, 0.0
  %v631 = vmax.f32 %v520, 0.0
  %v632 = vmax.f32 %v525, 0.0
  %v633 = vmax.f32 %v530, 0.0
  %v634 = vmax.f32 %v535, 0.0
  %v635 = vmax.f32 %v540, 0.0
  %v636 = vmax.f32 %v545, 0.0
  %v637 = vmax.f32 %v550, 0.0
  %v638 = vmax.f32 %v555, 0.0
  %v639 = vmax.f32 %v560, 0.0
  %v640 = vmax.f32 %v565, 0.0
  %v641 = vmax.f32 %v570, 0.0
  %v642 = vmax.f32 %v575, 0.0
  %v643 = vmax.f32 %v580, 0.0
  %v644 = vmax.f32 %v585, 0.0
  %v645 = vmax.f32 %v590, 0.0
  %v646 = vmax.f32 %v595, 0.0
  %v647 = vld [vmem:[%s3] sm:$0xff]
  %v648 = vld [vmem:[%s3 + $0x8] sm:$0xff]
  %v649 = vld [vmem:[%s3 + $0x10] sm:$0xff]
  %v650 = vld [vmem:[%s3 + $0x18] sm:$0xff]
  %v651 = vld [vmem:[%s3 + $0x20] sm:$0xff]
  %v652 = vld [vmem:[%s3 + $0x28] sm:$0xff]
  %v653 = vld [vmem:[%s3 + $0x30] sm:$0xff]
  %v654 = vld [vmem:[%s3 + $0x38] sm:$0xff]
  %v655 = vld [vmem:[%s3 + $0x40] sm:$0xff]
  %v656 = vld [vmem:[%s3 + $0x48] sm:$0xff]
  %v657 = vld [vmem:[%s3 + $0x50] sm:$0xff]
  %v658 = vld [vmem:[%s3 + $0x58] sm:$0xff]
  %v659 = vld [vmem:[%s3 + $0x60] sm:$0xff]
  %v660 = vld [vmem:[%s3 + $0x68] sm:$0xff]
  %v661 = vld [vmem:[%s3 + $0x70] sm:$0xff]
  %v662 = vld [vmem:[%s3 + $0x78] sm:$0xff]
  %v663 = vld [vmem:[%s3 + $0x80] sm:$0xff]
  %v664 = vld [vmem:[%s3 + $0x88] sm:$0xff]
  %v665 = vld [vmem:[%s3 + $0x90] sm:$0xff]
  %v666 = vld [vmem:[%s3 + $0x98] sm:$0xff]
  %v667 = vld [vmem:[%s3 + $0xa0] sm:$0xff]
  %v668 = vld [vmem:[%s3 + $0xa8] sm:$0xff]
  %v669 = vld [vmem:[%s3 + $0xb0] sm:$0xff]
  %v670 = vld [vmem:[%s3 + $0xb8] sm:$0xff]
  %v671 = vld [vmem:[%s3 + $0xc0] sm:$0xff]
  %v672 = vld [vmem:[%s3 + $0xc8] sm:$0xff]
  %v673 = vld [vmem:[%s3 + $0xd0] sm:$0xff]
  %v674 = vld [vmem:[%s3 + $0xd8] sm:$0xff]
  %v675 = vld [vmem:[%s3 + $0xe0] sm:$0xff]
  %v676 = vld [vmem:[%s3 + $0xe8] sm:$0xff]
  %v677 = vld [vmem:[%s3 + $0xf0] sm:$0xff]
  %v678 = vld [vmem:[%s3 + $0xf8] sm:$0xff]
  %v679 = vld [vmem:[%s3 + $0x100] sm:$0xff]
  %v680 = vld [vmem:[%s3 + $0x108] sm:$0xff]
  %v681 = vld [vmem:[%s3 + $0x110] sm:$0xff]
  %v682 = vld [vmem:[%s3 + $0x118] sm:$0xff]
  %v683 = vld [vmem:[%s3 + $0x120] sm:$0xff]
  %v684 = vld [vmem:[%s3 + $0x128] sm:$0xff]
  %v685 = vld [vmem:[%s3 + $0x130] sm:$0xff]
  %v686 = vld [vmem:[%s3 + $0x138] sm:$0xff]
  %v687 = vld [vmem:[%s3 + $0x140] sm:$0xff]
  %v688 = vld [vmem:[%s3 + $0x148] sm:$0xff]
  %v689 = vld [vmem:[%s3 + $0x150] sm:$0xff]
  %v690 = vld [vmem:[%s3 + $0x158] sm:$0xff]
  %v691 = vld [vmem:[%s3 + $0x160] sm:$0xff]
  %v692 = vld [vmem:[%s3 + $0x168] sm:$0xff]
  %v693 = vld [vmem:[%s3 + $0x170] sm:$0xff]
  %v694 = vld [vmem:[%s3 + $0x178] sm:$0xff]
  %v695 = vld [vmem:[%s3 + $0x180] sm:$0xff]
  %v696 = vadd.f32 %v598, %v647
  %v697 = vadd.f32 %v599, %v648
  %v698 = vadd.f32 %v600, %v649
  %v699 = vadd.f32 %v601, %v650
  %v700 = vadd.f32 %v602, %v651
  %v701 = vadd.f32 %v603, %v652
  %v702 = vadd.f32 %v604, %v653
  %v703 = vadd.f32 %v605, %v654
  %v704 = vadd.f32 %v606, %v655
  %v705 = vadd.f32 %v607, %v656
  %v706 = vadd.f32 %v608, %v657
  %v707 = vadd.f32 %v609, %v658
  %v708 = vadd.f32 %v610, %v659
  %v709 = vadd.f32 %v611, %v660
  %v710 = vadd.f32 %v612, %v661
  %v711 = vadd.f32 %v613, %v662
  %v712 = vadd.f32 %v614, %v663
  %v713 = vadd.f32 %v615, %v664
  %v714 = vadd.f32 %v616, %v665
  %v715 = vadd.f32 %v617, %v666
  %v716 = vadd.f32 %v618, %v667
  %v717 = vadd.f32 %v619, %v668
  %v718 = vadd.f32 %v620, %v669
  %v719 = vadd.f32 %v621, %v670
  %v720 = vadd.f32 %v622, %v671
  %v721 = vadd.f32 %v623, %v672
  %v722 = vadd.f32 %v624, %v673
  %v723 = vadd.f32 %v625, %v674
  %v724 = vadd.f32 %v626, %v675
  %v725 = vadd.f32 %v627, %v676
  %v726 = vadd.f32 %v628, %v677
  %v727 = vadd.f32 %v629, %v678
  %v728 = vadd.f32 %v630, %v679
  %v729 = vadd.f32 %v631, %v680
  %v730 = vadd.f32 %v632, %v681
  %v731 = vadd.f32 %v633, %v682
  %v732 = vadd.f32 %v634, %v683
  %v733 = vadd.f32 %v635, %v684
  %v734 = vadd.f32 %v636, %v685
  %v735 = vadd.f32 %v637, %v686
  %v736 = vadd.f32 %v638, %v687
  %v737 = vadd.f32 %v639, %v688
  %v738 = vadd.f32 %v640, %v689
  %v739 = vadd.f32 %v641, %v690
  %v740 = vadd.f32 %v642, %v691
  %v741 = vadd.f32 %v643, %v692
  %v742 = vadd.f32 %v644, %v693
  %v743 = vadd.f32 %v645, %v694
  %v744 = vadd.f32 %v646, %v695
  %vm745 = vcmask 261120
  %746 = vst.msk [vmem:[%s4] sm:$0xff] %vm745, %v696
  %747 = vst.msk [vmem:[%s4 + $0x8] sm:$0xff] %vm745, %v697
  %748 = vst.msk [vmem:[%s4 + $0x10] sm:$0xff] %vm745, %v698
  %749 = vst.msk [vmem:[%s4 + $0x18] sm:$0xff] %vm745, %v699
  %750 = vst.msk [vmem:[%s4 + $0x20] sm:$0xff] %vm745, %v700
  %751 = vst.msk [vmem:[%s4 + $0x28] sm:$0xff] %vm745, %v701
  %752 = vst.msk [vmem:[%s4 + $0x30] sm:$0xff] %vm745, %v702
  %753 = vst.msk [vmem:[%s4 + $0x38] sm:$0xff] %vm745, %v703
  %754 = vst.msk [vmem:[%s4 + $0x40] sm:$0xff] %vm745, %v704
  %755 = vst.msk [vmem:[%s4 + $0x48] sm:$0xff] %vm745, %v705
  %756 = vst.msk [vmem:[%s4 + $0x50] sm:$0xff] %vm745, %v706
  %757 = vst.msk [vmem:[%s4 + $0x58] sm:$0xff] %vm745, %v707
  %758 = vst.msk [vmem:[%s4 + $0x60] sm:$0xff] %vm745, %v708
  %759 = vst.msk [vmem:[%s4 + $0x68] sm:$0xff] %vm745, %v709
  %760 = vst.msk [vmem:[%s4 + $0x70] sm:$0xff] %vm745, %v710
  %761 = vst.msk [vmem:[%s4 + $0x78] sm:$0xff] %vm745, %v711
  %762 = vst.msk [vmem:[%s4 + $0x80] sm:$0xff] %vm745, %v712
  %763 = vst.msk [vmem:[%s4 + $0x88] sm:$0xff] %vm745, %v713
  %764 = vst.msk [vmem:[%s4 + $0x90] sm:$0xff] %vm745, %v714
  %765 = vst.msk [vmem:[%s4 + $0x98] sm:$0xff] %vm745, %v715
  %766 = vst.msk [vmem:[%s4 + $0xa0] sm:$0xff] %vm745, %v716
  %767 = vst.msk [vmem:[%s4 + $0xa8] sm:$0xff] %vm745, %v717
  %768 = vst.msk [vmem:[%s4 + $0xb0] sm:$0xff] %vm745, %v718
  %769 = vst.msk [vmem:[%s4 + $0xb8] sm:$0xff] %vm745, %v719
  %770 = vst.msk [vmem:[%s4 + $0xc0] sm:$0xff] %vm745, %v720
  %771 = vst.msk [vmem:[%s4 + $0xc8] sm:$0xff] %vm745, %v721
  %772 = vst.msk [vmem:[%s4 + $0xd0] sm:$0xff] %vm745, %v722
  %773 = vst.msk [vmem:[%s4 + $0xd8] sm:$0xff] %vm745, %v723
  %774 = vst.msk [vmem:[%s4 + $0xe0] sm:$0xff] %vm745, %v724
  %775 = vst.msk [vmem:[%s4 + $0xe8] sm:$0xff] %vm745, %v725
  %776 = vst.msk [vmem:[%s4 + $0xf0] sm:$0xff] %vm745, %v726
  %777 = vst.msk [vmem:[%s4 + $0xf8] sm:$0xff] %vm745, %v727
  %778 = vst.msk [vmem:[%s4 + $0x100] sm:$0xff] %vm745, %v728
  %779 = vst.msk [vmem:[%s4 + $0x108] sm:$0xff] %vm745, %v729
  %780 = vst.msk [vmem:[%s4 + $0x110] sm:$0xff] %vm745, %v730
  %781 = vst.msk [vmem:[%s4 + $0x118] sm:$0xff] %vm745, %v731
  %782 = vst.msk [vmem:[%s4 + $0x120] sm:$0xff] %vm745, %v732
  %783 = vst.msk [vmem:[%s4 + $0x128] sm:$0xff] %vm745, %v733
  %784 = vst.msk [vmem:[%s4 + $0x130] sm:$0xff] %vm745, %v734
  %785 = vst.msk [vmem:[%s4 + $0x138] sm:$0xff] %vm745, %v735
  %786 = vst.msk [vmem:[%s4 + $0x140] sm:$0xff] %vm745, %v736
  %787 = vst.msk [vmem:[%s4 + $0x148] sm:$0xff] %vm745, %v737
  %788 = vst.msk [vmem:[%s4 + $0x150] sm:$0xff] %vm745, %v738
  %789 = vst.msk [vmem:[%s4 + $0x158] sm:$0xff] %vm745, %v739
  %790 = vst.msk [vmem:[%s4 + $0x160] sm:$0xff] %vm745, %v740
  %791 = vst.msk [vmem:[%s4 + $0x168] sm:$0xff] %vm745, %v741
  %792 = vst.msk [vmem:[%s4 + $0x170] sm:$0xff] %vm745, %v742
  %793 = vst.msk [vmem:[%s4 + $0x178] sm:$0xff] %vm745, %v743
  %794 = vst.msk [vmem:[%s4 + $0x180] sm:$0xff] %vm745, %v744
  // Predicated region
  $region18: #{resnet_like_net.14} parent=0 // pred_check
    _
  $region19: #{resnet_like_net.14} parent=0 // pred_check_branch
    %796 = sbr.rel (0) target = $region21
  $region20: #{resnet_like_net.14} parent=0 // pred_region
    _
  $region21: #{resnet_like_net.14} parent=0 // pred_fallthru
    _
  // Predicated region
  $region22: #{resnet_like_net.14} parent=0 // pred_check
    _
  $region23: #{resnet_like_net.14} parent=0 // pred_check_branch
    %798 = sbr.rel (0) target = $region25
  $region24: #{resnet_like_net.14} parent=0 // pred_region
    _
  $region25: #{resnet_like_net.14} parent=0 // pred_fallthru
    _

// kernel: resnet_like_net.18
$region0: #{resnet_like_net.18}
  #allocation0 [shape = 'u32[]', space=smem, size = 0x4, offset = 0x4, fixed_abs, tag = 'smem constant byte address 0x4 - core index']
  #allocation1 [shape = 'u32[144,128]{1,0:T(1,128)}', space=vmem, size = 0x12000, scoped, tag = 'internal scratch']
  %s0 = inlined_call_operand.vmem [shape: f32[98,144], index: 0, kind: input, shape index: {}]
  %s1 = inlined_call_operand.vmem [shape: f32[144,32], index: 1, kind: input, shape index: {}]
  %s2 = inlined_call_operand.vmem [shape: f32[1,32], index: 2, kind: input, shape index: {}]
  %s3 = inlined_call_operand.vmem [shape: f32[98,32], index: 3, kind: input, shape index: {}]
  %s4 = inlined_call_operand.vmem [shape: f32[98,32], index: 4, kind: output, shape index: {}]
  %s5 = sld [smem:[#allocation0]]
  $region26: #{resnet_like_net.18} parent=0
    _
  %s7 = ssub.s32 1, %s5
  %s8 = scalar_select 0, %s7, %s5
  // Predicated region
  $region2: #{resnet_like_net.18} parent=0 // pred_check
    _
  $region3: #{resnet_like_net.18} parent=0 // pred_check_branch
    %10 = sbr.rel (0) target = $region5
  $region4: #{resnet_like_net.18} parent=0 // pred_region
    _
  $region5: #{resnet_like_net.18} parent=0 // pred_fallthru
    _
  // Predicated region
  $region6: #{resnet_like_net.18} parent=0 // pred_check
    _
  $region7: #{resnet_like_net.18} parent=0 // pred_check_branch
    %12 = sbr.rel (0) target = $region9
  $region8: #{resnet_like_net.18} parent=0 // pred_region
    _
  $region9: #{resnet_like_net.18} parent=0 // pred_fallthru
    _
  // Predicated region
  $region10: #{resnet_like_net.18} parent=0 // pred_check
    _
  $region11: #{resnet_like_net.18} parent=0 // pred_check_branch
    %14 = sbr.rel (0) target = $region13
  $region12: #{resnet_like_net.18} parent=0 // pred_region
    _
  $region13: #{resnet_like_net.18} parent=0 // pred_fallthru
    _
  // Predicated region
  $region14: #{resnet_like_net.18} parent=0 // pred_check
    _
  $region15: #{resnet_like_net.18} parent=0 // pred_check_branch
    %16 = sbr.rel (0) target = $region17
  $region16: #{resnet_like_net.18} parent=0 // pred_region
    _
  $region17: #{resnet_like_net.18} parent=0 // pred_fallthru
    _
  %v17 = vld [vmem:[%s0] sm:$0xff]
  %v18 = vld [vmem:[%s0 + $0x8] sm:$0xff]
  %v19 = vld [vmem:[%s0 + $0x10] sm:$0xff]
  %v20 = vld [vmem:[%s0 + $0x18] sm:$0xff]
  %v21 = vld [vmem:[%s0 + $0x20] sm:$0xff]
  %v22 = vld [vmem:[%s0 + $0x28] sm:$0xff]
  %v23 = vld [vmem:[%s0 + $0x30] sm:$0xff]
  %v24 = vld [vmem:[%s0 + $0x38] sm:$0xff]
  %v25 = vld [vmem:[%s0 + $0x40] sm:$0xff]
  %v26 = vld [vmem:[%s0 + $0x48] sm:$0xff]
  %v27 = vld [vmem:[%s0 + $0x50] sm:$0xff]
  %v28 = vld [vmem:[%s0 + $0x58] sm:$0xff]
  %v29 = vld [vmem:[%s0 + $0x60] sm:$0xff]
  %v30 = vld [vmem:[%s0 + $0x68] sm:$0xff]
  %v31 = vld [vmem:[%s0 + $0x70] sm:$0xff]
  %v32 = vld [vmem:[%s0 + $0x78] sm:$0xff]
  %v33 = vld [vmem:[%s0 + $0x80] sm:$0xff]
  %v34 = vld [vmem:[%s0 + $0x88] sm:$0xff]
  %v35 = vld [vmem:[%s0 + $0x90] sm:$0xff]
  %v36 = vld [vmem:[%s0 + $0x98] sm:$0xff]
  %v37 = vld [vmem:[%s0 + $0xa0] sm:$0xff]
  %v38 = vld [vmem:[%s0 + $0xa8] sm:$0xff]
  %v39 = vld [vmem:[%s0 + $0xb0] sm:$0xff]
  %v40 = vld [vmem:[%s0 + $0xb8] sm:$0xff]
  %v41 = vld [vmem:[%s0 + $0xc0] sm:$0x3]
  %v42 = vld [vmem:[%s0 + $0xc8] sm:$0x3]
  %v43 = vld [vmem:[%s1] sm:$0xff]
  %v44 = vld [vmem:[%s1 + $0x8] sm:$0xff]
  %v45 = vld [vmem:[%s1 + $0x10] sm:$0xff]
  %v46 = vld [vmem:[%s1 + $0x18] sm:$0xff]
  %v47 = vld [vmem:[%s1 + $0x20] sm:$0xff]
  %v48 = vld [vmem:[%s1 + $0x28] sm:$0xff]
  %v49 = vld [vmem:[%s1 + $0x30] sm:$0xff]
  %v50 = vld [vmem:[%s1 + $0x38] sm:$0xff]
  %v51 = vld [vmem:[%s1 + $0x40] sm:$0xff]
  %v52 = vld [vmem:[%s1 + $0x48] sm:$0xff]
  %v53 = vld [vmem:[%s1 + $0x50] sm:$0xff]
  %v54 = vld [vmem:[%s1 + $0x58] sm:$0xff]
  %v55 = vld [vmem:[%s1 + $0x60] sm:$0xff]
  %v56 = vld [vmem:[%s1 + $0x68] sm:$0xff]
  %v57 = vld [vmem:[%s1 + $0x70] sm:$0xff]
  %v58 = vld [vmem:[%s1 + $0x78] sm:$0xff]
  %v59 = vld [vmem:[%s1 + $0x80] sm:$0xff]
  %v60 = vld [vmem:[%s1 + $0x88] sm:$0xff]
  %v61 = vld [vmem:[%s2] sm:$0x1]
  %v63 = vlaneseq
  %v64 = vshrl.u32 %v63, 7
  %v65 = vsub.s32 0, %v64
  %v66 = vrot.slane %v61, %v65
  %vm68 = vcmask 130048
  %v70 = vsel %vm68, %v18, 0
  %v73 = vsel %vm68, %v20, 0
  %v76 = vsel %vm68, %v22, 0
  %v79 = vsel %vm68, %v24, 0
  %v82 = vsel %vm68, %v26, 0
  %v85 = vsel %vm68, %v28, 0
  %v88 = vsel %vm68, %v30, 0
  %v91 = vsel %vm68, %v32, 0
  %v94 = vsel %vm68, %v34, 0
  %v97 = vsel %vm68, %v36, 0
  %v100 = vsel %vm68, %v38, 0
  %v103 = vsel %vm68, %v40, 0
  %v106 = vsel %vm68, %v42, 0
  %108 = vmatprep.subr.mxu0 0.0
  %109 = vmatpush1.msra.mxu0 %v43
  %110 = vmatprep.subr.mxu0 0.0
  %111 = vmatpush1.msra.mxu0 %v44
  %112 = vmatprep.subr.mxu0 0.0
  %113 = vmatpush1.msra.mxu0 %v45
  %114 = vmatprep.subr.mxu0 0.0
  %115 = vmatpush1.msra.mxu0 %v46
  %116 = vmatprep.subr.mxu0 0.0
  %117 = vmatpush1.msra.mxu0 %v47
  %118 = vmatprep.subr.mxu0 0.0
  %119 = vmatpush1.msra.mxu0 %v48
  %120 = vmatprep.subr.mxu0 0.0
  %121 = vmatpush1.msra.mxu0 %v49
  %122 = vmatprep.subr.mxu0 0.0
  %123 = vmatpush1.msra.mxu0 %v50
  %124 = vmatprep.subr.mxu0 0.0
  %125 = vmatpush1.msra.mxu0 %v51
  %126 = vmatprep.subr.mxu0 0.0
  %127 = vmatpush1.msra.mxu0 %v52
  %128 = vmatprep.subr.mxu0 0.0
  %129 = vmatpush1.msra.mxu0 %v53
  %130 = vmatprep.subr.mxu0 0.0
  %131 = vmatpush1.msra.mxu0 %v54
  %132 = vmatprep.subr.mxu0 0.0
  %133 = vmatpush1.msra.mxu0 %v55
  %134 = vmatprep.subr.mxu0 0.0
  %135 = vmatpush1.msra.mxu0 %v56
  %136 = vmatprep.subr.mxu0 0.0
  %137 = vmatpush1.msra.mxu0 %v57
  %138 = vmatprep.subr.mxu0 0.0
  %139 = vmatpush1.msra.mxu0 %v58
  %140 = vmatprep.subr.mxu0 0.0
  %141 = vmatpush1.msra.mxu0 %v59
  %142 = vmatprep.subr.mxu0 0.0
  %143 = vmatpush1.msra.mxu0 %v60
  %144 = vmatprep.subr.mxu0 0.0
  %145 = vmatpush1.msra.mxu0 0.0
  %146 = vmatprep.subr.mxu0 0.0
  %147 = vmatpush1.msra.mxu0 0.0
  %148 = vmatprep.subr.mxu0 0.0
  %149 = vmatpush1.msra.mxu0 0.0
  %150 = vmatprep.subr.mxu0 0.0
  %151 = vmatpush1.msra.mxu0 0.0
  %152 = vmatprep.subr.mxu0 0.0
  %153 = vmatpush1.msra.mxu0 0.0
  %154 = vmatprep.subr.mxu0 0.0
  %155 = vmatpush1.msra.mxu0 0.0
  %156 = vmatprep.subr.mxu0 0.0
  %157 = vmatpush1.msra.mxu0 0.0
  %158 = vmatprep.subr.mxu0 0.0
  %159 = vmatpush1.msra.mxu0 0.0
  %160 = vmatprep.subr.mxu0 0.0
  %161 = vmatpush1.msra.mxu0 0.0
  %162 = vmatprep.subr.mxu0 0.0
  %163 = vmatpush1.msra.mxu0 0.0
  %164 = vmatprep.subr.mxu0 0.0
  %165 = vmatpush1.msra.mxu0 0.0
  %166 = vmatprep.subr.mxu0 0.0
  %167 = vmatpush1.msra.mxu0 0.0
  %168 = vmatprep.subr.mxu0 0.0
  %169 = vmatpush1.msra.mxu0 0.0
  %170 = vmatprep.subr.mxu0 0.0
  %171 = vmatpush1.msra.mxu0 0.0
  %172 = vmatprep.mubr.f32.mxu0 %v70
  %173 = vmatmul.mubr.f32.gmra.mrb[0].mxu0 %v17
  %v174 = vpop.f32.mrb[0].mxu0
  %v175 = vadd.f32 %v66, %v174
  %v176 = vpop.f32.mrb[0].mxu0
  %177 = vmatprep.mubr.f32.mxu0 %v73
  %178 = vmatmul.mubr.f32.gmra.mrb[0].mxu0 %v19
  %v179 = vpop.f32.mrb[0].mxu0
  %v180 = vadd.f32 %v66, %v179
  %v181 = vpop.f32.mrb[0].mxu0
  %182 = vmatprep.mubr.f32.mxu0 %v76
  %183 = vmatmul.mubr.f32.gmra.mrb[0].mxu0 %v21
  %v184 = vpop.f32.mrb[0].mxu0
  %v185 = vadd.f32 %v66, %v184
  %v186 = vpop.f32.mrb[0].mxu0
  %187 = vmatprep.mubr.f32.mxu0 %v79
  %188 = vmatmul.mubr.f32.gmra.mrb[0].mxu0 %v23
  %v189 = vpop.f32.mrb[0].mxu0
  %v190 = vadd.f32 %v66, %v189
  %v191 = vpop.f32.mrb[0].mxu0
  %192 = vmatprep.mubr.f32.mxu0 %v82
  %193 = vmatmul.mubr.f32.gmra.mrb[0].mxu0 %v25
  %v194 = vpop.f32.mrb[0].mxu0
  %v195 = vadd.f32 %v66, %v194
  %v196 = vpop.f32.mrb[0].mxu0
  %197 = vmatprep.mubr.f32.mxu0 %v85
  %198 = vmatmul.mubr.f32.gmra.mrb[0].mxu0 %v27
  %v199 = vpop.f32.mrb[0].mxu0
  %v200 = vadd.f32 %v66, %v199
  %v201 = vpop.f32.mrb[0].mxu0
  %202 = vmatprep.mubr.f32.mxu0 %v88
  %203 = vmatmul.mubr.f32.gmra.mrb[0].mxu0 %v29
  %v204 = vpop.f32.mrb[0].mxu0
  %v205 = vadd.f32 %v66, %v204
  %v206 = vpop.f32.mrb[0].mxu0
  %207 = vmatprep.mubr.f32.mxu0 %v91
  %208 = vmatmul.mubr.f32.gmra.mrb[0].mxu0 %v31
  %v209 = vpop.f32.mrb[0].mxu0
  %v210 = vadd.f32 %v66, %v209
  %v211 = vpop.f32.mrb[0].mxu0
  %212 = vmatprep.mubr.f32.mxu0 %v94
  %213 = vmatmul.mubr.f32.gmra.mrb[0].mxu0 %v33
  %v214 = vpop.f32.mrb[0].mxu0
  %v215 = vadd.f32 %v66, %v214
  %v216 = vpop.f32.mrb[0].mxu0
  %217 = vmatprep.mubr.f32.mxu0 %v97
  %218 = vmatmul.mubr.f32.gmra.mrb[0].mxu0 %v35
  %v219 = vpop.f32.mrb[0].mxu0
  %v220 = vadd.f32 %v66, %v219
  %v221 = vpop.f32.mrb[0].mxu0
  %222 = vmatprep.mubr.f32.mxu0 %v100
  %223 = vmatmul.mubr.f32.gmra.mrb[0].mxu0 %v37
  %v224 = vpop.f32.mrb[0].mxu0
  %v225 = vadd.f32 %v66, %v224
  %v226 = vpop.f32.mrb[0].mxu0
  %227 = vmatprep.mubr.f32.mxu0 %v103
  %228 = vmatmul.mubr.f32.gmra.mrb[0].mxu0 %v39
  %v229 = vpop.f32.mrb[0].mxu0
  %v230 = vadd.f32 %v66, %v229
  %v231 = vpop.f32.mrb[0].mxu0
  %232 = vmatprep.mubr.f32.mxu0 %v106
  %233 = vmatmul.mubr.f32.gmra.mrb[0].mxu0 %v41
  %v234 = vpop.f32.mrb[0].mxu0
  %v235 = vadd.f32 %v66, %v234
  %v236 = vpop.f32.mrb[0].mxu0
  %237 = vdwg.mxu0
  %v238 = vmax.f32 %v175, 0.0
  %v239 = vmax.f32 %v180, 0.0
  %v240 = vmax.f32 %v185, 0.0
  %v241 = vmax.f32 %v190, 0.0
  %v242 = vmax.f32 %v195, 0.0
  %v243 = vmax.f32 %v200, 0.0
  %v244 = vmax.f32 %v205, 0.0
  %v245 = vmax.f32 %v210, 0.0
  %v246 = vmax.f32 %v215, 0.0
  %v247 = vmax.f32 %v220, 0.0
  %v248 = vmax.f32 %v225, 0.0
  %v249 = vmax.f32 %v230, 0.0
  %v250 = vmax.f32 %v235, 0.0
  %v251 = vld [vmem:[%s3] sm:$0xff]
  %v252 = vld [vmem:[%s3 + $0x8] sm:$0xff]
  %v253 = vld [vmem:[%s3 + $0x10] sm:$0xff]
  %v254 = vld [vmem:[%s3 + $0x18] sm:$0xff]
  %v255 = vld [vmem:[%s3 + $0x20] sm:$0xff]
  %v256 = vld [vmem:[%s3 + $0x28] sm:$0xff]
  %v257 = vld [vmem:[%s3 + $0x30] sm:$0xff]
  %v258 = vld [vmem:[%s3 + $0x38] sm:$0xff]
  %v259 = vld [vmem:[%s3 + $0x40] sm:$0xff]
  %v260 = vld [vmem:[%s3 + $0x48] sm:$0xff]
  %v261 = vld [vmem:[%s3 + $0x50] sm:$0xff]
  %v262 = vld [vmem:[%s3 + $0x58] sm:$0xff]
  %v263 = vld [vmem:[%s3 + $0x60] sm:$0x3]
  %v264 = vadd.f32 %v238, %v251
  %v265 = vadd.f32 %v239, %v252
  %v266 = vadd.f32 %v240, %v253
  %v267 = vadd.f32 %v241, %v254
  %v268 = vadd.f32 %v242, %v255
  %v269 = vadd.f32 %v243, %v256
  %v270 = vadd.f32 %v244, %v257
  %v271 = vadd.f32 %v245, %v258
  %v272 = vadd.f32 %v246, %v259
  %v273 = vadd.f32 %v247, %v260
  %v274 = vadd.f32 %v248, %v261
  %v275 = vadd.f32 %v249, %v262
  %v276 = vadd.f32 %v250, %v263
  %vm277 = vcmask 261120
  %278 = vst.msk [vmem:[%s4] sm:$0xff] %vm277, %v264
  %279 = vst.msk [vmem:[%s4 + $0x8] sm:$0xff] %vm277, %v265
  %280 = vst.msk [vmem:[%s4 + $0x10] sm:$0xff] %vm277, %v266
  %281 = vst.msk [vmem:[%s4 + $0x18] sm:$0xff] %vm277, %v267
  %282 = vst.msk [vmem:[%s4 + $0x20] sm:$0xff] %vm277, %v268
  %283 = vst.msk [vmem:[%s4 + $0x28] sm:$0xff] %vm277, %v269
  %284 = vst.msk [vmem:[%s4 + $0x30] sm:$0xff] %vm277, %v270
  %285 = vst.msk [vmem:[%s4 + $0x38] sm:$0xff] %vm277, %v271
  %286 = vst.msk [vmem:[%s4 + $0x40] sm:$0xff] %vm277, %v272
  %287 = vst.msk [vmem:[%s4 + $0x48] sm:$0xff] %vm277, %v273
  %288 = vst.msk [vmem:[%s4 + $0x50] sm:$0xff] %vm277, %v274
  %289 = vst.msk [vmem:[%s4 + $0x58] sm:$0xff] %vm277, %v275
  %vm290 = vcmask 254976
  %291 = vst.msk [vmem:[%s4 + $0x60] sm:$0x3] %vm290, %v276
  // Predicated region
  $region18: #{resnet_like_net.18} parent=0 // pred_check
    _
  $region19: #{resnet_like_net.18} parent=0 // pred_check_branch
    %293 = sbr.rel (0) target = $region21
  $region20: #{resnet_like_net.18} parent=0 // pred_region
    _
  $region21: #{resnet_like_net.18} parent=0 // pred_fallthru
    _
  // Predicated region
  $region22: #{resnet_like_net.18} parent=0 // pred_check
    _
  $region23: #{resnet_like_net.18} parent=0 // pred_check_branch
    %295 = sbr.rel (0) target = $region25
  $region24: #{resnet_like_net.18} parent=0 // pred_region
    _
  $region25: #{resnet_like_net.18} parent=0 // pred_fallthru
    _

// kernel: resnet_like_net.17
$region0: #{resnet_like_net.17}
  #allocation0 [shape = 'u32[]', space=smem, size = 0x4, offset = 0x4, fixed_abs, tag = 'smem constant byte address 0x4 - core index']
  #allocation1 [shape = 'u32[144,128]{1,0:T(1,128)}', space=vmem, size = 0x12000, scoped, tag = 'internal scratch']
  %s0 = inlined_call_operand.vmem [shape: f32[4,98,32], index: 0, kind: input, shape index: {}]
  %s1 = inlined_call_operand.vmem [shape: f32[1,32], index: 1, kind: input, shape index: {}]
  %s2 = inlined_call_operand.vmem [shape: f32[1,32], index: 2, kind: input, shape index: {}]
  %s3 = inlined_call_operand.vmem [shape: f32[32,16], index: 3, kind: input, shape index: {}]
  %s4 = inlined_call_operand.vmem [shape: f32[1,16], index: 4, kind: input, shape index: {}]
  %s5 = inlined_call_operand.vmem [shape: f32[1,16], index: 5, kind: input, shape index: {}]
  %s6 = inlined_call_operand.vmem [shape: f32[1,16], index: 6, kind: input, shape index: {}]
  %s7 = inlined_call_operand.vmem [shape: f32[98,16], index: 7, kind: output, shape index: {0}]
  %s8 = inlined_call_operand.vmem [shape: f32[98,32], index: 8, kind: output, shape index: {1}]
  %9 = xla_tuple %s7, %s8
  %s10 = sld [smem:[#allocation0]]
  $region46: #{resnet_like_net.17} parent=0
    _
  %s12 = ssub.s32 1, %s10
  %s13 = scalar_select 0, %s12, %s10
  // Predicated region
  $region2: #{resnet_like_net.17} parent=0 // pred_check
    _
  $region3: #{resnet_like_net.17} parent=0 // pred_check_branch
    %15 = sbr.rel (0) target = $region5
  $region4: #{resnet_like_net.17} parent=0 // pred_region
    _
  $region5: #{resnet_like_net.17} parent=0 // pred_fallthru
    _
  // Predicated region
  $region6: #{resnet_like_net.17} parent=0 // pred_check
    _
  $region7: #{resnet_like_net.17} parent=0 // pred_check_branch
    %17 = sbr.rel (0) target = $region9
  $region8: #{resnet_like_net.17} parent=0 // pred_region
    _
  $region9: #{resnet_like_net.17} parent=0 // pred_fallthru
    _
  // Predicated region
  $region10: #{resnet_like_net.17} parent=0 // pred_check
    _
  $region11: #{resnet_like_net.17} parent=0 // pred_check_branch
    %19 = sbr.rel (0) target = $region13
  $region12: #{resnet_like_net.17} parent=0 // pred_region
    _
  $region13: #{resnet_like_net.17} parent=0 // pred_fallthru
    _
  // Predicated region
  $region14: #{resnet_like_net.17} parent=0 // pred_check
    _
  $region15: #{resnet_like_net.17} parent=0 // pred_check_branch
    %21 = sbr.rel (0) target = $region17
  $region16: #{resnet_like_net.17} parent=0 // pred_region
    _
  $region17: #{resnet_like_net.17} parent=0 // pred_fallthru
    _
  // Predicated region
  $region18: #{resnet_like_net.17} parent=0 // pred_check
    _
  $region19: #{resnet_like_net.17} parent=0 // pred_check_branch
    %23 = sbr.rel (0) target = $region21
  $region20: #{resnet_like_net.17} parent=0 // pred_region
    _
  $region21: #{resnet_like_net.17} parent=0 // pred_fallthru
    _
  // Predicated region
  $region22: #{resnet_like_net.17} parent=0 // pred_check
    _
  $region23: #{resnet_like_net.17} parent=0 // pred_check_branch
    %25 = sbr.rel (0) target = $region25
  $region24: #{resnet_like_net.17} parent=0 // pred_region
    _
  $region25: #{resnet_like_net.17} parent=0 // pred_fallthru
    _
  // Predicated region
  $region26: #{resnet_like_net.17} parent=0 // pred_check
    _
  $region27: #{resnet_like_net.17} parent=0 // pred_check_branch
    %27 = sbr.rel (0) target = $region29
  $region28: #{resnet_like_net.17} parent=0 // pred_region
    _
  $region29: #{resnet_like_net.17} parent=0 // pred_fallthru
    _
  %v28 = vld [vmem:[%s0] sm:$0xff]
  %v29 = vld [vmem:[%s0 + $0x8] sm:$0xff]
  %v30 = vld [vmem:[%s0 + $0x10] sm:$0xff]
  %v31 = vld [vmem:[%s0 + $0x18] sm:$0xff]
  %v32 = vld [vmem:[%s0 + $0x20] sm:$0xff]
  %v33 = vld [vmem:[%s0 + $0x28] sm:$0xff]
  %v34 = vld [vmem:[%s0 + $0x30] sm:$0xff]
  %v35 = vld [vmem:[%s0 + $0x38] sm:$0xff]
  %v36 = vld [vmem:[%s0 + $0x40] sm:$0xff]
  %v37 = vld [vmem:[%s0 + $0x48] sm:$0xff]
  %v38 = vld [vmem:[%s0 + $0x50] sm:$0xff]
  %v39 = vld [vmem:[%s0 + $0x58] sm:$0xff]
  %v40 = vld [vmem:[%s0 + $0x60] sm:$0x3]
  %s41 = scalar_lea.vmem %s0, 104
  %v42 = vld [vmem:[%s41] sm:$0xff]
  %v43 = vld [vmem:[%s41 + $0x8] sm:$0xff]
  %v44 = vld [vmem:[%s41 + $0x10] sm:$0xff]
  %v45 = vld [vmem:[%s41 + $0x18] sm:$0xff]
  %v46 = vld [vmem:[%s41 + $0x20] sm:$0xff]
  %v47 = vld [vmem:[%s41 + $0x28] sm:$0xff]
  %v48 = vld [vmem:[%s41 + $0x30] sm:$0xff]
  %v49 = vld [vmem:[%s41 + $0x38] sm:$0xff]
  %v50 = vld [vmem:[%s41 + $0x40] sm:$0xff]
  %v51 = vld [vmem:[%s41 + $0x48] sm:$0xff]
  %v52 = vld [vmem:[%s41 + $0x50] sm:$0xff]
  %v53 = vld [vmem:[%s41 + $0x58] sm:$0xff]
  %v54 = vld [vmem:[%s41 + $0x60] sm:$0x3]
  %v55 = vmax.f32 %v28, %v42
  %v56 = vmax.f32 %v29, %v43
  %v57 = vmax.f32 %v30, %v44
  %v58 = vmax.f32 %v31, %v45
  %v59 = vmax.f32 %v32, %v46
  %v60 = vmax.f32 %v33, %v47
  %v61 = vmax.f32 %v34, %v48
  %v62 = vmax.f32 %v35, %v49
  %v63 = vmax.f32 %v36, %v50
  %v64 = vmax.f32 %v37, %v51
  %v65 = vmax.f32 %v38, %v52
  %v66 = vmax.f32 %v39, %v53
  %v67 = vmax.f32 %v40, %v54
  %s68 = scalar_lea.vmem %s0, 208
  %v69 = vld [vmem:[%s68] sm:$0xff]
  %v70 = vld [vmem:[%s68 + $0x8] sm:$0xff]
  %v71 = vld [vmem:[%s68 + $0x10] sm:$0xff]
  %v72 = vld [vmem:[%s68 + $0x18] sm:$0xff]
  %v73 = vld [vmem:[%s68 + $0x20] sm:$0xff]
  %v74 = vld [vmem:[%s68 + $0x28] sm:$0xff]
  %v75 = vld [vmem:[%s68 + $0x30] sm:$0xff]
  %v76 = vld [vmem:[%s68 + $0x38] sm:$0xff]
  %v77 = vld [vmem:[%s68 + $0x40] sm:$0xff]
  %v78 = vld [vmem:[%s68 + $0x48] sm:$0xff]
  %v79 = vld [vmem:[%s68 + $0x50] sm:$0xff]
  %v80 = vld [vmem:[%s68 + $0x58] sm:$0xff]
  %v81 = vld [vmem:[%s68 + $0x60] sm:$0x3]
  %v82 = vmax.f32 %v55, %v69
  %v83 = vmax.f32 %v56, %v70
  %v84 = vmax.f32 %v57, %v71
  %v85 = vmax.f32 %v58, %v72
  %v86 = vmax.f32 %v59, %v73
  %v87 = vmax.f32 %v60, %v74
  %v88 = vmax.f32 %v61, %v75
  %v89 = vmax.f32 %v62, %v76
  %v90 = vmax.f32 %v63, %v77
  %v91 = vmax.f32 %v64, %v78
  %v92 = vmax.f32 %v65, %v79
  %v93 = vmax.f32 %v66, %v80
  %v94 = vmax.f32 %v67, %v81
  %s95 = scalar_lea.vmem %s0, 312
  %v96 = vld [vmem:[%s95] sm:$0xff]
  %v97 = vld [vmem:[%s95 + $0x8] sm:$0xff]
  %v98 = vld [vmem:[%s95 + $0x10] sm:$0xff]
  %v99 = vld [vmem:[%s95 + $0x18] sm:$0xff]
  %v100 = vld [vmem:[%s95 + $0x20] sm:$0xff]
  %v101 = vld [vmem:[%s95 + $0x28] sm:$0xff]
  %v102 = vld [vmem:[%s95 + $0x30] sm:$0xff]
  %v103 = vld [vmem:[%s95 + $0x38] sm:$0xff]
  %v104 = vld [vmem:[%s95 + $0x40] sm:$0xff]
  %v105 = vld [vmem:[%s95 + $0x48] sm:$0xff]
  %v106 = vld [vmem:[%s95 + $0x50] sm:$0xff]
  %v107 = vld [vmem:[%s95 + $0x58] sm:$0xff]
  %v108 = vld [vmem:[%s95 + $0x60] sm:$0x3]
  %v109 = vmax.f32 %v82, %v96
  %v110 = vmax.f32 %v83, %v97
  %v111 = vmax.f32 %v84, %v98
  %v112 = vmax.f32 %v85, %v99
  %v113 = vmax.f32 %v86, %v100
  %v114 = vmax.f32 %v87, %v101
  %v115 = vmax.f32 %v88, %v102
  %v116 = vmax.f32 %v89, %v103
  %v117 = vmax.f32 %v90, %v104
  %v118 = vmax.f32 %v91, %v105
  %v119 = vmax.f32 %v92, %v106
  %v120 = vmax.f32 %v93, %v107
  %v121 = vmax.f32 %v94, %v108
  %vm122 = vcmask 261120
  %v123 = vsel %vm122, %v109, 0.0
  %v124 = vsel %vm122, %v110, 0.0
  %v125 = vadd.f32 %v123, %v124
  %v126 = vsel %vm122, %v111, 0.0
  %v127 = vadd.f32 %v125, %v126
  %v128 = vsel %vm122, %v112, 0.0
  %v129 = vadd.f32 %v127, %v128
  %v130 = vsel %vm122, %v113, 0.0
  %v131 = vadd.f32 %v129, %v130
  %v132 = vsel %vm122, %v114, 0.0
  %v133 = vadd.f32 %v131, %v132
  %v134 = vsel %vm122, %v115, 0.0
  %v135 = vadd.f32 %v133, %v134
  %v136 = vsel %vm122, %v116, 0.0
  %v137 = vadd.f32 %v135, %v136
  %v138 = vsel %vm122, %v117, 0.0
  %v139 = vadd.f32 %v137, %v138
  %v140 = vsel %vm122, %v118, 0.0
  %v141 = vadd.f32 %v139, %v140
  %v142 = vsel %vm122, %v119, 0.0
  %v143 = vadd.f32 %v141, %v142
  %v144 = vsel %vm122, %v120, 0.0
  %v145 = vadd.f32 %v143, %v144
  %vm146 = vcmask 254976
  %v147 = vsel %vm146, %v121, 0.0
  %v148 = vadd.f32 %v145, %v147
  %v149 = vrot.slane %v148, 4
  %v150 = vadd.f32 %v148, %v149
  %v151 = vrot.slane %v150, 2
  %v152 = vadd.f32 %v150, %v151
  %v153 = vrot.slane %v152, 1
  %v154 = vadd.f32 %v152, %v153
  %v155 = vrcp.pop 98.0
  %v156 = vmul.f32 %v154, %v155
  %v157 = vsub.f32 %v109, %v156
  %v158 = vsub.f32 %v110, %v156
  %v159 = vsub.f32 %v111, %v156
  %v160 = vsub.f32 %v112, %v156
  %v161 = vsub.f32 %v113, %v156
  %v162 = vsub.f32 %v114, %v156
  %v163 = vsub.f32 %v115, %v156
  %v164 = vsub.f32 %v116, %v156
  %v165 = vsub.f32 %v117, %v156
  %v166 = vsub.f32 %v118, %v156
  %v167 = vsub.f32 %v119, %v156
  %v168 = vsub.f32 %v120, %v156
  %v169 = vsub.f32 %v121, %v156
  %v170 = vmul.f32 %v157, %v157
  %v171 = vmul.f32 %v158, %v158
  %v172 = vmul.f32 %v159, %v159
  %v173 = vmul.f32 %v160, %v160
  %v174 = vmul.f32 %v161, %v161
  %v175 = vmul.f32 %v162, %v162
  %v176 = vmul.f32 %v163, %v163
  %v177 = vmul.f32 %v164, %v164
  %v178 = vmul.f32 %v165, %v165
  %v179 = vmul.f32 %v166, %v166
  %v180 = vmul.f32 %v167, %v167
  %v181 = vmul.f32 %v168, %v168
  %v182 = vmul.f32 %v169, %v169
  %v183 = vsel %vm122, %v170, 0.0
  %v184 = vsel %vm122, %v171, 0.0
  %v185 = vadd.f32 %v183, %v184
  %v186 = vsel %vm122, %v172, 0.0
  %v187 = vadd.f32 %v185, %v186
  %v188 = vsel %vm122, %v173, 0.0
  %v189 = vadd.f32 %v187, %v188
  %v190 = vsel %vm122, %v174, 0.0
  %v191 = vadd.f32 %v189, %v190
  %v192 = vsel %vm122, %v175, 0.0
  %v193 = vadd.f32 %v191, %v192
  %v194 = vsel %vm122, %v176, 0.0
  %v195 = vadd.f32 %v193, %v194
  %v196 = vsel %vm122, %v177, 0.0
  %v197 = vadd.f32 %v195, %v196
  %v198 = vsel %vm122, %v178, 0.0
  %v199 = vadd.f32 %v197, %v198
  %v200 = vsel %vm122, %v179, 0.0
  %v201 = vadd.f32 %v199, %v200
  %v202 = vsel %vm122, %v180, 0.0
  %v203 = vadd.f32 %v201, %v202
  %v204 = vsel %vm122, %v181, 0.0
  %v205 = vadd.f32 %v203, %v204
  %v206 = vsel %vm146, %v182, 0.0
  %v207 = vadd.f32 %v205, %v206
  %v208 = vrot.slane %v207, 4
  %v209 = vadd.f32 %v207, %v208
  %v210 = vrot.slane %v209, 2
  %v211 = vadd.f32 %v209, %v210
  %v212 = vrot.slane %v211, 1
  %v213 = vadd.f32 %v211, %v212
  %v214 = vmul.f32 %v213, %v155
  %v215 = vadd.f32 %v214, 1e-05
  %v216 = vrsqrt.pop %v215
  %v217 = vmul.f32 %v157, %v216
  %v218 = vmul.f32 %v158, %v216
  %v219 = vmul.f32 %v159, %v216
  %v220 = vmul.f32 %v160, %v216
  %v221 = vmul.f32 %v161, %v216
  %v222 = vmul.f32 %v162, %v216
  %v223 = vmul.f32 %v163, %v216
  %v224 = vmul.f32 %v164, %v216
  %v225 = vmul.f32 %v165, %v216
  %v226 = vmul.f32 %v166, %v216
  %v227 = vmul.f32 %v167, %v216
  %v228 = vmul.f32 %v168, %v216
  %v229 = vmul.f32 %v169, %v216
  %v230 = vld [vmem:[%s1] sm:$0x1]
  %v232 = vlaneseq
  %v233 = vshrl.u32 %v232, 7
  %v234 = vsub.s32 0, %v233
  %v235 = vrot.slane %v230, %v234
  %v237 = vmul.f32 %v217, %v235
  %v238 = vmul.f32 %v218, %v235
  %v239 = vmul.f32 %v219, %v235
  %v240 = vmul.f32 %v220, %v235
  %v241 = vmul.f32 %v221, %v235
  %v242 = vmul.f32 %v222, %v235
  %v243 = vmul.f32 %v223, %v235
  %v244 = vmul.f32 %v224, %v235
  %v245 = vmul.f32 %v225, %v235
  %v246 = vmul.f32 %v226, %v235
  %v247 = vmul.f32 %v227, %v235
  %v248 = vmul.f32 %v228, %v235
  %v249 = vmul.f32 %v229, %v235
  %v250 = vld [vmem:[%s2] sm:$0x1]
  %v252 = vlaneseq
  %v253 = vshrl.u32 %v252, 7
  %v254 = vsub.s32 0, %v253
  %v255 = vrot.slane %v250, %v254
  %v257 = vadd.f32 %v237, %v255
  %v258 = vadd.f32 %v238, %v255
  %v259 = vadd.f32 %v239, %v255
  %v260 = vadd.f32 %v240, %v255
  %v261 = vadd.f32 %v241, %v255
  %v262 = vadd.f32 %v242, %v255
  %v263 = vadd.f32 %v243, %v255
  %v264 = vadd.f32 %v244, %v255
  %v265 = vadd.f32 %v245, %v255
  %v266 = vadd.f32 %v246, %v255
  %v267 = vadd.f32 %v247, %v255
  %v268 = vadd.f32 %v248, %v255
  %v269 = vadd.f32 %v249, %v255
  %v270 = vmax.f32 %v257, 0.0
  %v271 = vmax.f32 %v258, 0.0
  %v272 = vmax.f32 %v259, 0.0
  %v273 = vmax.f32 %v260, 0.0
  %v274 = vmax.f32 %v261, 0.0
  %v275 = vmax.f32 %v262, 0.0
  %v276 = vmax.f32 %v263, 0.0
  %v277 = vmax.f32 %v264, 0.0
  %v278 = vmax.f32 %v265, 0.0
  %v279 = vmax.f32 %v266, 0.0
  %v280 = vmax.f32 %v267, 0.0
  %v281 = vmax.f32 %v268, 0.0
  %v282 = vmax.f32 %v269, 0.0
  %v283 = vld [vmem:[%s3] sm:$0xff]
  %v284 = vld [vmem:[%s3 + $0x8] sm:$0xff]
  %v285 = vld [vmem:[%s3 + $0x10] sm:$0xff]
  %v286 = vld [vmem:[%s3 + $0x18] sm:$0xff]
  %v287 = vld [vmem:[%s4] sm:$0x1]
  %v289 = vlaneseq
  %v290 = vshrl.u32 %v289, 7
  %v291 = vsub.s32 0, %v290
  %v292 = vrot.slane %v287, %v291
  %v295 = vsel %vm122, %v270, 0
  %v298 = vsel %vm122, %v271, 0
  %v301 = vsel %vm122, %v272, 0
  %v304 = vsel %vm122, %v273, 0
  %v307 = vsel %vm122, %v274, 0
  %v310 = vsel %vm122, %v275, 0
  %v313 = vsel %vm122, %v276, 0
  %v316 = vsel %vm122, %v277, 0
  %v319 = vsel %vm122, %v278, 0
  %v322 = vsel %vm122, %v279, 0
  %v325 = vsel %vm122, %v280, 0
  %v328 = vsel %vm122, %v281, 0
  %v331 = vsel %vm122, %v282, 0
  %333 = vmatprep.subr.mxu0 0.0
  %334 = vmatpush1.msra.mxu0 %v283
  %335 = vmatprep.subr.mxu0 0.0
  %336 = vmatpush1.msra.mxu0 %v284
  %337 = vmatprep.subr.mxu0 0.0
  %338 = vmatpush1.msra.mxu0 %v285
  %339 = vmatprep.subr.mxu0 0.0
  %340 = vmatpush1.msra.mxu0 %v286
  %341 = vmatprep.subr.mxu0 0.0
  %342 = vmatpush1.msra.mxu0 0.0
  %343 = vmatprep.subr.mxu0 0.0
  %344 = vmatpush1.msra.mxu0 0.0
  %345 = vmatprep.subr.mxu0 0.0
  %346 = vmatpush1.msra.mxu0 0.0
  %347 = vmatprep.subr.mxu0 0.0
  %348 = vmatpush1.msra.mxu0 0.0
  %349 = vmatprep.subr.mxu0 0.0
  %350 = vmatpush1.msra.mxu0 0.0
  %351 = vmatprep.subr.mxu0 0.0
  %352 = vmatpush1.msra.mxu0 0.0
  %353 = vmatprep.subr.mxu0 0.0
  %354 = vmatpush1.msra.mxu0 0.0
  %355 = vmatprep.subr.mxu0 0.0
  %356 = vmatpush1.msra.mxu0 0.0
  %357 = vmatprep.subr.mxu0 0.0
  %358 = vmatpush1.msra.mxu0 0.0
  %359 = vmatprep.subr.mxu0 0.0
  %360 = vmatpush1.msra.mxu0 0.0
  %361 = vmatprep.subr.mxu0 0.0
  %362 = vmatpush1.msra.mxu0 0.0
  %363 = vmatprep.subr.mxu0 0.0
  %364 = vmatpush1.msra.mxu0 0.0
  %365 = vmatprep.subr.mxu0 0.0
  %366 = vmatpush1.msra.mxu0 0.0
  %367 = vmatprep.subr.mxu0 0.0
  %368 = vmatpush1.msra.mxu0 0.0
  %369 = vmatprep.subr.mxu0 0.0
  %370 = vmatpush1.msra.mxu0 0.0
  %371 = vmatprep.subr.mxu0 0.0
  %372 = vmatpush1.msra.mxu0 0.0
  %373 = vmatprep.subr.mxu0 0.0
  %374 = vmatpush1.msra.mxu0 0.0
  %375 = vmatprep.subr.mxu0 0.0
  %376 = vmatpush1.msra.mxu0 0.0
  %377 = vmatprep.subr.mxu0 0.0
  %378 = vmatpush1.msra.mxu0 0.0
  %379 = vmatprep.subr.mxu0 0.0
  %380 = vmatpush1.msra.mxu0 0.0
  %381 = vmatprep.subr.mxu0 0.0
  %382 = vmatpush1.msra.mxu0 0.0
  %383 = vmatprep.subr.mxu0 0.0
  %384 = vmatpush1.msra.mxu0 0.0
  %385 = vmatprep.subr.mxu0 0.0
  %386 = vmatpush1.msra.mxu0 0.0
  %387 = vmatprep.subr.mxu0 0.0
  %388 = vmatpush1.msra.mxu0 0.0
  %389 = vmatprep.subr.mxu0 0.0
  %390 = vmatpush1.msra.mxu0 0.0
  %391 = vmatprep.subr.mxu0 0.0
  %392 = vmatpush1.msra.mxu0 0.0
  %393 = vmatprep.subr.mxu0 0.0
  %394 = vmatpush1.msra.mxu0 0.0
  %395 = vmatprep.subr.mxu0 0.0
  %396 = vmatpush1.msra.mxu0 0.0
  %397 = vmatprep.mubr.f32.mxu0 0.0
  %398 = vmatmul.mubr.f32.gmra.mrb[0].mxu0 %v295
  %v399 = vpop.f32.mrb[0].mxu0
  %v400 = vadd.f32 %v292, %v399
  %v401 = vpop.f32.mrb[0].mxu0
  %402 = vmatprep.mubr.f32.mxu0 0.0
  %403 = vmatmul.mubr.f32.gmra.mrb[0].mxu0 %v298
  %v404 = vpop.f32.mrb[0].mxu0
  %v405 = vadd.f32 %v292, %v404
  %v406 = vpop.f32.mrb[0].mxu0
  %407 = vmatprep.mubr.f32.mxu0 0.0
  %408 = vmatmul.mubr.f32.gmra.mrb[0].mxu0 %v301
  %v409 = vpop.f32.mrb[0].mxu0
  %v410 = vadd.f32 %v292, %v409
  %v411 = vpop.f32.mrb[0].mxu0
  %412 = vmatprep.mubr.f32.mxu0 0.0
  %413 = vmatmul.mubr.f32.gmra.mrb[0].mxu0 %v304
  %v414 = vpop.f32.mrb[0].mxu0
  %v415 = vadd.f32 %v292, %v414
  %v416 = vpop.f32.mrb[0].mxu0
  %417 = vmatprep.mubr.f32.mxu0 0.0
  %418 = vmatmul.mubr.f32.gmra.mrb[0].mxu0 %v307
  %v419 = vpop.f32.mrb[0].mxu0
  %v420 = vadd.f32 %v292, %v419
  %v421 = vpop.f32.mrb[0].mxu0
  %422 = vmatprep.mubr.f32.mxu0 0.0
  %423 = vmatmul.mubr.f32.gmra.mrb[0].mxu0 %v310
  %v424 = vpop.f32.mrb[0].mxu0
  %v425 = vadd.f32 %v292, %v424
  %v426 = vpop.f32.mrb[0].mxu0
  %427 = vmatprep.mubr.f32.mxu0 0.0
  %428 = vmatmul.mubr.f32.gmra.mrb[0].mxu0 %v313
  %v429 = vpop.f32.mrb[0].mxu0
  %v430 = vadd.f32 %v292, %v429
  %v431 = vpop.f32.mrb[0].mxu0
  %432 = vmatprep.mubr.f32.mxu0 0.0
  %433 = vmatmul.mubr.f32.gmra.mrb[0].mxu0 %v316
  %v434 = vpop.f32.mrb[0].mxu0
  %v435 = vadd.f32 %v292, %v434
  %v436 = vpop.f32.mrb[0].mxu0
  %437 = vmatprep.mubr.f32.mxu0 0.0
  %438 = vmatmul.mubr.f32.gmra.mrb[0].mxu0 %v319
  %v439 = vpop.f32.mrb[0].mxu0
  %v440 = vadd.f32 %v292, %v439
  %v441 = vpop.f32.mrb[0].mxu0
  %442 = vmatprep.mubr.f32.mxu0 0.0
  %443 = vmatmul.mubr.f32.gmra.mrb[0].mxu0 %v322
  %v444 = vpop.f32.mrb[0].mxu0
  %v445 = vadd.f32 %v292, %v444
  %v446 = vpop.f32.mrb[0].mxu0
  %447 = vmatprep.mubr.f32.mxu0 0.0
  %448 = vmatmul.mubr.f32.gmra.mrb[0].mxu0 %v325
  %v449 = vpop.f32.mrb[0].mxu0
  %v450 = vadd.f32 %v292, %v449
  %v451 = vpop.f32.mrb[0].mxu0
  %452 = vmatprep.mubr.f32.mxu0 0.0
  %453 = vmatmul.mubr.f32.gmra.mrb[0].mxu0 %v328
  %v454 = vpop.f32.mrb[0].mxu0
  %v455 = vadd.f32 %v292, %v454
  %v456 = vpop.f32.mrb[0].mxu0
  %457 = vmatprep.mubr.f32.mxu0 0.0
  %458 = vmatmul.mubr.f32.gmra.mrb[0].mxu0 %v331
  %v459 = vpop.f32.mrb[0].mxu0
  %v460 = vadd.f32 %v292, %v459
  %v461 = vpop.f32.mrb[0].mxu0
  %462 = vdwg.mxu0
  %vm463 = vcmask 130048
  %v464 = vsel %vm463, %v400, 0.0
  %v465 = vsel %vm463, %v405, 0.0
  %v466 = vadd.f32 %v464, %v465
  %v467 = vsel %vm463, %v410, 0.0
  %v468 = vadd.f32 %v466, %v467
  %v469 = vsel %vm463, %v415, 0.0
  %v470 = vadd.f32 %v468, %v469
  %v471 = vsel %vm463, %v420, 0.0
  %v472 = vadd.f32 %v470, %v471
  %v473 = vsel %vm463, %v425, 0.0
  %v474 = vadd.f32 %v472, %v473
  %v475 = vsel %vm463, %v430, 0.0
  %v476 = vadd.f32 %v474, %v475
  %v477 = vsel %vm463, %v435, 0.0
  %v478 = vadd.f32 %v476, %v477
  %v479 = vsel %vm463, %v440, 0.0
  %v480 = vadd.f32 %v478, %v479
  %v481 = vsel %vm463, %v445, 0.0
  %v482 = vadd.f32 %v480, %v481
  %v483 = vsel %vm463, %v450, 0.0
  %v484 = vadd.f32 %v482, %v483
  %v485 = vsel %vm463, %v455, 0.0
  %v486 = vadd.f32 %v484, %v485
  %vm487 = vcmask 123904
  %v488 = vsel %vm487, %v460, 0.0
  %v489 = vadd.f32 %v486, %v488
  %v490 = vrot.slane %v489, 4
  %v491 = vadd.f32 %v489, %v490
  %v492 = vrot.slane %v491, 2
  %v493 = vadd.f32 %v491, %v492
  %v494 = vrot.slane %v493, 1
  %v495 = vadd.f32 %v493, %v494
  %v496 = vmul.f32 %v495, %v155
  %v497 = vsub.f32 %v400, %v496
  %v498 = vsub.f32 %v405, %v496
  %v499 = vsub.f32 %v410, %v496
  %v500 = vsub.f32 %v415, %v496
  %v501 = vsub.f32 %v420, %v496
  %v502 = vsub.f32 %v425, %v496
  %v503 = vsub.f32 %v430, %v496
  %v504 = vsub.f32 %v435, %v496
  %v505 = vsub.f32 %v440, %v496
  %v506 = vsub.f32 %v445, %v496
  %v507 = vsub.f32 %v450, %v496
  %v508 = vsub.f32 %v455, %v496
  %v509 = vsub.f32 %v460, %v496
  %v510 = vmul.f32 %v497, %v497
  %v511 = vmul.f32 %v498, %v498
  %v512 = vmul.f32 %v499, %v499
  %v513 = vmul.f32 %v500, %v500
  %v514 = vmul.f32 %v501, %v501
  %v515 = vmul.f32 %v502, %v502
  %v516 = vmul.f32 %v503, %v503
  %v517 = vmul.f32 %v504, %v504
  %v518 = vmul.f32 %v505, %v505
  %v519 = vmul.f32 %v506, %v506
  %v520 = vmul.f32 %v507, %v507
  %v521 = vmul.f32 %v508, %v508
  %v522 = vmul.f32 %v509, %v509
  %v523 = vsel %vm463, %v510, 0.0
  %v524 = vsel %vm463, %v511, 0.0
  %v525 = vadd.f32 %v523, %v524
  %v526 = vsel %vm463, %v512, 0.0
  %v527 = vadd.f32 %v525, %v526
  %v528 = vsel %vm463, %v513, 0.0
  %v529 = vadd.f32 %v527, %v528
  %v530 = vsel %vm463, %v514, 0.0
  %v531 = vadd.f32 %v529, %v530
  %v532 = vsel %vm463, %v515, 0.0
  %v533 = vadd.f32 %v531, %v532
  %v534 = vsel %vm463, %v516, 0.0
  %v535 = vadd.f32 %v533, %v534
  %v536 = vsel %vm463, %v517, 0.0
  %v537 = vadd.f32 %v535, %v536
  %v538 = vsel %vm463, %v518, 0.0
  %v539 = vadd.f32 %v537, %v538
  %v540 = vsel %vm463, %v519, 0.0
  %v541 = vadd.f32 %v539, %v540
  %v542 = vsel %vm463, %v520, 0.0
  %v543 = vadd.f32 %v541, %v542
  %v544 = vsel %vm463, %v521, 0.0
  %v545 = vadd.f32 %v543, %v544
  %v546 = vsel %vm487, %v522, 0.0
  %v547 = vadd.f32 %v545, %v546
  %v548 = vrot.slane %v547, 4
  %v549 = vadd.f32 %v547, %v548
  %v550 = vrot.slane %v549, 2
  %v551 = vadd.f32 %v549, %v550
  %v552 = vrot.slane %v551, 1
  %v553 = vadd.f32 %v551, %v552
  %v554 = vmul.f32 %v553, %v155
  %v555 = vadd.f32 %v554, 1e-05
  %v556 = vrsqrt.pop %v555
  %v557 = vmul.f32 %v497, %v556
  %v558 = vmul.f32 %v498, %v556
  %v559 = vmul.f32 %v499, %v556
  %v560 = vmul.f32 %v500, %v556
  %v561 = vmul.f32 %v501, %v556
  %v562 = vmul.f32 %v502, %v556
  %v563 = vmul.f32 %v503, %v556
  %v564 = vmul.f32 %v504, %v556
  %v565 = vmul.f32 %v505, %v556
  %v566 = vmul.f32 %v506, %v556
  %v567 = vmul.f32 %v507, %v556
  %v568 = vmul.f32 %v508, %v556
  %v569 = vmul.f32 %v509, %v556
  %v570 = vld [vmem:[%s5] sm:$0x1]
  %v572 = vlaneseq
  %v573 = vshrl.u32 %v572, 7
  %v574 = vsub.s32 0, %v573
  %v575 = vrot.slane %v570, %v574
  %v577 = vmul.f32 %v557, %v575
  %v578 = vmul.f32 %v558, %v575
  %v579 = vmul.f32 %v559, %v575
  %v580 = vmul.f32 %v560, %v575
  %v581 = vmul.f32 %v561, %v575
  %v582 = vmul.f32 %v562, %v575
  %v583 = vmul.f32 %v563, %v575
  %v584 = vmul.f32 %v564, %v575
  %v585 = vmul.f32 %v565, %v575
  %v586 = vmul.f32 %v566, %v575
  %v587 = vmul.f32 %v567, %v575
  %v588 = vmul.f32 %v568, %v575
  %v589 = vmul.f32 %v569, %v575
  %v590 = vld [vmem:[%s6] sm:$0x1]
  %v592 = vlaneseq
  %v593 = vshrl.u32 %v592, 7
  %v594 = vsub.s32 0, %v593
  %v595 = vrot.slane %v590, %v594
  %v597 = vadd.f32 %v577, %v595
  %v598 = vadd.f32 %v578, %v595
  %v599 = vadd.f32 %v579, %v595
  %v600 = vadd.f32 %v580, %v595
  %v601 = vadd.f32 %v581, %v595
  %v602 = vadd.f32 %v582, %v595
  %v603 = vadd.f32 %v583, %v595
  %v604 = vadd.f32 %v584, %v595
  %v605 = vadd.f32 %v585, %v595
  %v606 = vadd.f32 %v586, %v595
  %v607 = vadd.f32 %v587, %v595
  %v608 = vadd.f32 %v588, %v595
  %v609 = vadd.f32 %v589, %v595
  %610 = vst.msk [vmem:[%s7] sm:$0xff] %vm463, %v597
  %611 = vst.msk [vmem:[%s7 + $0x8] sm:$0xff] %vm463, %v598
  %612 = vst.msk [vmem:[%s7 + $0x10] sm:$0xff] %vm463, %v599
  %613 = vst.msk [vmem:[%s7 + $0x18] sm:$0xff] %vm463, %v600
  %614 = vst.msk [vmem:[%s7 + $0x20] sm:$0xff] %vm463, %v601
  %615 = vst.msk [vmem:[%s7 + $0x28] sm:$0xff] %vm463, %v602
  %616 = vst.msk [vmem:[%s7 + $0x30] sm:$0xff] %vm463, %v603
  %617 = vst.msk [vmem:[%s7 + $0x38] sm:$0xff] %vm463, %v604
  %618 = vst.msk [vmem:[%s7 + $0x40] sm:$0xff] %vm463, %v605
  %619 = vst.msk [vmem:[%s7 + $0x48] sm:$0xff] %vm463, %v606
  %620 = vst.msk [vmem:[%s7 + $0x50] sm:$0xff] %vm463, %v607
  %621 = vst.msk [vmem:[%s7 + $0x58] sm:$0xff] %vm463, %v608
  %622 = vst.msk [vmem:[%s7 + $0x60] sm:$0x3] %vm487, %v609
  %623 = vst.msk [vmem:[%s8] sm:$0xff] %vm122, %v109
  %624 = vst.msk [vmem:[%s8 + $0x8] sm:$0xff] %vm122, %v110
  %625 = vst.msk [vmem:[%s8 + $0x10] sm:$0xff] %vm122, %v111
  %626 = vst.msk [vmem:[%s8 + $0x18] sm:$0xff] %vm122, %v112
  %627 = vst.msk [vmem:[%s8 + $0x20] sm:$0xff] %vm122, %v113
  %628 = vst.msk [vmem:[%s8 + $0x28] sm:$0xff] %vm122, %v114
  %629 = vst.msk [vmem:[%s8 + $0x30] sm:$0xff] %vm122, %v115
  %630 = vst.msk [vmem:[%s8 + $0x38] sm:$0xff] %vm122, %v116
  %631 = vst.msk [vmem:[%s8 + $0x40] sm:$0xff] %vm122, %v117
  %632 = vst.msk [vmem:[%s8 + $0x48] sm:$0xff] %vm122, %v118
  %633 = vst.msk [vmem:[%s8 + $0x50] sm:$0xff] %vm122, %v119
  %634 = vst.msk [vmem:[%s8 + $0x58] sm:$0xff] %vm122, %v120
  %635 = vst.msk [vmem:[%s8 + $0x60] sm:$0x3] %vm146, %v121
  // Predicated region
  $region30: #{resnet_like_net.17} parent=0 // pred_check
    _
  $region31: #{resnet_like_net.17} parent=0 // pred_check_branch
    %637 = sbr.rel (0) target = $region33
  $region32: #{resnet_like_net.17} parent=0 // pred_region
    _
  $region33: #{resnet_like_net.17} parent=0 // pred_fallthru
    _
  // Predicated region
  $region34: #{resnet_like_net.17} parent=0 // pred_check
    _
  $region35: #{resnet_like_net.17} parent=0 // pred_check_branch
    %639 = sbr.rel (0) target = $region37
  $region36: #{resnet_like_net.17} parent=0 // pred_region
    _
  $region37: #{resnet_like_net.17} parent=0 // pred_fallthru
    _
  // Predicated region
  $region38: #{resnet_like_net.17} parent=0 // pred_check
    _
  $region39: #{resnet_like_net.17} parent=0 // pred_check_branch
    %641 = sbr.rel (0) target = $region41
  $region40: #{resnet_like_net.17} parent=0 // pred_region
    _
  $region41: #{resnet_like_net.17} parent=0 // pred_fallthru
    _
  // Predicated region
  $region42: #{resnet_like_net.17} parent=0 // pred_check
    _
  $region43: #{resnet_like_net.17} parent=0 // pred_check_branch
    %643 = sbr.rel (0) target = $region45
  $region44: #{resnet_like_net.17} parent=0 // pred_region
    _
  $region45: #{resnet_like_net.17} parent=0 // pred_fallthru
    _

// kernel: resnet_like_net.19
$region0: #{resnet_like_net.19}
  #allocation0 [shape = 'u32[]', space=smem, size = 0x4, offset = 0x4, fixed_abs, tag = 'smem constant byte address 0x4 - core index']
  #allocation1 [shape = 'u32[144,128]{1,0:T(1,128)}', space=vmem, size = 0x12000, scoped, tag = 'internal scratch']
  %s0 = inlined_call_operand.vmem [shape: f32[1,98,32], index: 0, kind: input, shape index: {}]
  %s1 = inlined_call_operand.vmem [shape: f32[1,32], index: 1, kind: input, shape index: {}]
  %s2 = inlined_call_operand.vmem [shape: f32[1,32], index: 2, kind: input, shape index: {}]
  %s3 = inlined_call_operand.vmem [shape: f32[32,16], index: 3, kind: input, shape index: {}]
  %s4 = inlined_call_operand.vmem [shape: f32[1,16], index: 4, kind: input, shape index: {}]
  %s5 = inlined_call_operand.vmem [shape: f32[1,16], index: 5, kind: input, shape index: {}]
  %s6 = inlined_call_operand.vmem [shape: f32[1,16], index: 6, kind: input, shape index: {}]
  %s7 = inlined_call_operand.vmem [shape: f32[98,16], index: 7, kind: output, shape index: {}]
  %s8 = sld [smem:[#allocation0]]
  $region38: #{resnet_like_net.19} parent=0
    _
  %s10 = ssub.s32 1, %s8
  %s11 = scalar_select 0, %s10, %s8
  // Predicated region
  $region2: #{resnet_like_net.19} parent=0 // pred_check
    _
  $region3: #{resnet_like_net.19} parent=0 // pred_check_branch
    %13 = sbr.rel (0) target = $region5
  $region4: #{resnet_like_net.19} parent=0 // pred_region
    _
  $region5: #{resnet_like_net.19} parent=0 // pred_fallthru
    _
  // Predicated region
  $region6: #{resnet_like_net.19} parent=0 // pred_check
    _
  $region7: #{resnet_like_net.19} parent=0 // pred_check_branch
    %15 = sbr.rel (0) target = $region9
  $region8: #{resnet_like_net.19} parent=0 // pred_region
    _
  $region9: #{resnet_like_net.19} parent=0 // pred_fallthru
    _
  // Predicated region
  $region10: #{resnet_like_net.19} parent=0 // pred_check
    _
  $region11: #{resnet_like_net.19} parent=0 // pred_check_branch
    %17 = sbr.rel (0) target = $region13
  $region12: #{resnet_like_net.19} parent=0 // pred_region
    _
  $region13: #{resnet_like_net.19} parent=0 // pred_fallthru
    _
  // Predicated region
  $region14: #{resnet_like_net.19} parent=0 // pred_check
    _
  $region15: #{resnet_like_net.19} parent=0 // pred_check_branch
    %19 = sbr.rel (0) target = $region17
  $region16: #{resnet_like_net.19} parent=0 // pred_region
    _
  $region17: #{resnet_like_net.19} parent=0 // pred_fallthru
    _
  // Predicated region
  $region18: #{resnet_like_net.19} parent=0 // pred_check
    _
  $region19: #{resnet_like_net.19} parent=0 // pred_check_branch
    %21 = sbr.rel (0) target = $region21
  $region20: #{resnet_like_net.19} parent=0 // pred_region
    _
  $region21: #{resnet_like_net.19} parent=0 // pred_fallthru
    _
  // Predicated region
  $region22: #{resnet_like_net.19} parent=0 // pred_check
    _
  $region23: #{resnet_like_net.19} parent=0 // pred_check_branch
    %23 = sbr.rel (0) target = $region25
  $region24: #{resnet_like_net.19} parent=0 // pred_region
    _
  $region25: #{resnet_like_net.19} parent=0 // pred_fallthru
    _
  // Predicated region
  $region26: #{resnet_like_net.19} parent=0 // pred_check
    _
  $region27: #{resnet_like_net.19} parent=0 // pred_check_branch
    %25 = sbr.rel (0) target = $region29
  $region28: #{resnet_like_net.19} parent=0 // pred_region
    _
  $region29: #{resnet_like_net.19} parent=0 // pred_fallthru
    _
  %v26 = vld [vmem:[%s0] sm:$0xff]
  %v27 = vld [vmem:[%s0 + $0x8] sm:$0xff]
  %v28 = vld [vmem:[%s0 + $0x10] sm:$0xff]
  %v29 = vld [vmem:[%s0 + $0x18] sm:$0xff]
  %v30 = vld [vmem:[%s0 + $0x20] sm:$0xff]
  %v31 = vld [vmem:[%s0 + $0x28] sm:$0xff]
  %v32 = vld [vmem:[%s0 + $0x30] sm:$0xff]
  %v33 = vld [vmem:[%s0 + $0x38] sm:$0xff]
  %v34 = vld [vmem:[%s0 + $0x40] sm:$0xff]
  %v35 = vld [vmem:[%s0 + $0x48] sm:$0xff]
  %v36 = vld [vmem:[%s0 + $0x50] sm:$0xff]
  %v37 = vld [vmem:[%s0 + $0x58] sm:$0xff]
  %v38 = vld [vmem:[%s0 + $0x60] sm:$0x3]
  %vm39 = vcmask 261120
  %v40 = vsel %vm39, %v26, 0.0
  %v41 = vsel %vm39, %v27, 0.0
  %v42 = vadd.f32 %v40, %v41
  %v43 = vsel %vm39, %v28, 0.0
  %v44 = vadd.f32 %v42, %v43
  %v45 = vsel %vm39, %v29, 0.0
  %v46 = vadd.f32 %v44, %v45
  %v47 = vsel %vm39, %v30, 0.0
  %v48 = vadd.f32 %v46, %v47
  %v49 = vsel %vm39, %v31, 0.0
  %v50 = vadd.f32 %v48, %v49
  %v51 = vsel %vm39, %v32, 0.0
  %v52 = vadd.f32 %v50, %v51
  %v53 = vsel %vm39, %v33, 0.0
  %v54 = vadd.f32 %v52, %v53
  %v55 = vsel %vm39, %v34, 0.0
  %v56 = vadd.f32 %v54, %v55
  %v57 = vsel %vm39, %v35, 0.0
  %v58 = vadd.f32 %v56, %v57
  %v59 = vsel %vm39, %v36, 0.0
  %v60 = vadd.f32 %v58, %v59
  %v61 = vsel %vm39, %v37, 0.0
  %v62 = vadd.f32 %v60, %v61
  %vm63 = vcmask 254976
  %v64 = vsel %vm63, %v38, 0.0
  %v65 = vadd.f32 %v62, %v64
  %v66 = vrot.slane %v65, 4
  %v67 = vadd.f32 %v65, %v66
  %v68 = vrot.slane %v67, 2
  %v69 = vadd.f32 %v67, %v68
  %v70 = vrot.slane %v69, 1
  %v71 = vadd.f32 %v69, %v70
  %v72 = vrcp.pop 98.0
  %v73 = vmul.f32 %v71, %v72
  %v74 = vsub.f32 %v26, %v73
  %v75 = vsub.f32 %v27, %v73
  %v76 = vsub.f32 %v28, %v73
  %v77 = vsub.f32 %v29, %v73
  %v78 = vsub.f32 %v30, %v73
  %v79 = vsub.f32 %v31, %v73
  %v80 = vsub.f32 %v32, %v73
  %v81 = vsub.f32 %v33, %v73
  %v82 = vsub.f32 %v34, %v73
  %v83 = vsub.f32 %v35, %v73
  %v84 = vsub.f32 %v36, %v73
  %v85 = vsub.f32 %v37, %v73
  %v86 = vsub.f32 %v38, %v73
  %v87 = vmul.f32 %v74, %v74
  %v88 = vmul.f32 %v75, %v75
  %v89 = vmul.f32 %v76, %v76
  %v90 = vmul.f32 %v77, %v77
  %v91 = vmul.f32 %v78, %v78
  %v92 = vmul.f32 %v79, %v79
  %v93 = vmul.f32 %v80, %v80
  %v94 = vmul.f32 %v81, %v81
  %v95 = vmul.f32 %v82, %v82
  %v96 = vmul.f32 %v83, %v83
  %v97 = vmul.f32 %v84, %v84
  %v98 = vmul.f32 %v85, %v85
  %v99 = vmul.f32 %v86, %v86
  %v100 = vsel %vm39, %v87, 0.0
  %v101 = vsel %vm39, %v88, 0.0
  %v102 = vadd.f32 %v100, %v101
  %v103 = vsel %vm39, %v89, 0.0
  %v104 = vadd.f32 %v102, %v103
  %v105 = vsel %vm39, %v90, 0.0
  %v106 = vadd.f32 %v104, %v105
  %v107 = vsel %vm39, %v91, 0.0
  %v108 = vadd.f32 %v106, %v107
  %v109 = vsel %vm39, %v92, 0.0
  %v110 = vadd.f32 %v108, %v109
  %v111 = vsel %vm39, %v93, 0.0
  %v112 = vadd.f32 %v110, %v111
  %v113 = vsel %vm39, %v94, 0.0
  %v114 = vadd.f32 %v112, %v113
  %v115 = vsel %vm39, %v95, 0.0
  %v116 = vadd.f32 %v114, %v115
  %v117 = vsel %vm39, %v96, 0.0
  %v118 = vadd.f32 %v116, %v117
  %v119 = vsel %vm39, %v97, 0.0
  %v120 = vadd.f32 %v118, %v119
  %v121 = vsel %vm39, %v98, 0.0
  %v122 = vadd.f32 %v120, %v121
  %v123 = vsel %vm63, %v99, 0.0
  %v124 = vadd.f32 %v122, %v123
  %v125 = vrot.slane %v124, 4
  %v126 = vadd.f32 %v124, %v125
  %v127 = vrot.slane %v126, 2
  %v128 = vadd.f32 %v126, %v127
  %v129 = vrot.slane %v128, 1
  %v130 = vadd.f32 %v128, %v129
  %v131 = vmul.f32 %v130, %v72
  %v132 = vadd.f32 %v131, 1e-05
  %v133 = vrsqrt.pop %v132
  %v134 = vmul.f32 %v74, %v133
  %v135 = vmul.f32 %v75, %v133
  %v136 = vmul.f32 %v76, %v133
  %v137 = vmul.f32 %v77, %v133
  %v138 = vmul.f32 %v78, %v133
  %v139 = vmul.f32 %v79, %v133
  %v140 = vmul.f32 %v80, %v133
  %v141 = vmul.f32 %v81, %v133
  %v142 = vmul.f32 %v82, %v133
  %v143 = vmul.f32 %v83, %v133
  %v144 = vmul.f32 %v84, %v133
  %v145 = vmul.f32 %v85, %v133
  %v146 = vmul.f32 %v86, %v133
  %v147 = vld [vmem:[%s1] sm:$0x1]
  %v149 = vlaneseq
  %v150 = vshrl.u32 %v149, 7
  %v151 = vsub.s32 0, %v150
  %v152 = vrot.slane %v147, %v151
  %v154 = vmul.f32 %v134, %v152
  %v155 = vmul.f32 %v135, %v152
  %v156 = vmul.f32 %v136, %v152
  %v157 = vmul.f32 %v137, %v152
  %v158 = vmul.f32 %v138, %v152
  %v159 = vmul.f32 %v139, %v152
  %v160 = vmul.f32 %v140, %v152
  %v161 = vmul.f32 %v141, %v152
  %v162 = vmul.f32 %v142, %v152
  %v163 = vmul.f32 %v143, %v152
  %v164 = vmul.f32 %v144, %v152
  %v165 = vmul.f32 %v145, %v152
  %v166 = vmul.f32 %v146, %v152
  %v167 = vld [vmem:[%s2] sm:$0x1]
  %v169 = vlaneseq
  %v170 = vshrl.u32 %v169, 7
  %v171 = vsub.s32 0, %v170
  %v172 = vrot.slane %v167, %v171
  %v174 = vadd.f32 %v154, %v172
  %v175 = vadd.f32 %v155, %v172
  %v176 = vadd.f32 %v156, %v172
  %v177 = vadd.f32 %v157, %v172
  %v178 = vadd.f32 %v158, %v172
  %v179 = vadd.f32 %v159, %v172
  %v180 = vadd.f32 %v160, %v172
  %v181 = vadd.f32 %v161, %v172
  %v182 = vadd.f32 %v162, %v172
  %v183 = vadd.f32 %v163, %v172
  %v184 = vadd.f32 %v164, %v172
  %v185 = vadd.f32 %v165, %v172
  %v186 = vadd.f32 %v166, %v172
  %v187 = vmax.f32 %v174, 0.0
  %v188 = vmax.f32 %v175, 0.0
  %v189 = vmax.f32 %v176, 0.0
  %v190 = vmax.f32 %v177, 0.0
  %v191 = vmax.f32 %v178, 0.0
  %v192 = vmax.f32 %v179, 0.0
  %v193 = vmax.f32 %v180, 0.0
  %v194 = vmax.f32 %v181, 0.0
  %v195 = vmax.f32 %v182, 0.0
  %v196 = vmax.f32 %v183, 0.0
  %v197 = vmax.f32 %v184, 0.0
  %v198 = vmax.f32 %v185, 0.0
  %v199 = vmax.f32 %v186, 0.0
  %v200 = vld [vmem:[%s3] sm:$0xff]
  %v201 = vld [vmem:[%s3 + $0x8] sm:$0xff]
  %v202 = vld [vmem:[%s3 + $0x10] sm:$0xff]
  %v203 = vld [vmem:[%s3 + $0x18] sm:$0xff]
  %v204 = vld [vmem:[%s4] sm:$0x1]
  %v206 = vlaneseq
  %v207 = vshrl.u32 %v206, 7
  %v208 = vsub.s32 0, %v207
  %v209 = vrot.slane %v204, %v208
  %v212 = vsel %vm39, %v187, 0
  %v215 = vsel %vm39, %v188, 0
  %v218 = vsel %vm39, %v189, 0
  %v221 = vsel %vm39, %v190, 0
  %v224 = vsel %vm39, %v191, 0
  %v227 = vsel %vm39, %v192, 0
  %v230 = vsel %vm39, %v193, 0
  %v233 = vsel %vm39, %v194, 0
  %v236 = vsel %vm39, %v195, 0
  %v239 = vsel %vm39, %v196, 0
  %v242 = vsel %vm39, %v197, 0
  %v245 = vsel %vm39, %v198, 0
  %v248 = vsel %vm39, %v199, 0
  %250 = vmatprep.subr.mxu0 0.0
  %251 = vmatpush1.msra.mxu0 %v200
  %252 = vmatprep.subr.mxu0 0.0
  %253 = vmatpush1.msra.mxu0 %v201
  %254 = vmatprep.subr.mxu0 0.0
  %255 = vmatpush1.msra.mxu0 %v202
  %256 = vmatprep.subr.mxu0 0.0
  %257 = vmatpush1.msra.mxu0 %v203
  %258 = vmatprep.subr.mxu0 0.0
  %259 = vmatpush1.msra.mxu0 0.0
  %260 = vmatprep.subr.mxu0 0.0
  %261 = vmatpush1.msra.mxu0 0.0
  %262 = vmatprep.subr.mxu0 0.0
  %263 = vmatpush1.msra.mxu0 0.0
  %264 = vmatprep.subr.mxu0 0.0
  %265 = vmatpush1.msra.mxu0 0.0
  %266 = vmatprep.subr.mxu0 0.0
  %267 = vmatpush1.msra.mxu0 0.0
  %268 = vmatprep.subr.mxu0 0.0
  %269 = vmatpush1.msra.mxu0 0.0
  %270 = vmatprep.subr.mxu0 0.0
  %271 = vmatpush1.msra.mxu0 0.0
  %272 = vmatprep.subr.mxu0 0.0
  %273 = vmatpush1.msra.mxu0 0.0
  %274 = vmatprep.subr.mxu0 0.0
  %275 = vmatpush1.msra.mxu0 0.0
  %276 = vmatprep.subr.mxu0 0.0
  %277 = vmatpush1.msra.mxu0 0.0
  %278 = vmatprep.subr.mxu0 0.0
  %279 = vmatpush1.msra.mxu0 0.0
  %280 = vmatprep.subr.mxu0 0.0
  %281 = vmatpush1.msra.mxu0 0.0
  %282 = vmatprep.subr.mxu0 0.0
  %283 = vmatpush1.msra.mxu0 0.0
  %284 = vmatprep.subr.mxu0 0.0
  %285 = vmatpush1.msra.mxu0 0.0
  %286 = vmatprep.subr.mxu0 0.0
  %287 = vmatpush1.msra.mxu0 0.0
  %288 = vmatprep.subr.mxu0 0.0
  %289 = vmatpush1.msra.mxu0 0.0
  %290 = vmatprep.subr.mxu0 0.0
  %291 = vmatpush1.msra.mxu0 0.0
  %292 = vmatprep.subr.mxu0 0.0
  %293 = vmatpush1.msra.mxu0 0.0
  %294 = vmatprep.subr.mxu0 0.0
  %295 = vmatpush1.msra.mxu0 0.0
  %296 = vmatprep.subr.mxu0 0.0
  %297 = vmatpush1.msra.mxu0 0.0
  %298 = vmatprep.subr.mxu0 0.0
  %299 = vmatpush1.msra.mxu0 0.0
  %300 = vmatprep.subr.mxu0 0.0
  %301 = vmatpush1.msra.mxu0 0.0
  %302 = vmatprep.subr.mxu0 0.0
  %303 = vmatpush1.msra.mxu0 0.0
  %304 = vmatprep.subr.mxu0 0.0
  %305 = vmatpush1.msra.mxu0 0.0
  %306 = vmatprep.subr.mxu0 0.0
  %307 = vmatpush1.msra.mxu0 0.0
  %308 = vmatprep.subr.mxu0 0.0
  %309 = vmatpush1.msra.mxu0 0.0
  %310 = vmatprep.subr.mxu0 0.0
  %311 = vmatpush1.msra.mxu0 0.0
  %312 = vmatprep.subr.mxu0 0.0
  %313 = vmatpush1.msra.mxu0 0.0
  %314 = vmatprep.mubr.f32.mxu0 0.0
  %315 = vmatmul.mubr.f32.gmra.mrb[0].mxu0 %v212
  %v316 = vpop.f32.mrb[0].mxu0
  %v317 = vadd.f32 %v209, %v316
  %v318 = vpop.f32.mrb[0].mxu0
  %319 = vmatprep.mubr.f32.mxu0 0.0
  %320 = vmatmul.mubr.f32.gmra.mrb[0].mxu0 %v215
  %v321 = vpop.f32.mrb[0].mxu0
  %v322 = vadd.f32 %v209, %v321
  %v323 = vpop.f32.mrb[0].mxu0
  %324 = vmatprep.mubr.f32.mxu0 0.0
  %325 = vmatmul.mubr.f32.gmra.mrb[0].mxu0 %v218
  %v326 = vpop.f32.mrb[0].mxu0
  %v327 = vadd.f32 %v209, %v326
  %v328 = vpop.f32.mrb[0].mxu0
  %329 = vmatprep.mubr.f32.mxu0 0.0
  %330 = vmatmul.mubr.f32.gmra.mrb[0].mxu0 %v221
  %v331 = vpop.f32.mrb[0].mxu0
  %v332 = vadd.f32 %v209, %v331
  %v333 = vpop.f32.mrb[0].mxu0
  %334 = vmatprep.mubr.f32.mxu0 0.0
  %335 = vmatmul.mubr.f32.gmra.mrb[0].mxu0 %v224
  %v336 = vpop.f32.mrb[0].mxu0
  %v337 = vadd.f32 %v209, %v336
  %v338 = vpop.f32.mrb[0].mxu0
  %339 = vmatprep.mubr.f32.mxu0 0.0
  %340 = vmatmul.mubr.f32.gmra.mrb[0].mxu0 %v227
  %v341 = vpop.f32.mrb[0].mxu0
  %v342 = vadd.f32 %v209, %v341
  %v343 = vpop.f32.mrb[0].mxu0
  %344 = vmatprep.mubr.f32.mxu0 0.0
  %345 = vmatmul.mubr.f32.gmra.mrb[0].mxu0 %v230
  %v346 = vpop.f32.mrb[0].mxu0
  %v347 = vadd.f32 %v209, %v346
  %v348 = vpop.f32.mrb[0].mxu0
  %349 = vmatprep.mubr.f32.mxu0 0.0
  %350 = vmatmul.mubr.f32.gmra.mrb[0].mxu0 %v233
  %v351 = vpop.f32.mrb[0].mxu0
  %v352 = vadd.f32 %v209, %v351
  %v353 = vpop.f32.mrb[0].mxu0
  %354 = vmatprep.mubr.f32.mxu0 0.0
  %355 = vmatmul.mubr.f32.gmra.mrb[0].mxu0 %v236
  %v356 = vpop.f32.mrb[0].mxu0
  %v357 = vadd.f32 %v209, %v356
  %v358 = vpop.f32.mrb[0].mxu0
  %359 = vmatprep.mubr.f32.mxu0 0.0
  %360 = vmatmul.mubr.f32.gmra.mrb[0].mxu0 %v239
  %v361 = vpop.f32.mrb[0].mxu0
  %v362 = vadd.f32 %v209, %v361
  %v363 = vpop.f32.mrb[0].mxu0
  %364 = vmatprep.mubr.f32.mxu0 0.0
  %365 = vmatmul.mubr.f32.gmra.mrb[0].mxu0 %v242
  %v366 = vpop.f32.mrb[0].mxu0
  %v367 = vadd.f32 %v209, %v366
  %v368 = vpop.f32.mrb[0].mxu0
  %369 = vmatprep.mubr.f32.mxu0 0.0
  %370 = vmatmul.mubr.f32.gmra.mrb[0].mxu0 %v245
  %v371 = vpop.f32.mrb[0].mxu0
  %v372 = vadd.f32 %v209, %v371
  %v373 = vpop.f32.mrb[0].mxu0
  %374 = vmatprep.mubr.f32.mxu0 0.0
  %375 = vmatmul.mubr.f32.gmra.mrb[0].mxu0 %v248
  %v376 = vpop.f32.mrb[0].mxu0
  %v377 = vadd.f32 %v209, %v376
  %v378 = vpop.f32.mrb[0].mxu0
  %379 = vdwg.mxu0
  %vm380 = vcmask 130048
  %v381 = vsel %vm380, %v317, 0.0
  %v382 = vsel %vm380, %v322, 0.0
  %v383 = vadd.f32 %v381, %v382
  %v384 = vsel %vm380, %v327, 0.0
  %v385 = vadd.f32 %v383, %v384
  %v386 = vsel %vm380, %v332, 0.0
  %v387 = vadd.f32 %v385, %v386
  %v388 = vsel %vm380, %v337, 0.0
  %v389 = vadd.f32 %v387, %v388
  %v390 = vsel %vm380, %v342, 0.0
  %v391 = vadd.f32 %v389, %v390
  %v392 = vsel %vm380, %v347, 0.0
  %v393 = vadd.f32 %v391, %v392
  %v394 = vsel %vm380, %v352, 0.0
  %v395 = vadd.f32 %v393, %v394
  %v396 = vsel %vm380, %v357, 0.0
  %v397 = vadd.f32 %v395, %v396
  %v398 = vsel %vm380, %v362, 0.0
  %v399 = vadd.f32 %v397, %v398
  %v400 = vsel %vm380, %v367, 0.0
  %v401 = vadd.f32 %v399, %v400
  %v402 = vsel %vm380, %v372, 0.0
  %v403 = vadd.f32 %v401, %v402
  %vm404 = vcmask 123904
  %v405 = vsel %vm404, %v377, 0.0
  %v406 = vadd.f32 %v403, %v405
  %v407 = vrot.slane %v406, 4
  %v408 = vadd.f32 %v406, %v407
  %v409 = vrot.slane %v408, 2
  %v410 = vadd.f32 %v408, %v409
  %v411 = vrot.slane %v410, 1
  %v412 = vadd.f32 %v410, %v411
  %v413 = vmul.f32 %v412, %v72
  %v414 = vsub.f32 %v317, %v413
  %v415 = vsub.f32 %v322, %v413
  %v416 = vsub.f32 %v327, %v413
  %v417 = vsub.f32 %v332, %v413
  %v418 = vsub.f32 %v337, %v413
  %v419 = vsub.f32 %v342, %v413
  %v420 = vsub.f32 %v347, %v413
  %v421 = vsub.f32 %v352, %v413
  %v422 = vsub.f32 %v357, %v413
  %v423 = vsub.f32 %v362, %v413
  %v424 = vsub.f32 %v367, %v413
  %v425 = vsub.f32 %v372, %v413
  %v426 = vsub.f32 %v377, %v413
  %v427 = vmul.f32 %v414, %v414
  %v428 = vmul.f32 %v415, %v415
  %v429 = vmul.f32 %v416, %v416
  %v430 = vmul.f32 %v417, %v417
  %v431 = vmul.f32 %v418, %v418
  %v432 = vmul.f32 %v419, %v419
  %v433 = vmul.f32 %v420, %v420
  %v434 = vmul.f32 %v421, %v421
  %v435 = vmul.f32 %v422, %v422
  %v436 = vmul.f32 %v423, %v423
  %v437 = vmul.f32 %v424, %v424
  %v438 = vmul.f32 %v425, %v425
  %v439 = vmul.f32 %v426, %v426
  %v440 = vsel %vm380, %v427, 0.0
  %v441 = vsel %vm380, %v428, 0.0
  %v442 = vadd.f32 %v440, %v441
  %v443 = vsel %vm380, %v429, 0.0
  %v444 = vadd.f32 %v442, %v443
  %v445 = vsel %vm380, %v430, 0.0
  %v446 = vadd.f32 %v444, %v445
  %v447 = vsel %vm380, %v431, 0.0
  %v448 = vadd.f32 %v446, %v447
  %v449 = vsel %vm380, %v432, 0.0
  %v450 = vadd.f32 %v448, %v449
  %v451 = vsel %vm380, %v433, 0.0
  %v452 = vadd.f32 %v450, %v451
  %v453 = vsel %vm380, %v434, 0.0
  %v454 = vadd.f32 %v452, %v453
  %v455 = vsel %vm380, %v435, 0.0
  %v456 = vadd.f32 %v454, %v455
  %v457 = vsel %vm380, %v436, 0.0
  %v458 = vadd.f32 %v456, %v457
  %v459 = vsel %vm380, %v437, 0.0
  %v460 = vadd.f32 %v458, %v459
  %v461 = vsel %vm380, %v438, 0.0
  %v462 = vadd.f32 %v460, %v461
  %v463 = vsel %vm404, %v439, 0.0
  %v464 = vadd.f32 %v462, %v463
  %v465 = vrot.slane %v464, 4
  %v466 = vadd.f32 %v464, %v465
  %v467 = vrot.slane %v466, 2
  %v468 = vadd.f32 %v466, %v467
  %v469 = vrot.slane %v468, 1
  %v470 = vadd.f32 %v468, %v469
  %v471 = vmul.f32 %v470, %v72
  %v472 = vadd.f32 %v471, 1e-05
  %v473 = vrsqrt.pop %v472
  %v474 = vmul.f32 %v414, %v473
  %v475 = vmul.f32 %v415, %v473
  %v476 = vmul.f32 %v416, %v473
  %v477 = vmul.f32 %v417, %v473
  %v478 = vmul.f32 %v418, %v473
  %v479 = vmul.f32 %v419, %v473
  %v480 = vmul.f32 %v420, %v473
  %v481 = vmul.f32 %v421, %v473
  %v482 = vmul.f32 %v422, %v473
  %v483 = vmul.f32 %v423, %v473
  %v484 = vmul.f32 %v424, %v473
  %v485 = vmul.f32 %v425, %v473
  %v486 = vmul.f32 %v426, %v473
  %v487 = vld [vmem:[%s5] sm:$0x1]
  %v489 = vlaneseq
  %v490 = vshrl.u32 %v489, 7
  %v491 = vsub.s32 0, %v490
  %v492 = vrot.slane %v487, %v491
  %v494 = vmul.f32 %v474, %v492
  %v495 = vmul.f32 %v475, %v492
  %v496 = vmul.f32 %v476, %v492
  %v497 = vmul.f32 %v477, %v492
  %v498 = vmul.f32 %v478, %v492
  %v499 = vmul.f32 %v479, %v492
  %v500 = vmul.f32 %v480, %v492
  %v501 = vmul.f32 %v481, %v492
  %v502 = vmul.f32 %v482, %v492
  %v503 = vmul.f32 %v483, %v492
  %v504 = vmul.f32 %v484, %v492
  %v505 = vmul.f32 %v485, %v492
  %v506 = vmul.f32 %v486, %v492
  %v507 = vld [vmem:[%s6] sm:$0x1]
  %v509 = vlaneseq
  %v510 = vshrl.u32 %v509, 7
  %v511 = vsub.s32 0, %v510
  %v512 = vrot.slane %v507, %v511
  %v514 = vadd.f32 %v494, %v512
  %v515 = vadd.f32 %v495, %v512
  %v516 = vadd.f32 %v496, %v512
  %v517 = vadd.f32 %v497, %v512
  %v518 = vadd.f32 %v498, %v512
  %v519 = vadd.f32 %v499, %v512
  %v520 = vadd.f32 %v500, %v512
  %v521 = vadd.f32 %v501, %v512
  %v522 = vadd.f32 %v502, %v512
  %v523 = vadd.f32 %v503, %v512
  %v524 = vadd.f32 %v504, %v512
  %v525 = vadd.f32 %v505, %v512
  %v526 = vadd.f32 %v506, %v512
  %527 = vst.msk [vmem:[%s7] sm:$0xff] %vm380, %v514
  %528 = vst.msk [vmem:[%s7 + $0x8] sm:$0xff] %vm380, %v515
  %529 = vst.msk [vmem:[%s7 + $0x10] sm:$0xff] %vm380, %v516
  %530 = vst.msk [vmem:[%s7 + $0x18] sm:$0xff] %vm380, %v517
  %531 = vst.msk [vmem:[%s7 + $0x20] sm:$0xff] %vm380, %v518
  %532 = vst.msk [vmem:[%s7 + $0x28] sm:$0xff] %vm380, %v519
  %533 = vst.msk [vmem:[%s7 + $0x30] sm:$0xff] %vm380, %v520
  %534 = vst.msk [vmem:[%s7 + $0x38] sm:$0xff] %vm380, %v521
  %535 = vst.msk [vmem:[%s7 + $0x40] sm:$0xff] %vm380, %v522
  %536 = vst.msk [vmem:[%s7 + $0x48] sm:$0xff] %vm380, %v523
  %537 = vst.msk [vmem:[%s7 + $0x50] sm:$0xff] %vm380, %v524
  %538 = vst.msk [vmem:[%s7 + $0x58] sm:$0xff] %vm380, %v525
  %539 = vst.msk [vmem:[%s7 + $0x60] sm:$0x3] %vm404, %v526
  // Predicated region
  $region30: #{resnet_like_net.19} parent=0 // pred_check
    _
  $region31: #{resnet_like_net.19} parent=0 // pred_check_branch
    %541 = sbr.rel (0) target = $region33
  $region32: #{resnet_like_net.19} parent=0 // pred_region
    _
  $region33: #{resnet_like_net.19} parent=0 // pred_fallthru
    _
  // Predicated region
  $region34: #{resnet_like_net.19} parent=0 // pred_check
    _
  $region35: #{resnet_like_net.19} parent=0 // pred_check_branch
    %543 = sbr.rel (0) target = $region37
  $region36: #{resnet_like_net.19} parent=0 // pred_region
    _
  $region37: #{resnet_like_net.19} parent=0 // pred_fallthru
    _

// kernel: resnet_like_net.21
$region0: #{resnet_like_net.21}
  #allocation0 [shape = 'u32[]', space=smem, size = 0x4, offset = 0x4, fixed_abs, tag = 'smem constant byte address 0x4 - core index']
  #allocation1 [shape = 'u32[144,128]{1,0:T(1,128)}', space=vmem, size = 0x12000, scoped, tag = 'internal scratch']
  %s0 = inlined_call_operand.vmem [shape: f32[4,18,32], index: 0, kind: input, shape index: {}]
  %s1 = inlined_call_operand.vmem [shape: f32[1,32], index: 1, kind: input, shape index: {}]
  %s2 = inlined_call_operand.vmem [shape: f32[1,32], index: 2, kind: input, shape index: {}]
  %s3 = inlined_call_operand.vmem [shape: f32[32,16], index: 3, kind: input, shape index: {}]
  %s4 = inlined_call_operand.vmem [shape: f32[1,16], index: 4, kind: input, shape index: {}]
  %s5 = inlined_call_operand.vmem [shape: f32[1,16], index: 5, kind: input, shape index: {}]
  %s6 = inlined_call_operand.vmem [shape: f32[1,16], index: 6, kind: input, shape index: {}]
  %s7 = inlined_call_operand.vmem [shape: f32[18,16], index: 7, kind: output, shape index: {0}]
  %s8 = inlined_call_operand.vmem [shape: f32[18,32], index: 8, kind: output, shape index: {1}]
  %9 = xla_tuple %s7, %s8
  %s10 = sld [smem:[#allocation0]]
  $region46: #{resnet_like_net.21} parent=0
    _
  %s12 = ssub.s32 1, %s10
  %s13 = scalar_select 0, %s12, %s10
  // Predicated region
  $region2: #{resnet_like_net.21} parent=0 // pred_check
    _
  $region3: #{resnet_like_net.21} parent=0 // pred_check_branch
    %15 = sbr.rel (0) target = $region5
  $region4: #{resnet_like_net.21} parent=0 // pred_region
    _
  $region5: #{resnet_like_net.21} parent=0 // pred_fallthru
    _
  // Predicated region
  $region6: #{resnet_like_net.21} parent=0 // pred_check
    _
  $region7: #{resnet_like_net.21} parent=0 // pred_check_branch
    %17 = sbr.rel (0) target = $region9
  $region8: #{resnet_like_net.21} parent=0 // pred_region
    _
  $region9: #{resnet_like_net.21} parent=0 // pred_fallthru
    _
  // Predicated region
  $region10: #{resnet_like_net.21} parent=0 // pred_check
    _
  $region11: #{resnet_like_net.21} parent=0 // pred_check_branch
    %19 = sbr.rel (0) target = $region13
  $region12: #{resnet_like_net.21} parent=0 // pred_region
    _
  $region13: #{resnet_like_net.21} parent=0 // pred_fallthru
    _
  // Predicated region
  $region14: #{resnet_like_net.21} parent=0 // pred_check
    _
  $region15: #{resnet_like_net.21} parent=0 // pred_check_branch
    %21 = sbr.rel (0) target = $region17
  $region16: #{resnet_like_net.21} parent=0 // pred_region
    _
  $region17: #{resnet_like_net.21} parent=0 // pred_fallthru
    _
  // Predicated region
  $region18: #{resnet_like_net.21} parent=0 // pred_check
    _
  $region19: #{resnet_like_net.21} parent=0 // pred_check_branch
    %23 = sbr.rel (0) target = $region21
  $region20: #{resnet_like_net.21} parent=0 // pred_region
    _
  $region21: #{resnet_like_net.21} parent=0 // pred_fallthru
    _
  // Predicated region
  $region22: #{resnet_like_net.21} parent=0 // pred_check
    _
  $region23: #{resnet_like_net.21} parent=0 // pred_check_branch
    %25 = sbr.rel (0) target = $region25
  $region24: #{resnet_like_net.21} parent=0 // pred_region
    _
  $region25: #{resnet_like_net.21} parent=0 // pred_fallthru
    _
  // Predicated region
  $region26: #{resnet_like_net.21} parent=0 // pred_check
    _
  $region27: #{resnet_like_net.21} parent=0 // pred_check_branch
    %27 = sbr.rel (0) target = $region29
  $region28: #{resnet_like_net.21} parent=0 // pred_region
    _
  $region29: #{resnet_like_net.21} parent=0 // pred_fallthru
    _
  %v28 = vld [vmem:[%s0] sm:$0xff]
  %v29 = vld [vmem:[%s0 + $0x8] sm:$0xff]
  %v30 = vld [vmem:[%s0 + $0x10] sm:$0x3]
  %s31 = scalar_lea.vmem %s0, 24
  %v32 = vld [vmem:[%s31] sm:$0xff]
  %v33 = vld [vmem:[%s31 + $0x8] sm:$0xff]
  %v34 = vld [vmem:[%s31 + $0x10] sm:$0x3]
  %v35 = vmax.f32 %v28, %v32
  %v36 = vmax.f32 %v29, %v33
  %v37 = vmax.f32 %v30, %v34
  %s38 = scalar_lea.vmem %s0, 48
  %v39 = vld [vmem:[%s38] sm:$0xff]
  %v40 = vld [vmem:[%s38 + $0x8] sm:$0xff]
  %v41 = vld [vmem:[%s38 + $0x10] sm:$0x3]
  %v42 = vmax.f32 %v35, %v39
  %v43 = vmax.f32 %v36, %v40
  %v44 = vmax.f32 %v37, %v41
  %s45 = scalar_lea.vmem %s0, 72
  %v46 = vld [vmem:[%s45] sm:$0xff]
  %v47 = vld [vmem:[%s45 + $0x8] sm:$0xff]
  %v48 = vld [vmem:[%s45 + $0x10] sm:$0x3]
  %v49 = vmax.f32 %v42, %v46
  %v50 = vmax.f32 %v43, %v47
  %v51 = vmax.f32 %v44, %v48
  %vm52 = vcmask 261120
  %v53 = vsel %vm52, %v49, 0.0
  %v54 = vsel %vm52, %v50, 0.0
  %v55 = vadd.f32 %v53, %v54
  %vm56 = vcmask 254976
  %v57 = vsel %vm56, %v51, 0.0
  %v58 = vadd.f32 %v55, %v57
  %v59 = vrot.slane %v58, 4
  %v60 = vadd.f32 %v58, %v59
  %v61 = vrot.slane %v60, 2
  %v62 = vadd.f32 %v60, %v61
  %v63 = vrot.slane %v62, 1
  %v64 = vadd.f32 %v62, %v63
  %v65 = vrcp.pop 18.0
  %v66 = vmul.f32 %v64, %v65
  %v67 = vsub.f32 %v49, %v66
  %v68 = vsub.f32 %v50, %v66
  %v69 = vsub.f32 %v51, %v66
  %v70 = vmul.f32 %v67, %v67
  %v71 = vmul.f32 %v68, %v68
  %v72 = vmul.f32 %v69, %v69
  %v73 = vsel %vm52, %v70, 0.0
  %v74 = vsel %vm52, %v71, 0.0
  %v75 = vadd.f32 %v73, %v74
  %v76 = vsel %vm56, %v72, 0.0
  %v77 = vadd.f32 %v75, %v76
  %v78 = vrot.slane %v77, 4
  %v79 = vadd.f32 %v77, %v78
  %v80 = vrot.slane %v79, 2
  %v81 = vadd.f32 %v79, %v80
  %v82 = vrot.slane %v81, 1
  %v83 = vadd.f32 %v81, %v82
  %v84 = vmul.f32 %v83, %v65
  %v85 = vadd.f32 %v84, 1e-05
  %v86 = vrsqrt.pop %v85
  %v87 = vmul.f32 %v67, %v86
  %v88 = vmul.f32 %v68, %v86
  %v89 = vmul.f32 %v69, %v86
  %v90 = vld [vmem:[%s1] sm:$0x1]
  %v92 = vlaneseq
  %v93 = vshrl.u32 %v92, 7
  %v94 = vsub.s32 0, %v93
  %v95 = vrot.slane %v90, %v94
  %v97 = vmul.f32 %v87, %v95
  %v98 = vmul.f32 %v88, %v95
  %v99 = vmul.f32 %v89, %v95
  %v100 = vld [vmem:[%s2] sm:$0x1]
  %v102 = vlaneseq
  %v103 = vshrl.u32 %v102, 7
  %v104 = vsub.s32 0, %v103
  %v105 = vrot.slane %v100, %v104
  %v107 = vadd.f32 %v97, %v105
  %v108 = vadd.f32 %v98, %v105
  %v109 = vadd.f32 %v99, %v105
  %v110 = vmax.f32 %v107, 0.0
  %v111 = vmax.f32 %v108, 0.0
  %v112 = vmax.f32 %v109, 0.0
  %v113 = vld [vmem:[%s3] sm:$0xff]
  %v114 = vld [vmem:[%s3 + $0x8] sm:$0xff]
  %v115 = vld [vmem:[%s3 + $0x10] sm:$0xff]
  %v116 = vld [vmem:[%s3 + $0x18] sm:$0xff]
  %v117 = vld [vmem:[%s4] sm:$0x1]
  %v119 = vlaneseq
  %v120 = vshrl.u32 %v119, 7
  %v121 = vsub.s32 0, %v120
  %v122 = vrot.slane %v117, %v121
  %v125 = vsel %vm52, %v110, 0
  %v128 = vsel %vm52, %v111, 0
  %v131 = vsel %vm52, %v112, 0
  %133 = vmatprep.subr.mxu0 0.0
  %134 = vmatpush1.msra.mxu0 %v113
  %135 = vmatprep.subr.mxu0 0.0
  %136 = vmatpush1.msra.mxu0 %v114
  %137 = vmatprep.subr.mxu0 0.0
  %138 = vmatpush1.msra.mxu0 %v115
  %139 = vmatprep.subr.mxu0 0.0
  %140 = vmatpush1.msra.mxu0 %v116
  %141 = vmatprep.subr.mxu0 0.0
  %142 = vmatpush1.msra.mxu0 0.0
  %143 = vmatprep.subr.mxu0 0.0
  %144 = vmatpush1.msra.mxu0 0.0
  %145 = vmatprep.subr.mxu0 0.0
  %146 = vmatpush1.msra.mxu0 0.0
  %147 = vmatprep.subr.mxu0 0.0
  %148 = vmatpush1.msra.mxu0 0.0
  %149 = vmatprep.subr.mxu0 0.0
  %150 = vmatpush1.msra.mxu0 0.0
  %151 = vmatprep.subr.mxu0 0.0
  %152 = vmatpush1.msra.mxu0 0.0
  %153 = vmatprep.subr.mxu0 0.0
  %154 = vmatpush1.msra.mxu0 0.0
  %155 = vmatprep.subr.mxu0 0.0
  %156 = vmatpush1.msra.mxu0 0.0
  %157 = vmatprep.subr.mxu0 0.0
  %158 = vmatpush1.msra.mxu0 0.0
  %159 = vmatprep.subr.mxu0 0.0
  %160 = vmatpush1.msra.mxu0 0.0
  %161 = vmatprep.subr.mxu0 0.0
  %162 = vmatpush1.msra.mxu0 0.0
  %163 = vmatprep.subr.mxu0 0.0
  %164 = vmatpush1.msra.mxu0 0.0
  %165 = vmatprep.subr.mxu0 0.0
  %166 = vmatpush1.msra.mxu0 0.0
  %167 = vmatprep.subr.mxu0 0.0
  %168 = vmatpush1.msra.mxu0 0.0
  %169 = vmatprep.subr.mxu0 0.0
  %170 = vmatpush1.msra.mxu0 0.0
  %171 = vmatprep.subr.mxu0 0.0
  %172 = vmatpush1.msra.mxu0 0.0
  %173 = vmatprep.subr.mxu0 0.0
  %174 = vmatpush1.msra.mxu0 0.0
  %175 = vmatprep.subr.mxu0 0.0
  %176 = vmatpush1.msra.mxu0 0.0
  %177 = vmatprep.subr.mxu0 0.0
  %178 = vmatpush1.msra.mxu0 0.0
  %179 = vmatprep.subr.mxu0 0.0
  %180 = vmatpush1.msra.mxu0 0.0
  %181 = vmatprep.subr.mxu0 0.0
  %182 = vmatpush1.msra.mxu0 0.0
  %183 = vmatprep.subr.mxu0 0.0
  %184 = vmatpush1.msra.mxu0 0.0
  %185 = vmatprep.subr.mxu0 0.0
  %186 = vmatpush1.msra.mxu0 0.0
  %187 = vmatprep.subr.mxu0 0.0
  %188 = vmatpush1.msra.mxu0 0.0
  %189 = vmatprep.subr.mxu0 0.0
  %190 = vmatpush1.msra.mxu0 0.0
  %191 = vmatprep.subr.mxu0 0.0
  %192 = vmatpush1.msra.mxu0 0.0
  %193 = vmatprep.subr.mxu0 0.0
  %194 = vmatpush1.msra.mxu0 0.0
  %195 = vmatprep.subr.mxu0 0.0
  %196 = vmatpush1.msra.mxu0 0.0
  %197 = vmatprep.mubr.f32.mxu0 0.0
  %198 = vmatmul.mubr.f32.gmra.mrb[0].mxu0 %v125
  %v199 = vpop.f32.mrb[0].mxu0
  %v200 = vadd.f32 %v122, %v199
  %v201 = vpop.f32.mrb[0].mxu0
  %202 = vmatprep.mubr.f32.mxu0 0.0
  %203 = vmatmul.mubr.f32.gmra.mrb[0].mxu0 %v128
  %v204 = vpop.f32.mrb[0].mxu0
  %v205 = vadd.f32 %v122, %v204
  %v206 = vpop.f32.mrb[0].mxu0
  %207 = vmatprep.mubr.f32.mxu0 0.0
  %208 = vmatmul.mubr.f32.gmra.mrb[0].mxu0 %v131
  %v209 = vpop.f32.mrb[0].mxu0
  %v210 = vadd.f32 %v122, %v209
  %v211 = vpop.f32.mrb[0].mxu0
  %212 = vdwg.mxu0
  %vm213 = vcmask 130048
  %v214 = vsel %vm213, %v200, 0.0
  %v215 = vsel %vm213, %v205, 0.0
  %v216 = vadd.f32 %v214, %v215
  %vm217 = vcmask 123904
  %v218 = vsel %vm217, %v210, 0.0
  %v219 = vadd.f32 %v216, %v218
  %v220 = vrot.slane %v219, 4
  %v221 = vadd.f32 %v219, %v220
  %v222 = vrot.slane %v221, 2
  %v223 = vadd.f32 %v221, %v222
  %v224 = vrot.slane %v223, 1
  %v225 = vadd.f32 %v223, %v224
  %v226 = vmul.f32 %v225, %v65
  %v227 = vsub.f32 %v200, %v226
  %v228 = vsub.f32 %v205, %v226
  %v229 = vsub.f32 %v210, %v226
  %v230 = vmul.f32 %v227, %v227
  %v231 = vmul.f32 %v228, %v228
  %v232 = vmul.f32 %v229, %v229
  %v233 = vsel %vm213, %v230, 0.0
  %v234 = vsel %vm213, %v231, 0.0
  %v235 = vadd.f32 %v233, %v234
  %v236 = vsel %vm217, %v232, 0.0
  %v237 = vadd.f32 %v235, %v236
  %v238 = vrot.slane %v237, 4
  %v239 = vadd.f32 %v237, %v238
  %v240 = vrot.slane %v239, 2
  %v241 = vadd.f32 %v239, %v240
  %v242 = vrot.slane %v241, 1
  %v243 = vadd.f32 %v241, %v242
  %v244 = vmul.f32 %v243, %v65
  %v245 = vadd.f32 %v244, 1e-05
  %v246 = vrsqrt.pop %v245
  %v247 = vmul.f32 %v227, %v246
  %v248 = vmul.f32 %v228, %v246
  %v249 = vmul.f32 %v229, %v246
  %v250 = vld [vmem:[%s5] sm:$0x1]
  %v252 = vlaneseq
  %v253 = vshrl.u32 %v252, 7
  %v254 = vsub.s32 0, %v253
  %v255 = vrot.slane %v250, %v254
  %v257 = vmul.f32 %v247, %v255
  %v258 = vmul.f32 %v248, %v255
  %v259 = vmul.f32 %v249, %v255
  %v260 = vld [vmem:[%s6] sm:$0x1]
  %v262 = vlaneseq
  %v263 = vshrl.u32 %v262, 7
  %v264 = vsub.s32 0, %v263
  %v265 = vrot.slane %v260, %v264
  %v267 = vadd.f32 %v257, %v265
  %v268 = vadd.f32 %v258, %v265
  %v269 = vadd.f32 %v259, %v265
  %270 = vst.msk [vmem:[%s7] sm:$0xff] %vm213, %v267
  %271 = vst.msk [vmem:[%s7 + $0x8] sm:$0xff] %vm213, %v268
  %272 = vst.msk [vmem:[%s7 + $0x10] sm:$0x3] %vm217, %v269
  %273 = vst.msk [vmem:[%s8] sm:$0xff] %vm52, %v49
  %274 = vst.msk [vmem:[%s8 + $0x8] sm:$0xff] %vm52, %v50
  %275 = vst.msk [vmem:[%s8 + $0x10] sm:$0x3] %vm56, %v51
  // Predicated region
  $region30: #{resnet_like_net.21} parent=0 // pred_check
    _
  $region31: #{resnet_like_net.21} parent=0 // pred_check_branch
    %277 = sbr.rel (0) target = $region33
  $region32: #{resnet_like_net.21} parent=0 // pred_region
    _
  $region33: #{resnet_like_net.21} parent=0 // pred_fallthru
    _
  // Predicated region
  $region34: #{resnet_like_net.21} parent=0 // pred_check
    _
  $region35: #{resnet_like_net.21} parent=0 // pred_check_branch
    %279 = sbr.rel (0) target = $region37
  $region36: #{resnet_like_net.21} parent=0 // pred_region
    _
  $region37: #{resnet_like_net.21} parent=0 // pred_fallthru
    _
  // Predicated region
  $region38: #{resnet_like_net.21} parent=0 // pred_check
    _
  $region39: #{resnet_like_net.21} parent=0 // pred_check_branch
    %281 = sbr.rel (0) target = $region41
  $region40: #{resnet_like_net.21} parent=0 // pred_region
    _
  $region41: #{resnet_like_net.21} parent=0 // pred_fallthru
    _
  // Predicated region
  $region42: #{resnet_like_net.21} parent=0 // pred_check
    _
  $region43: #{resnet_like_net.21} parent=0 // pred_check_branch
    %283 = sbr.rel (0) target = $region45
  $region44: #{resnet_like_net.21} parent=0 // pred_region
    _
  $region45: #{resnet_like_net.21} parent=0 // pred_fallthru
    _

// kernel: resnet_like_net.22
$region0: #{resnet_like_net.22}
  #allocation0 [shape = 'u32[]', space=smem, size = 0x4, offset = 0x4, fixed_abs, tag = 'smem constant byte address 0x4 - core index']
  #allocation1 [shape = 'u32[144,128]{1,0:T(1,128)}', space=vmem, size = 0x12000, scoped, tag = 'internal scratch']
  %s0 = inlined_call_operand.vmem [shape: f32[18,144], index: 0, kind: input, shape index: {}]
  %s1 = inlined_call_operand.vmem [shape: f32[144,32], index: 1, kind: input, shape index: {}]
  %s2 = inlined_call_operand.vmem [shape: f32[1,32], index: 2, kind: input, shape index: {}]
  %s3 = inlined_call_operand.vmem [shape: f32[18,32], index: 3, kind: input, shape index: {}]
  %s4 = inlined_call_operand.vmem [shape: f32[18,32], index: 4, kind: output, shape index: {}]
  %s5 = sld [smem:[#allocation0]]
  $region26: #{resnet_like_net.22} parent=0
    _
  %s7 = ssub.s32 1, %s5
  %s8 = scalar_select 0, %s7, %s5
  // Predicated region
  $region2: #{resnet_like_net.22} parent=0 // pred_check
    _
  $region3: #{resnet_like_net.22} parent=0 // pred_check_branch
    %10 = sbr.rel (0) target = $region5
  $region4: #{resnet_like_net.22} parent=0 // pred_region
    _
  $region5: #{resnet_like_net.22} parent=0 // pred_fallthru
    _
  // Predicated region
  $region6: #{resnet_like_net.22} parent=0 // pred_check
    _
  $region7: #{resnet_like_net.22} parent=0 // pred_check_branch
    %12 = sbr.rel (0) target = $region9
  $region8: #{resnet_like_net.22} parent=0 // pred_region
    _
  $region9: #{resnet_like_net.22} parent=0 // pred_fallthru
    _
  // Predicated region
  $region10: #{resnet_like_net.22} parent=0 // pred_check
    _
  $region11: #{resnet_like_net.22} parent=0 // pred_check_branch
    %14 = sbr.rel (0) target = $region13
  $region12: #{resnet_like_net.22} parent=0 // pred_region
    _
  $region13: #{resnet_like_net.22} parent=0 // pred_fallthru
    _
  // Predicated region
  $region14: #{resnet_like_net.22} parent=0 // pred_check
    _
  $region15: #{resnet_like_net.22} parent=0 // pred_check_branch
    %16 = sbr.rel (0) target = $region17
  $region16: #{resnet_like_net.22} parent=0 // pred_region
    _
  $region17: #{resnet_like_net.22} parent=0 // pred_fallthru
    _
  %v17 = vld [vmem:[%s0] sm:$0xff]
  %v18 = vld [vmem:[%s0 + $0x8] sm:$0xff]
  %v19 = vld [vmem:[%s0 + $0x10] sm:$0xff]
  %v20 = vld [vmem:[%s0 + $0x18] sm:$0xff]
  %v21 = vld [vmem:[%s0 + $0x20] sm:$0x3]
  %v22 = vld [vmem:[%s0 + $0x28] sm:$0x3]
  %v23 = vld [vmem:[%s1] sm:$0xff]
  %v24 = vld [vmem:[%s1 + $0x8] sm:$0xff]
  %v25 = vld [vmem:[%s1 + $0x10] sm:$0xff]
  %v26 = vld [vmem:[%s1 + $0x18] sm:$0xff]
  %v27 = vld [vmem:[%s1 + $0x20] sm:$0xff]
  %v28 = vld [vmem:[%s1 + $0x28] sm:$0xff]
  %v29 = vld [vmem:[%s1 + $0x30] sm:$0xff]
  %v30 = vld [vmem:[%s1 + $0x38] sm:$0xff]
  %v31 = vld [vmem:[%s1 + $0x40] sm:$0xff]
  %v32 = vld [vmem:[%s1 + $0x48] sm:$0xff]
  %v33 = vld [vmem:[%s1 + $0x50] sm:$0xff]
  %v34 = vld [vmem:[%s1 + $0x58] sm:$0xff]
  %v35 = vld [vmem:[%s1 + $0x60] sm:$0xff]
  %v36 = vld [vmem:[%s1 + $0x68] sm:$0xff]
  %v37 = vld [vmem:[%s1 + $0x70] sm:$0xff]
  %v38 = vld [vmem:[%s1 + $0x78] sm:$0xff]
  %v39 = vld [vmem:[%s1 + $0x80] sm:$0xff]
  %v40 = vld [vmem:[%s1 + $0x88] sm:$0xff]
  %v41 = vld [vmem:[%s2] sm:$0x1]
  %v43 = vlaneseq
  %v44 = vshrl.u32 %v43, 7
  %v45 = vsub.s32 0, %v44
  %v46 = vrot.slane %v41, %v45
  %vm48 = vcmask 130048
  %v50 = vsel %vm48, %v18, 0
  %v53 = vsel %vm48, %v20, 0
  %v56 = vsel %vm48, %v22, 0
  %58 = vmatprep.subr.mxu0 0.0
  %59 = vmatpush1.msra.mxu0 %v23
  %60 = vmatprep.subr.mxu0 0.0
  %61 = vmatpush1.msra.mxu0 %v24
  %62 = vmatprep.subr.mxu0 0.0
  %63 = vmatpush1.msra.mxu0 %v25
  %64 = vmatprep.subr.mxu0 0.0
  %65 = vmatpush1.msra.mxu0 %v26
  %66 = vmatprep.subr.mxu0 0.0
  %67 = vmatpush1.msra.mxu0 %v27
  %68 = vmatprep.subr.mxu0 0.0
  %69 = vmatpush1.msra.mxu0 %v28
  %70 = vmatprep.subr.mxu0 0.0
  %71 = vmatpush1.msra.mxu0 %v29
  %72 = vmatprep.subr.mxu0 0.0
  %73 = vmatpush1.msra.mxu0 %v30
  %74 = vmatprep.subr.mxu0 0.0
  %75 = vmatpush1.msra.mxu0 %v31
  %76 = vmatprep.subr.mxu0 0.0
  %77 = vmatpush1.msra.mxu0 %v32
  %78 = vmatprep.subr.mxu0 0.0
  %79 = vmatpush1.msra.mxu0 %v33
  %80 = vmatprep.subr.mxu0 0.0
  %81 = vmatpush1.msra.mxu0 %v34
  %82 = vmatprep.subr.mxu0 0.0
  %83 = vmatpush1.msra.mxu0 %v35
  %84 = vmatprep.subr.mxu0 0.0
  %85 = vmatpush1.msra.mxu0 %v36
  %86 = vmatprep.subr.mxu0 0.0
  %87 = vmatpush1.msra.mxu0 %v37
  %88 = vmatprep.subr.mxu0 0.0
  %89 = vmatpush1.msra.mxu0 %v38
  %90 = vmatprep.subr.mxu0 0.0
  %91 = vmatpush1.msra.mxu0 %v39
  %92 = vmatprep.subr.mxu0 0.0
  %93 = vmatpush1.msra.mxu0 %v40
  %94 = vmatprep.subr.mxu0 0.0
  %95 = vmatpush1.msra.mxu0 0.0
  %96 = vmatprep.subr.mxu0 0.0
  %97 = vmatpush1.msra.mxu0 0.0
  %98 = vmatprep.subr.mxu0 0.0
  %99 = vmatpush1.msra.mxu0 0.0
  %100 = vmatprep.subr.mxu0 0.0
  %101 = vmatpush1.msra.mxu0 0.0
  %102 = vmatprep.subr.mxu0 0.0
  %103 = vmatpush1.msra.mxu0 0.0
  %104 = vmatprep.subr.mxu0 0.0
  %105 = vmatpush1.msra.mxu0 0.0
  %106 = vmatprep.subr.mxu0 0.0
  %107 = vmatpush1.msra.mxu0 0.0
  %108 = vmatprep.subr.mxu0 0.0
  %109 = vmatpush1.msra.mxu0 0.0
  %110 = vmatprep.subr.mxu0 0.0
  %111 = vmatpush1.msra.mxu0 0.0
  %112 = vmatprep.subr.mxu0 0.0
  %113 = vmatpush1.msra.mxu0 0.0
  %114 = vmatprep.subr.mxu0 0.0
  %115 = vmatpush1.msra.mxu0 0.0
  %116 = vmatprep.subr.mxu0 0.0
  %117 = vmatpush1.msra.mxu0 0.0
  %118 = vmatprep.subr.mxu0 0.0
  %119 = vmatpush1.msra.mxu0 0.0
  %120 = vmatprep.subr.mxu0 0.0
  %121 = vmatpush1.msra.mxu0 0.0
  %122 = vmatprep.mubr.f32.mxu0 %v50
  %123 = vmatmul.mubr.f32.gmra.mrb[0].mxu0 %v17
  %v124 = vpop.f32.mrb[0].mxu0
  %v125 = vadd.f32 %v46, %v124
  %v126 = vpop.f32.mrb[0].mxu0
  %127 = vmatprep.mubr.f32.mxu0 %v53
  %128 = vmatmul.mubr.f32.gmra.mrb[0].mxu0 %v19
  %v129 = vpop.f32.mrb[0].mxu0
  %v130 = vadd.f32 %v46, %v129
  %v131 = vpop.f32.mrb[0].mxu0
  %132 = vmatprep.mubr.f32.mxu0 %v56
  %133 = vmatmul.mubr.f32.gmra.mrb[0].mxu0 %v21
  %v134 = vpop.f32.mrb[0].mxu0
  %v135 = vadd.f32 %v46, %v134
  %v136 = vpop.f32.mrb[0].mxu0
  %137 = vdwg.mxu0
  %v138 = vmax.f32 %v125, 0.0
  %v139 = vmax.f32 %v130, 0.0
  %v140 = vmax.f32 %v135, 0.0
  %v141 = vld [vmem:[%s3] sm:$0xff]
  %v142 = vld [vmem:[%s3 + $0x8] sm:$0xff]
  %v143 = vld [vmem:[%s3 + $0x10] sm:$0x3]
  %v144 = vadd.f32 %v138, %v141
  %v145 = vadd.f32 %v139, %v142
  %v146 = vadd.f32 %v140, %v143
  %vm147 = vcmask 261120
  %148 = vst.msk [vmem:[%s4] sm:$0xff] %vm147, %v144
  %149 = vst.msk [vmem:[%s4 + $0x8] sm:$0xff] %vm147, %v145
  %vm150 = vcmask 254976
  %151 = vst.msk [vmem:[%s4 + $0x10] sm:$0x3] %vm150, %v146
  // Predicated region
  $region18: #{resnet_like_net.22} parent=0 // pred_check
    _
  $region19: #{resnet_like_net.22} parent=0 // pred_check_branch
    %153 = sbr.rel (0) target = $region21
  $region20: #{resnet_like_net.22} parent=0 // pred_region
    _
  $region21: #{resnet_like_net.22} parent=0 // pred_fallthru
    _
  // Predicated region
  $region22: #{resnet_like_net.22} parent=0 // pred_check
    _
  $region23: #{resnet_like_net.22} parent=0 // pred_check_branch
    %155 = sbr.rel (0) target = $region25
  $region24: #{resnet_like_net.22} parent=0 // pred_region
    _
  $region25: #{resnet_like_net.22} parent=0 // pred_fallthru
    _

// kernel: resnet_like_net.23
$region0: #{resnet_like_net.23}
  #allocation0 [shape = 'u32[]', space=smem, size = 0x4, offset = 0x4, fixed_abs, tag = 'smem constant byte address 0x4 - core index']
  #allocation1 [shape = 'u32[144,128]{1,0:T(1,128)}', space=vmem, size = 0x12000, scoped, tag = 'internal scratch']
  %s0 = inlined_call_operand.vmem [shape: f32[18,32], index: 0, kind: input, shape index: {}]
  %s1 = inlined_call_operand.vmem [shape: f32[32,10], index: 1, kind: input, shape index: {}]
  %s2 = inlined_call_operand.vmem [shape: f32[1,10], index: 2, kind: input, shape index: {}]
  %s3 = inlined_call_operand.vmem [shape: f32[2,18], index: 3, kind: input, shape index: {}]
  %s4 = inlined_call_operand.hbm [shape: f32[2,10], index: 4, kind: output, shape index: {}]
  %s5 = sld [smem:[#allocation0]]
  $region26: #{resnet_like_net.23} parent=0
    _
  %s7 = ssub.s32 1, %s5
  %s8 = scalar_select 0, %s7, %s5
  $region1: #{resnet_like_net.23} parent=0
    #allocation2 [shape = 'u8[1024]{0}', space=vmem, size = 0x400, scoped, tag = 'output window, operand 0, single buffered']
    #allocation3 [shape = 's32[1]{0}', space=sflag, size = 0x4, scoped, tag = 'scoped memory for resnet_like_net.23']
    %9 = vsyncpa [#allocation3], 0
    // Predicated region
    $region2: #{resnet_like_net.23} parent=1 // pred_check
      _
    $region3: #{resnet_like_net.23} parent=1 // pred_check_branch
      %11 = sbr.rel (0) target = $region5
    $region4: #{resnet_like_net.23} parent=1 // pred_region
      _
    $region5: #{resnet_like_net.23} parent=1 // pred_fallthru
      _
    // Predicated region
    $region6: #{resnet_like_net.23} parent=1 // pred_check
      _
    $region7: #{resnet_like_net.23} parent=1 // pred_check_branch
      %13 = sbr.rel (0) target = $region9
    $region8: #{resnet_like_net.23} parent=1 // pred_region
      _
    $region9: #{resnet_like_net.23} parent=1 // pred_fallthru
      _
    // Predicated region
    $region10: #{resnet_like_net.23} parent=1 // pred_check
      _
    $region11: #{resnet_like_net.23} parent=1 // pred_check_branch
      %15 = sbr.rel (0) target = $region13
    $region12: #{resnet_like_net.23} parent=1 // pred_region
      _
    $region13: #{resnet_like_net.23} parent=1 // pred_fallthru
      _
    // Predicated region
    $region14: #{resnet_like_net.23} parent=1 // pred_check
      _
    $region15: #{resnet_like_net.23} parent=1 // pred_check_branch
      %17 = sbr.rel (0) target = $region17
    $region16: #{resnet_like_net.23} parent=1 // pred_region
      _
    $region17: #{resnet_like_net.23} parent=1 // pred_fallthru
      _
    %v18 = vld [vmem:[%s0] sm:$0xff]
    %v19 = vld [vmem:[%s0 + $0x8] sm:$0xff]
    %v20 = vld [vmem:[%s0 + $0x10] sm:$0x3]
    %v21 = vld [vmem:[%s1] sm:$0xff]
    %v22 = vld [vmem:[%s1 + $0x8] sm:$0xff]
    %v23 = vld [vmem:[%s1 + $0x10] sm:$0xff]
    %v24 = vld [vmem:[%s1 + $0x18] sm:$0xff]
    %v25 = vld [vmem:[%s2] sm:$0x1]
    %v27 = vlaneseq
    %v28 = vshrl.u32 %v27, 7
    %v29 = vsub.s32 0, %v28
    %v30 = vrot.slane %v25, %v29
    %vm32 = vcmask 261120
    %v34 = vsel %vm32, %v18, 0
    %v37 = vsel %vm32, %v19, 0
    %v40 = vsel %vm32, %v20, 0
    %42 = vmatprep.subr.mxu0 0.0
    %43 = vmatpush1.msra.mxu0 %v21
    %44 = vmatprep.subr.mxu0 0.0
    %45 = vmatpush1.msra.mxu0 %v22
    %46 = vmatprep.subr.mxu0 0.0
    %47 = vmatpush1.msra.mxu0 %v23
    %48 = vmatprep.subr.mxu0 0.0
    %49 = vmatpush1.msra.mxu0 %v24
    %50 = vmatprep.subr.mxu0 0.0
    %51 = vmatpush1.msra.mxu0 0.0
    %52 = vmatprep.subr.mxu0 0.0
    %53 = vmatpush1.msra.mxu0 0.0
    %54 = vmatprep.subr.mxu0 0.0
    %55 = vmatpush1.msra.mxu0 0.0
    %56 = vmatprep.subr.mxu0 0.0
    %57 = vmatpush1.msra.mxu0 0.0
    %58 = vmatprep.subr.mxu0 0.0
    %59 = vmatpush1.msra.mxu0 0.0
    %60 = vmatprep.subr.mxu0 0.0
    %61 = vmatpush1.msra.mxu0 0.0
    %62 = vmatprep.subr.mxu0 0.0
    %63 = vmatpush1.msra.mxu0 0.0
    %64 = vmatprep.subr.mxu0 0.0
    %65 = vmatpush1.msra.mxu0 0.0
    %66 = vmatprep.subr.mxu0 0.0
    %67 = vmatpush1.msra.mxu0 0.0
    %68 = vmatprep.subr.mxu0 0.0
    %69 = vmatpush1.msra.mxu0 0.0
    %70 = vmatprep.subr.mxu0 0.0
    %71 = vmatpush1.msra.mxu0 0.0
    %72 = vmatprep.subr.mxu0 0.0
    %73 = vmatpush1.msra.mxu0 0.0
    %74 = vmatprep.subr.mxu0 0.0
    %75 = vmatpush1.msra.mxu0 0.0
    %76 = vmatprep.subr.mxu0 0.0
    %77 = vmatpush1.msra.mxu0 0.0
    %78 = vmatprep.subr.mxu0 0.0
    %79 = vmatpush1.msra.mxu0 0.0
    %80 = vmatprep.subr.mxu0 0.0
    %81 = vmatpush1.msra.mxu0 0.0
    %82 = vmatprep.subr.mxu0 0.0
    %83 = vmatpush1.msra.mxu0 0.0
    %84 = vmatprep.subr.mxu0 0.0
    %85 = vmatpush1.msra.mxu0 0.0
    %86 = vmatprep.subr.mxu0 0.0
    %87 = vmatpush1.msra.mxu0 0.0
    %88 = vmatprep.subr.mxu0 0.0
    %89 = vmatpush1.msra.mxu0 0.0
    %90 = vmatprep.subr.mxu0 0.0
    %91 = vmatpush1.msra.mxu0 0.0
    %92 = vmatprep.subr.mxu0 0.0
    %93 = vmatpush1.msra.mxu0 0.0
    %94 = vmatprep.subr.mxu0 0.0
    %95 = vmatpush1.msra.mxu0 0.0
    %96 = vmatprep.subr.mxu0 0.0
    %97 = vmatpush1.msra.mxu0 0.0
    %98 = vmatprep.subr.mxu0 0.0
    %99 = vmatpush1.msra.mxu0 0.0
    %100 = vmatprep.subr.mxu0 0.0
    %101 = vmatpush1.msra.mxu0 0.0
    %102 = vmatprep.subr.mxu0 0.0
    %103 = vmatpush1.msra.mxu0 0.0
    %104 = vmatprep.subr.mxu0 0.0
    %105 = vmatpush1.msra.mxu0 0.0
    %106 = vmatprep.mubr.f32.mxu0 0.0
    %107 = vmatmul.mubr.f32.gmra.mrb[0].mxu0 %v34
    %v108 = vpop.f32.mrb[0].mxu0
    %v109 = vadd.f32 %v30, %v108
    %v110 = vpop.f32.mrb[0].mxu0
    %111 = vmatprep.mubr.f32.mxu0 0.0
    %112 = vmatmul.mubr.f32.gmra.mrb[0].mxu0 %v37
    %v113 = vpop.f32.mrb[0].mxu0
    %v114 = vadd.f32 %v30, %v113
    %v115 = vpop.f32.mrb[0].mxu0
    %116 = vmatprep.mubr.f32.mxu0 0.0
    %117 = vmatmul.mubr.f32.gmra.mrb[0].mxu0 %v40
    %v118 = vpop.f32.mrb[0].mxu0
    %v119 = vadd.f32 %v30, %v118
    %v120 = vpop.f32.mrb[0].mxu0
    %121 = vdwg.mxu0
    %v122 = vmax.f32 %v109, 0.0
    %v123 = vmax.f32 %v114, 0.0
    %v124 = vmax.f32 %v119, 0.0
    %v125 = vld [vmem:[%s3] sm:$0x3]
    %vm126 = vcmask 146432
    %v128 = vsel %vm126, %v125, 0
    %vm130 = vcmask 1041408
    %v132 = vsel %vm130, %v124, 0
    %134 = vmatprep.subr.mxu0 0.0
    %135 = vmatpush1.msra.mxu0 %v122
    %136 = vmatprep.subr.mxu0 0.0
    %137 = vmatpush1.msra.mxu0 %v123
    %138 = vmatprep.subr.mxu0 0.0
    %139 = vmatpush1.msra.mxu0 %v132
    %140 = vmatprep.subr.mxu0 0.0
    %141 = vmatpush1.msra.mxu0 0.0
    %142 = vmatprep.subr.mxu0 0.0
    %143 = vmatpush1.msra.mxu0 0.0
    %144 = vmatprep.subr.mxu0 0.0
    %145 = vmatpush1.msra.mxu0 0.0
    %146 = vmatprep.subr.mxu0 0.0
    %147 = vmatpush1.msra.mxu0 0.0
    %148 = vmatprep.subr.mxu0 0.0
    %149 = vmatpush1.msra.mxu0 0.0
    %150 = vmatprep.subr.mxu0 0.0
    %151 = vmatpush1.msra.mxu0 0.0
    %152 = vmatprep.subr.mxu0 0.0
    %153 = vmatpush1.msra.mxu0 0.0
    %154 = vmatprep.subr.mxu0 0.0
    %155 = vmatpush1.msra.mxu0 0.0
    %156 = vmatprep.subr.mxu0 0.0
    %157 = vmatpush1.msra.mxu0 0.0
    %158 = vmatprep.subr.mxu0 0.0
    %159 = vmatpush1.msra.mxu0 0.0
    %160 = vmatprep.subr.mxu0 0.0
    %161 = vmatpush1.msra.mxu0 0.0
    %162 = vmatprep.subr.mxu0 0.0
    %163 = vmatpush1.msra.mxu0 0.0
    %164 = vmatprep.subr.mxu0 0.0
    %165 = vmatpush1.msra.mxu0 0.0
    %166 = vmatprep.subr.mxu0 0.0
    %167 = vmatpush1.msra.mxu0 0.0
    %168 = vmatprep.subr.mxu0 0.0
    %169 = vmatpush1.msra.mxu0 0.0
    %170 = vmatprep.subr.mxu0 0.0
    %171 = vmatpush1.msra.mxu0 0.0
    %172 = vmatprep.subr.mxu0 0.0
    %173 = vmatpush1.msra.mxu0 0.0
    %174 = vmatprep.subr.mxu0 0.0
    %175 = vmatpush1.msra.mxu0 0.0
    %176 = vmatprep.subr.mxu0 0.0
    %177 = vmatpush1.msra.mxu0 0.0
    %178 = vmatprep.subr.mxu0 0.0
    %179 = vmatpush1.msra.mxu0 0.0
    %180 = vmatprep.subr.mxu0 0.0
    %181 = vmatpush1.msra.mxu0 0.0
    %182 = vmatprep.subr.mxu0 0.0
    %183 = vmatpush1.msra.mxu0 0.0
    %184 = vmatprep.subr.mxu0 0.0
    %185 = vmatpush1.msra.mxu0 0.0
    %186 = vmatprep.subr.mxu0 0.0
    %187 = vmatpush1.msra.mxu0 0.0
    %188 = vmatprep.subr.mxu0 0.0
    %189 = vmatpush1.msra.mxu0 0.0
    %190 = vmatprep.subr.mxu0 0.0
    %191 = vmatpush1.msra.mxu0 0.0
    %192 = vmatprep.subr.mxu0 0.0
    %193 = vmatpush1.msra.mxu0 0.0
    %194 = vmatprep.subr.mxu0 0.0
    %195 = vmatpush1.msra.mxu0 0.0
    %196 = vmatprep.subr.mxu0 0.0
    %197 = vmatpush1.msra.mxu0 0.0
    %198 = vmatprep.mubr.f32.mxu0 0.0
    %199 = vmatmul.mubr.f32.gmra.mrb[0].mxu0 %v128
    %v200 = vpop.f32.mrb[0].mxu0
    %v201 = vadd.f32 0.0, %v200
    %v202 = vpop.f32.mrb[0].mxu0
    %203 = vdwg.mxu0
    %vm204 = vcmask 74752
    %v205 = vsel %vm204, %v201, -inf
    %206 = vmax.xlane.f32.xlu0 %v205
    %v207 = vpop.xlane.xlu0 %206
    %v208 = vsub.f32 %v201, %v207
    %v209 = vmul.f32 %v208, 1.442695
    %v210 = vpow.pop %v209
    %v211 = vsel %vm204, %v210, 0.0
    %212 = vadd.xlane.f32.xlu0 %v211
    %v213 = vpop.xlane.xlu0 %212
    %v214 = vlog2.pop %v213
    %v215 = vmul.f32 %v214, 0.6931472
    %v216 = vsub.f32 %v208, %v215
    %217 = vst.msk [vmem:[#allocation2] sm:$0x3] %vm204, %v216
    // Predicated region
    $region18: #{resnet_like_net.23} parent=1 // pred_check
      _
    $region19: #{resnet_like_net.23} parent=1 // pred_check_branch
      %219 = sbr.rel (0) target = $region21
    $region20: #{resnet_like_net.23} parent=1 // pred_region
      %s221 = ssub.s32 32, 32
      %222 = vsyncadd [#allocation3], %s221
      %s224 = sshll.u32 [#allocation2], 4
      %s225 = int_to_ptr.vmem [resolvable:$true] %s224
      %227 = dma.vmem_to_hbm [thread:$0]  %s225, 32, %s4, [#allocation3]
    $region21: #{resnet_like_net.23} parent=1 // pred_fallthru
      _
    // Predicated region
    $region22: #{resnet_like_net.23} parent=1 // pred_check
      _
    $region23: #{resnet_like_net.23} parent=1 // pred_check_branch
      %229 = sbr.rel (0) target = $region25
    $region24: #{resnet_like_net.23} parent=1 // pred_region
      %230 = dma.done [#allocation3], 32
    $region25: #{resnet_like_net.23} parent=1 // pred_fallthru
      _
    %231 = vsyncpa [#allocation3], 1

</llo_original>
